<compile_context>
chip_gen: v5e
topology: v5e:2x2
jax: 0.10.0
libtpu: 0.0.40
codegen_flags: <defaults>
</compile_context>

<pallas_src>
import jax
import jax.numpy as jnp
from jax.experimental import pallas as pl
from jax.experimental.pallas import tpu as pltpu


B = 8  # images per grid step (== f32 vreg sublane height -> free reshapes)


# ------------------------------ fused kernel --------------------------------

def _autoencoder_kernel(xs_ref, m1_ref, m2_ref, t1_ref, t2_ref, b_ref,
                        out_ref, pad_ref):
    """Whole ConvAutoencoder forward for B=8 images (one grid step).

    xs_ref : (1, 18*B, 48) bf16  H-padded input rows, flattened (row, image);
                                 lanes = (W=16, Cin=3).
    m1_ref : (3, 48, 256)  bf16  conv1 banded matrices (one per kh tap);
                                 columns = [even-w | odd-w] x (w/2=8, Cout=16).
    m2_ref : (2, 3, 128, 16) bf16 conv2 banded matrices [even/odd w][kh tap].
    t1_ref : (16, 256)     bf16  t_conv1, both kh taps side by side in N.
    t2_ref : (256, 192)    bf16  t_conv2, block-diagonal over t_conv1's kh tap.
    b_ref  : (4, 256)      f32   packed per-lane bias rows.
    out_ref: (1, 4, B, 192) f32  lanes = (a, d, W=16, Cout=3); final image
                                 row = 4*p + 2*a + d (undone in the wrapper).
    pad_ref: (10*B, 128)   f32   VMEM scratch: H-padded pool1, flattened
                                 (padded row, image); lanes = (w=8, C=16).
    """
    f32, bf16 = jnp.float32, jnp.bfloat16

    b1 = b_ref[0:1, :128]
    b2 = b_ref[1:2, :16]
    bt1 = b_ref[2:3, :256]
    bt2 = b_ref[3:4, :192]

    # H-pad rows of the pool1 scratch.  Re-written every grid step on purpose:
    # VMEM scratch is per-TensorCore, so never gate this on program_id under
    # "parallel" megacore sharding.
    pad_ref[0:B, :] = jnp.zeros((B, 128), f32)
    pad_ref[9 * B:10 * B, :] = jnp.zeros((B, 128), f32)

    # ---- conv1 (3x3, pad1, 3->16) + bias + ReLU + 2x2 max-pool --------------
    # Two half-slabs of 8 output rows each keep the f32 accumulator at
    # (64, 256) = 16 vregs (bounded register pressure), while M=64 keeps the
    # MXU reasonably fed on every generation.
    for q in range(2):
        acc = jnp.zeros((8 * B, 256), f32)
        for kh in range(3):
            lhs = xs_ref[0, (8 * q + kh) * B:(8 * q + kh + 8) * B, :]
            acc = acc + jnp.dot(lhs, m1_ref[kh], preferred_element_type=f32)
        acc = acc.reshape(8, B, 256)
        y = jnp.maximum(acc[..., :128], acc[..., 128:]) + b1       # W-pool
        y = jnp.maximum(y, 0.0).reshape(4, 2, B, 128)
        ph = jnp.maximum(y[:, 0], y[:, 1])                         # H-pool
        pad_ref[(4 * q + 1) * B:(4 * q + 5) * B, :] = ph.reshape(4 * B, 128)

    # ---- conv2 (3x3, pad1, 16->4) + bias + ReLU + 2x2 max-pool --------------
    acc_e = jnp.zeros((8 * B, 16), f32)
    acc_o = jnp.zeros((8 * B, 16), f32)
    for kh in range(3):
        lhs = pad_ref[kh * B:(kh + 8) * B, :].astype(bf16)         # (64, 128)
        acc_e = acc_e + jnp.dot(lhs, m2_ref[0, kh], preferred_element_type=f32)
        acc_o = acc_o + jnp.dot(lhs, m2_ref[1, kh], preferred_element_type=f32)
    z = jnp.maximum(acc_e, acc_o).reshape(8, B, 16) + b2           # W-pool
    z = jnp.maximum(z, 0.0).reshape(4, 2, B, 16)
    p2 = jnp.maximum(z[:, 0], z[:, 1]).reshape(4 * B, 16).astype(bf16)  # H-pool

    # ---- t_conv1 (2x2, stride 2, 4->16) + ReLU: both kh taps, one matmul ----
    a = jnp.dot(p2, t1_ref[...], preferred_element_type=f32) + bt1
    a = jnp.maximum(a, 0.0).astype(bf16)                           # (32, 256)

    # ---- t_conv2 (2x2, stride 2, 16->3) + sigmoid: one block-diag matmul ----
    v = jnp.dot(a, t2_ref[...], preferred_element_type=f32) + bt2  # (32, 192)
    o = pl.reciprocal(1.0 + jnp.exp(-v), approx=True)              # sigmoid/EUP
    out_ref[0] = o.reshape(4, B, 192)


# --------------------------- weight repacking --------------------------------

def prepare_params(params):
    """Repack PyTorch-layout weights into banded matmul operands (weight-only)."""
    f32, bf16 = jnp.float32, jnp.bfloat16

    def band_conv(w, w_out, w_in, shift):
        # w: (Cout, Cin, 3, 3).  Rows = (input col, Cin), cols = (out w, Cout).
        cout, cin = w.shape[0], w.shape[1]
        d = jnp.arange(3)[:, None, None]
        p = jnp.arange(w_in)[None, :, None]
        wo = jnp.arange(w_out)[None, None, :]
        ind = (p == wo + d - shift).astype(f32)                  # (3, w_in, w_out)
        m = jnp.einsum("oikd,dpw->kpiwo", w.astype(f32), ind)    # (3,P,Ci,Wo,Co)
        return m.reshape(3, w_in * cin, w_out, cout)

    # conv1: boundary taps folded into the banded matrix (no wrapper W-pad);
    # output columns regrouped [even w | odd w] so the W max-pool is a vreg max.
    m1 = band_conv(params["conv1_w"], 16, 16, 1)                 # (3, 48, 16, 16)
    m1 = m1.reshape(3, 48, 8, 2, 16).transpose(0, 1, 3, 2, 4)
    m1 = m1.reshape(3, 48, 256).astype(bf16)

    # conv2: even / odd output-w banded matrices, stacked into one operand.
    m2 = band_conv(params["conv2_w"], 8, 8, 1)                   # (3, 128, 8, 4)
    m2e = m2[:, :, 0::2, :].reshape(3, 128, 16)
    m2o = m2[:, :, 1::2, :].reshape(3, 128, 16)
    m2s = jnp.stack([m2e, m2o]).astype(bf16)                     # (2, 3, 128, 16)

    def band_tconv(w, w_in):
        # w: (Cin, Cout, 2, 2) PyTorch ConvTranspose2d weight.
        cin, cout = w.shape[0], w.shape[1]
        w_out = 2 * w_in
        d = jnp.arange(2)[:, None, None]
        x = jnp.arange(w_in)[None, :, None]
        wo = jnp.arange(w_out)[None, None, :]
        ind = (wo == 2 * x + d).astype(f32)                       # (2, w_in, w_out)
        t = jnp.einsum("iokd,dxw->kxiwo", w.astype(f32), ind)     # (2,Wi,Ci,Wo,Co)
        return t.reshape(2, w_in * cin, w_out * cout)

    # t_conv1: both kh taps side by side in N -> one matmul.
    t1 = band_tconv(params["t_conv1_w"], 4)                       # (2, 16, 128)
    t1m = jnp.concatenate([t1[0], t1[1]], axis=-1).astype(bf16)   # (16, 256)

    # t_conv2: block-diagonal over t_conv1's kh tap so the whole decoder tail
    # is one (32, 256) x (256, 192) matmul with a 192-lane-dense output.
    t2 = band_tconv(params["t_conv2_w"], 8)                       # (2, 128, 48)
    t2m = jnp.concatenate([t2[0], t2[1]], axis=-1)                # (128, 96)
    t2bd = jnp.zeros((256, 192), f32)
    t2bd = t2bd.at[:128, :96].set(t2m).at[128:, 96:].set(t2m)
    t2bd = t2bd.astype(bf16)

    # All four biases packed into one f32 operand.
    biases = jnp.zeros((4, 256), f32)
    biases = biases.at[0, :128].set(jnp.tile(params["conv1_b"].astype(f32), 8))
    biases = biases.at[1, :16].set(jnp.tile(params["conv2_b"].astype(f32), 4))
    biases = biases.at[2, :256].set(jnp.tile(params["t_conv1_b"].astype(f32), 16))
    biases = biases.at[3, :192].set(jnp.tile(params["t_conv2_b"].astype(f32), 64))

    return m1, m2s, t1m, t2bd, biases


# ------------------------------ pallas_call ----------------------------------

def _fused_forward(xs, m1, m2s, t1m, t2bd, biases):
    g = xs.shape[0]

    def whole(a):
        return pl.BlockSpec(a.shape, lambda i, nd=a.ndim: (0,) * nd)

    return pl.pallas_call(
        _autoencoder_kernel,
        out_shape=jax.ShapeDtypeStruct((g, 4, B, 192), jnp.float32),
        grid_spec=pltpu.PrefetchScalarGridSpec(
            num_scalar_prefetch=0,
            grid=(g,),
            in_specs=[
                pl.BlockSpec((1, 18 * B, 48), lambda i: (i, 0, 0)),
                whole(m1), whole(m2s), whole(t1m), whole(t2bd), whole(biases),
            ],
            out_specs=pl.BlockSpec((1, 4, B, 192), lambda i: (i, 0, 0, 0)),
            scratch_shapes=[pltpu.VMEM((10 * B, 128), jnp.float32)],
        ),
        compiler_params=pltpu.CompilerParams(
            dimension_semantics=("parallel",)),
    )(xs, m1, m2s, t1m, t2bd, biases)


# ------------------------------ model forward --------------------------------

def conv_autoencoder_forward(params, x_nchw):
    n = x_nchw.shape[0]
    consts = prepare_params(params)                               # weight-only

    g = (n + B - 1) // B
    n_pad = g * B
    x = x_nchw
    if n_pad != n:
        x = jnp.pad(x, ((0, n_pad - n), (0, 0), (0, 0), (0, 0)))

    # NCHW -> (G, 18*B, 48): H-padded rows flattened (row, image), lanes=(W,Cin).
    x = jnp.transpose(x, (0, 2, 3, 1)).reshape(n_pad, 16, 48)
    x = jnp.pad(x, ((0, 0), (1, 1), (0, 0)))                      # H pad only
    x = x.reshape(g, B, 18, 48).transpose(0, 2, 1, 3)
    xs = x.reshape(g, 18 * B, 48).astype(jnp.bfloat16)

    o = _fused_forward(xs, *consts)                               # (G, 4, B, 192)

    # (G, p, B, (a, d, W, C)) -> NCHW; final image row = 4*p + 2*a + d.
    o = o.reshape(g, 4, B, 2, 2, 16, 3)
    o = o.transpose(0, 2, 6, 1, 3, 4, 5)                          # (G,B,C,p,a,d,W)
    o = o.reshape(n_pad, 3, 16, 16)
    return o[:n]


# ----------------------------- init / reference ------------------------------

def init_params(key):
    keys = jax.random.split(key, 8)

    def u(k, shape, fan_in):
        bound = 1.0 / (fan_in ** 0.5)
        return jax.random.uniform(k, shape, jnp.float32, -bound, bound)

    return {
        "conv1_w": u(keys[0], (16, 3, 3, 3), 3 * 9),
        "conv1_b": u(keys[1], (16,), 3 * 9),
        "conv2_w": u(keys[2], (4, 16, 3, 3), 16 * 9),
        "conv2_b": u(keys[3], (4,), 16 * 9),
        "t_conv1_w": u(keys[4], (4, 16, 2, 2), 16 * 4),
        "t_conv1_b": u(keys[5], (16,), 16 * 4),
        "t_conv2_w": u(keys[6], (16, 3, 2, 2), 3 * 4),
        "t_conv2_b": u(keys[7], (3,), 3 * 4),
    }


def _reference_forward(params, x):
    """Plain-XLA reference (f32) for a correctness cross-check."""
    dn = ("NCHW", "OIHW", "NCHW")

    def conv(v, w, b):
        y = jax.lax.conv_general_dilated(v, w, (1, 1), "SAME",
                                         dimension_numbers=dn)
        return y + b[None, :, None, None]

    def pool(v):
        return jax.lax.reduce_window(v, -jnp.inf, jax.lax.max,
                                     (1, 1, 2, 2), (1, 1, 2, 2), "VALID")

    def tconv(v, w, b):
        y = jnp.einsum("nihw,iokl->nohkwl", v, w)
        nb, co, hh, _, ww, _ = y.shape
        return y.reshape(nb, co, 2 * hh, 2 * ww) + b[None, :, None, None]

    v = jax.nn.relu(conv(x, params["conv1_w"], params["conv1_b"]))
    v = pool(v)
    v = jax.nn.relu(conv(v, params["conv2_w"], params["conv2_b"]))
    v = pool(v)
    v = jax.nn.relu(tconv(v, params["t_conv1_w"], params["t_conv1_b"]))
    v = jax.nn.sigmoid(tconv(v, params["t_conv2_w"], params["t_conv2_b"]))
    return v


if __name__ == "__main__":
    key = jax.random.PRNGKey(0)
    pkey, xkey = jax.random.split(key)
    params = init_params(pkey)
    # 16 images -> 2 grid steps of 8 images each (both v7x TensorCores busy).
    x = jax.random.normal(xkey, (16, 3, 16, 16), jnp.float32)

    fwd = jax.jit(conv_autoencoder_forward)
    y = jax.block_until_ready(fwd(params, x))

    assert y.shape == (16, 3, 16, 16), y.shape
    assert bool(jnp.all(jnp.isfinite(y)))
    assert bool(jnp.all((y >= 0.0) & (y <= 1.0 + 1e-3)))   # sigmoid output range

    y_ref = _reference_forward(params, x)
    err = float(jnp.max(jnp.abs(y - y_ref)))
    assert err < 6e-2, f"mismatch vs reference: {err}"

    print("KERNEL_OK")
</pallas_src>

<mosaic_0001>
module attributes {stable_mosaic.version = 11 : i64} {
  func.func @_autoencoder_kernel(%arg0: i32, %arg1: memref<1x144x48xbf16, #tpu.memory_space<vmem>>, %arg2: memref<3x48x256xbf16, #tpu.memory_space<vmem>>, %arg3: memref<2x3x128x16xbf16, #tpu.memory_space<vmem>>, %arg4: memref<16x256xbf16, #tpu.memory_space<vmem>>, %arg5: memref<256x192xbf16, #tpu.memory_space<vmem>>, %arg6: memref<4x256xf32, #tpu.memory_space<vmem>>, %arg7: memref<1x4x8x192xf32, #tpu.memory_space<vmem>>, %arg8: memref<80x128xf32, #tpu.memory_space<vmem>>) attributes {dimension_semantics = [#tpu.dimension_semantics<parallel>], iteration_bounds = array<i64: 2>, scalar_prefetch = 0 : i64, scratch_operands = 1 : i64, tpu.core_type = #tpu.core_type<tc>, window_params = [{transform_indices = @transform_0, window_bounds = array<i64: 1, 144, 48>}, {pipeline_mode = #tpu.pipeline_mode<synchronous>, transform_indices = @transform_1, window_bounds = array<i64: 3, 48, 256>}, {pipeline_mode = #tpu.pipeline_mode<synchronous>, transform_indices = @transform_2, window_bounds = array<i64: 2, 3, 128, 16>}, {pipeline_mode = #tpu.pipeline_mode<synchronous>, transform_indices = @transform_3, window_bounds = array<i64: 16, 256>}, {pipeline_mode = #tpu.pipeline_mode<synchronous>, transform_indices = @transform_4, window_bounds = array<i64: 256, 192>}, {pipeline_mode = #tpu.pipeline_mode<synchronous>, transform_indices = @transform_5, window_bounds = array<i64: 4, 256>}, {transform_indices = @transform_6, window_bounds = array<i64: 1, 4, 8, 192>}]} {
    %c0 = arith.constant 0 : index
    %c0_0 = arith.constant 0 : index
    %0 = vector.load %arg6[%c0, %c0_0] : memref<4x256xf32, #tpu.memory_space<vmem>>, vector<1x128xf32>
    %c1 = arith.constant 1 : index
    %c0_1 = arith.constant 0 : index
    %1 = vector.load %arg6[%c1, %c0_1] : memref<4x256xf32, #tpu.memory_space<vmem>>, vector<1x16xf32>
    %c2 = arith.constant 2 : index
    %c0_2 = arith.constant 0 : index
    %2 = vector.load %arg6[%c2, %c0_2] : memref<4x256xf32, #tpu.memory_space<vmem>>, vector<1x256xf32>
    %c3 = arith.constant 3 : index
    %c0_3 = arith.constant 0 : index
    %3 = vector.load %arg6[%c3, %c0_3] : memref<4x256xf32, #tpu.memory_space<vmem>>, vector<1x192xf32>
    %cst = arith.constant 0.000000e+00 : f32
    %4 = vector.broadcast %cst : f32 to vector<8x128xf32>
    %c0_4 = arith.constant 0 : index
    %c0_5 = arith.constant 0 : index
    %5 = vector.load %arg8[%c0_4, %c0_5] : memref<80x128xf32, #tpu.memory_space<vmem>>, vector<8x128xf32>
    tpu.vector_store %arg8[%c0_4, %c0_5], %4 {strides = array<i32>} : memref<80x128xf32, #tpu.memory_space<vmem>>, vector<8x128xf32>,
    %cst_6 = arith.constant 0.000000e+00 : f32
    %6 = vector.broadcast %cst_6 : f32 to vector<8x128xf32>
    %c72 = arith.constant 72 : index
    %c0_7 = arith.constant 0 : index
    %7 = vector.load %arg8[%c72, %c0_7] : memref<80x128xf32, #tpu.memory_space<vmem>>, vector<8x128xf32>
    tpu.vector_store %arg8[%c72, %c0_7], %6 {strides = array<i32>} : memref<80x128xf32, #tpu.memory_space<vmem>>, vector<8x128xf32>,
    %cst_8 = arith.constant 0.000000e+00 : f32
    %8 = vector.broadcast %cst_8 : f32 to vector<64x256xf32>
    %c0_9 = arith.constant 0 : index
    %c0_10 = arith.constant 0 : index
    %c0_11 = arith.constant 0 : index
    %9 = vector.load %arg1[%c0_9, %c0_10, %c0_11] : memref<1x144x48xbf16, #tpu.memory_space<vmem>>, vector<1x64x48xbf16>
    %10 = vector.shape_cast %9 : vector<1x64x48xbf16> to vector<64x48xbf16>
    %c0_12 = arith.constant 0 : index
    %c0_13 = arith.constant 0 : index
    %c0_14 = arith.constant 0 : index
    %11 = vector.load %arg2[%c0_12, %c0_13, %c0_14] : memref<3x48x256xbf16, #tpu.memory_space<vmem>>, vector<1x48x256xbf16>
    %12 = vector.shape_cast %11 : vector<1x48x256xbf16> to vector<48x256xbf16>
    %cst_15 = arith.constant dense<0.000000e+00> : vector<64x256xf32>
    %13 = tpu.matmul %10, %12, %cst_15 {dimension_numbers = #tpu.dot_dimension_numbers<[1], [0], [0], [1], [0, 0, 1, 1], [], []>} : vector<64x48xbf16>, vector<48x256xbf16>, vector<64x256xf32> -> vector<64x256xf32>
    %14 = arith.addf %8, %13 : vector<64x256xf32>
    %c0_16 = arith.constant 0 : index
    %c8 = arith.constant 8 : index
    %c0_17 = arith.constant 0 : index
    %15 = vector.load %arg1[%c0_16, %c8, %c0_17] : memref<1x144x48xbf16, #tpu.memory_space<vmem>>, vector<1x64x48xbf16>
    %16 = vector.shape_cast %15 : vector<1x64x48xbf16> to vector<64x48xbf16>
    %c1_18 = arith.constant 1 : index
    %c0_19 = arith.constant 0 : index
    %c0_20 = arith.constant 0 : index
    %17 = vector.load %arg2[%c1_18, %c0_19, %c0_20] : memref<3x48x256xbf16, #tpu.memory_space<vmem>>, vector<1x48x256xbf16>
    %18 = vector.shape_cast %17 : vector<1x48x256xbf16> to vector<48x256xbf16>
    %cst_21 = arith.constant dense<0.000000e+00> : vector<64x256xf32>
    %19 = tpu.matmul %16, %18, %cst_21 {dimension_numbers = #tpu.dot_dimension_numbers<[1], [0], [0], [1], [0, 0, 1, 1], [], []>} : vector<64x48xbf16>, vector<48x256xbf16>, vector<64x256xf32> -> vector<64x256xf32>
    %20 = arith.addf %14, %19 : vector<64x256xf32>
    %c0_22 = arith.constant 0 : index
    %c16 = arith.constant 16 : index
    %c0_23 = arith.constant 0 : index
    %21 = vector.load %arg1[%c0_22, %c16, %c0_23] : memref<1x144x48xbf16, #tpu.memory_space<vmem>>, vector<1x64x48xbf16>
    %22 = vector.shape_cast %21 : vector<1x64x48xbf16> to vector<64x48xbf16>
    %c2_24 = arith.constant 2 : index
    %c0_25 = arith.constant 0 : index
    %c0_26 = arith.constant 0 : index
    %23 = vector.load %arg2[%c2_24, %c0_25, %c0_26] : memref<3x48x256xbf16, #tpu.memory_space<vmem>>, vector<1x48x256xbf16>
    %24 = vector.shape_cast %23 : vector<1x48x256xbf16> to vector<48x256xbf16>
    %cst_27 = arith.constant dense<0.000000e+00> : vector<64x256xf32>
    %25 = tpu.matmul %22, %24, %cst_27 {dimension_numbers = #tpu.dot_dimension_numbers<[1], [0], [0], [1], [0, 0, 1, 1], [], []>} : vector<64x48xbf16>, vector<48x256xbf16>, vector<64x256xf32> -> vector<64x256xf32>
    %26 = arith.addf %20, %25 : vector<64x256xf32>
    %27 = vector.shape_cast %26 : vector<64x256xf32> to vector<8x8x256xf32>
    %28 = vector.extract_strided_slice %27 {offsets = [0, 0, 0], sizes = [8, 8, 128], strides = [1, 1, 1]} : vector<8x8x256xf32> to vector<8x8x128xf32>
    %29 = vector.extract_strided_slice %27 {offsets = [0, 0, 128], sizes = [8, 8, 128], strides = [1, 1, 1]} : vector<8x8x256xf32> to vector<8x8x128xf32>
    %30 = arith.maximumf %28, %29 : vector<8x8x128xf32>
    %31 = vector.shape_cast %0 : vector<1x128xf32> to vector<1x1x128xf32>
    %32 = vector.broadcast %31 : vector<1x1x128xf32> to vector<8x8x128xf32>
    %33 = arith.addf %30, %32 : vector<8x8x128xf32>
    %cst_28 = arith.constant 0.000000e+00 : f32
    %34 = vector.broadcast %cst_28 : f32 to vector<8x8x128xf32>
    %35 = arith.maximumf %33, %34 : vector<8x8x128xf32>
    %36 = vector.shape_cast %35 : vector<8x8x128xf32> to vector<4x2x8x128xf32>
    %37 = vector.extract_strided_slice %36 {offsets = [0, 0, 0, 0], sizes = [4, 1, 8, 128], strides = [1, 1, 1, 1]} : vector<4x2x8x128xf32> to vector<4x1x8x128xf32>
    %38 = vector.shape_cast %37 : vector<4x1x8x128xf32> to vector<4x8x128xf32>
    %39 = vector.extract_strided_slice %36 {offsets = [0, 1, 0, 0], sizes = [4, 1, 8, 128], strides = [1, 1, 1, 1]} : vector<4x2x8x128xf32> to vector<4x1x8x128xf32>
    %40 = vector.shape_cast %39 : vector<4x1x8x128xf32> to vector<4x8x128xf32>
    %41 = arith.maximumf %38, %40 : vector<4x8x128xf32>
    %42 = vector.shape_cast %41 : vector<4x8x128xf32> to vector<32x128xf32>
    %c8_29 = arith.constant 8 : index
    %c0_30 = arith.constant 0 : index
    %43 = vector.load %arg8[%c8_29, %c0_30] : memref<80x128xf32, #tpu.memory_space<vmem>>, vector<32x128xf32>
    tpu.vector_store %arg8[%c8_29, %c0_30], %42 {strides = array<i32>} : memref<80x128xf32, #tpu.memory_space<vmem>>, vector<32x128xf32>,
    %cst_31 = arith.constant 0.000000e+00 : f32
    %44 = vector.broadcast %cst_31 : f32 to vector<64x256xf32>
    %c0_32 = arith.constant 0 : index
    %c64 = arith.constant 64 : index
    %c0_33 = arith.constant 0 : index
    %45 = vector.load %arg1[%c0_32, %c64, %c0_33] : memref<1x144x48xbf16, #tpu.memory_space<vmem>>, vector<1x64x48xbf16>
    %46 = vector.shape_cast %45 : vector<1x64x48xbf16> to vector<64x48xbf16>
    %c0_34 = arith.constant 0 : index
    %c0_35 = arith.constant 0 : index
    %c0_36 = arith.constant 0 : index
    %47 = vector.load %arg2[%c0_34, %c0_35, %c0_36] : memref<3x48x256xbf16, #tpu.memory_space<vmem>>, vector<1x48x256xbf16>
    %48 = vector.shape_cast %47 : vector<1x48x256xbf16> to vector<48x256xbf16>
    %cst_37 = arith.constant dense<0.000000e+00> : vector<64x256xf32>
    %49 = tpu.matmul %46, %48, %cst_37 {dimension_numbers = #tpu.dot_dimension_numbers<[1], [0], [0], [1], [0, 0, 1, 1], [], []>} : vector<64x48xbf16>, vector<48x256xbf16>, vector<64x256xf32> -> vector<64x256xf32>
    %50 = arith.addf %44, %49 : vector<64x256xf32>
    %c0_38 = arith.constant 0 : index
    %c72_39 = arith.constant 72 : index
    %c0_40 = arith.constant 0 : index
    %51 = vector.load %arg1[%c0_38, %c72_39, %c0_40] : memref<1x144x48xbf16, #tpu.memory_space<vmem>>, vector<1x64x48xbf16>
    %52 = vector.shape_cast %51 : vector<1x64x48xbf16> to vector<64x48xbf16>
    %c1_41 = arith.constant 1 : index
    %c0_42 = arith.constant 0 : index
    %c0_43 = arith.constant 0 : index
    %53 = vector.load %arg2[%c1_41, %c0_42, %c0_43] : memref<3x48x256xbf16, #tpu.memory_space<vmem>>, vector<1x48x256xbf16>
    %54 = vector.shape_cast %53 : vector<1x48x256xbf16> to vector<48x256xbf16>
    %cst_44 = arith.constant dense<0.000000e+00> : vector<64x256xf32>
    %55 = tpu.matmul %52, %54, %cst_44 {dimension_numbers = #tpu.dot_dimension_numbers<[1], [0], [0], [1], [0, 0, 1, 1], [], []>} : vector<64x48xbf16>, vector<48x256xbf16>, vector<64x256xf32> -> vector<64x256xf32>
    %56 = arith.addf %50, %55 : vector<64x256xf32>
    %c0_45 = arith.constant 0 : index
    %c80 = arith.constant 80 : index
    %c0_46 = arith.constant 0 : index
    %57 = vector.load %arg1[%c0_45, %c80, %c0_46] : memref<1x144x48xbf16, #tpu.memory_space<vmem>>, vector<1x64x48xbf16>
    %58 = vector.shape_cast %57 : vector<1x64x48xbf16> to vector<64x48xbf16>
    %c2_47 = arith.constant 2 : index
    %c0_48 = arith.constant 0 : index
    %c0_49 = arith.constant 0 : index
    %59 = vector.load %arg2[%c2_47, %c0_48, %c0_49] : memref<3x48x256xbf16, #tpu.memory_space<vmem>>, vector<1x48x256xbf16>
    %60 = vector.shape_cast %59 : vector<1x48x256xbf16> to vector<48x256xbf16>
    %cst_50 = arith.constant dense<0.000000e+00> : vector<64x256xf32>
    %61 = tpu.matmul %58, %60, %cst_50 {dimension_numbers = #tpu.dot_dimension_numbers<[1], [0], [0], [1], [0, 0, 1, 1], [], []>} : vector<64x48xbf16>, vector<48x256xbf16>, vector<64x256xf32> -> vector<64x256xf32>
    %62 = arith.addf %56, %61 : vector<64x256xf32>
    %63 = vector.shape_cast %62 : vector<64x256xf32> to vector<8x8x256xf32>
    %64 = vector.extract_strided_slice %63 {offsets = [0, 0, 0], sizes = [8, 8, 128], strides = [1, 1, 1]} : vector<8x8x256xf32> to vector<8x8x128xf32>
    %65 = vector.extract_strided_slice %63 {offsets = [0, 0, 128], sizes = [8, 8, 128], strides = [1, 1, 1]} : vector<8x8x256xf32> to vector<8x8x128xf32>
    %66 = arith.maximumf %64, %65 : vector<8x8x128xf32>
    %67 = vector.shape_cast %0 : vector<1x128xf32> to vector<1x1x128xf32>
    %68 = vector.broadcast %67 : vector<1x1x128xf32> to vector<8x8x128xf32>
    %69 = arith.addf %66, %68 : vector<8x8x128xf32>
    %cst_51 = arith.constant 0.000000e+00 : f32
    %70 = vector.broadcast %cst_51 : f32 to vector<8x8x128xf32>
    %71 = arith.maximumf %69, %70 : vector<8x8x128xf32>
    %72 = vector.shape_cast %71 : vector<8x8x128xf32> to vector<4x2x8x128xf32>
    %73 = vector.extract_strided_slice %72 {offsets = [0, 0, 0, 0], sizes = [4, 1, 8, 128], strides = [1, 1, 1, 1]} : vector<4x2x8x128xf32> to vector<4x1x8x128xf32>
    %74 = vector.shape_cast %73 : vector<4x1x8x128xf32> to vector<4x8x128xf32>
    %75 = vector.extract_strided_slice %72 {offsets = [0, 1, 0, 0], sizes = [4, 1, 8, 128], strides = [1, 1, 1, 1]} : vector<4x2x8x128xf32> to vector<4x1x8x128xf32>
    %76 = vector.shape_cast %75 : vector<4x1x8x128xf32> to vector<4x8x128xf32>
    %77 = arith.maximumf %74, %76 : vector<4x8x128xf32>
    %78 = vector.shape_cast %77 : vector<4x8x128xf32> to vector<32x128xf32>
    %c40 = arith.constant 40 : index
    %c0_52 = arith.constant 0 : index
    %79 = vector.load %arg8[%c40, %c0_52] : memref<80x128xf32, #tpu.memory_space<vmem>>, vector<32x128xf32>
    tpu.vector_store %arg8[%c40, %c0_52], %78 {strides = array<i32>} : memref<80x128xf32, #tpu.memory_space<vmem>>, vector<32x128xf32>,
    %cst_53 = arith.constant 0.000000e+00 : f32
    %80 = vector.broadcast %cst_53 : f32 to vector<64x16xf32>
    %cst_54 = arith.constant 0.000000e+00 : f32
    %81 = vector.broadcast %cst_54 : f32 to vector<64x16xf32>
    %c0_55 = arith.constant 0 : index
    %c0_56 = arith.constant 0 : index
    %82 = vector.load %arg8[%c0_55, %c0_56] : memref<80x128xf32, #tpu.memory_space<vmem>>, vector<64x128xf32>
    %83 = arith.truncf %82 : vector<64x128xf32> to vector<64x128xbf16>
    %c0_57 = arith.constant 0 : index
    %c0_58 = arith.constant 0 : index
    %c0_59 = arith.constant 0 : index
    %c0_60 = arith.constant 0 : index
    %84 = vector.load %arg3[%c0_57, %c0_58, %c0_59, %c0_60] : memref<2x3x128x16xbf16, #tpu.memory_space<vmem>>, vector<1x1x128x16xbf16>
    %85 = vector.shape_cast %84 : vector<1x1x128x16xbf16> to vector<128x16xbf16>
    %cst_61 = arith.constant dense<0.000000e+00> : vector<64x16xf32>
    %86 = tpu.matmul %83, %85, %cst_61 {dimension_numbers = #tpu.dot_dimension_numbers<[1], [0], [0], [1], [0, 0, 1, 1], [], []>} : vector<64x128xbf16>, vector<128x16xbf16>, vector<64x16xf32> -> vector<64x16xf32>
    %87 = arith.addf %80, %86 : vector<64x16xf32>
    %c1_62 = arith.constant 1 : index
    %c0_63 = arith.constant 0 : index
    %c0_64 = arith.constant 0 : index
    %c0_65 = arith.constant 0 : index
    %88 = vector.load %arg3[%c1_62, %c0_63, %c0_64, %c0_65] : memref<2x3x128x16xbf16, #tpu.memory_space<vmem>>, vector<1x1x128x16xbf16>
    %89 = vector.shape_cast %88 : vector<1x1x128x16xbf16> to vector<128x16xbf16>
    %cst_66 = arith.constant dense<0.000000e+00> : vector<64x16xf32>
    %90 = tpu.matmul %83, %89, %cst_66 {dimension_numbers = #tpu.dot_dimension_numbers<[1], [0], [0], [1], [0, 0, 1, 1], [], []>} : vector<64x128xbf16>, vector<128x16xbf16>, vector<64x16xf32> -> vector<64x16xf32>
    %91 = arith.addf %81, %90 : vector<64x16xf32>
    %c8_67 = arith.constant 8 : index
    %c0_68 = arith.constant 0 : index
    %92 = vector.load %arg8[%c8_67, %c0_68] : memref<80x128xf32, #tpu.memory_space<vmem>>, vector<64x128xf32>
    %93 = arith.truncf %92 : vector<64x128xf32> to vector<64x128xbf16>
    %c0_69 = arith.constant 0 : index
    %c1_70 = arith.constant 1 : index
    %c0_71 = arith.constant 0 : index
    %c0_72 = arith.constant 0 : index
    %94 = vector.load %arg3[%c0_69, %c1_70, %c0_71, %c0_72] : memref<2x3x128x16xbf16, #tpu.memory_space<vmem>>, vector<1x1x128x16xbf16>
    %95 = vector.shape_cast %94 : vector<1x1x128x16xbf16> to vector<128x16xbf16>
    %cst_73 = arith.constant dense<0.000000e+00> : vector<64x16xf32>
    %96 = tpu.matmul %93, %95, %cst_73 {dimension_numbers = #tpu.dot_dimension_numbers<[1], [0], [0], [1], [0, 0, 1, 1], [], []>} : vector<64x128xbf16>, vector<128x16xbf16>, vector<64x16xf32> -> vector<64x16xf32>
    %97 = arith.addf %87, %96 : vector<64x16xf32>
    %c1_74 = arith.constant 1 : index
    %c1_75 = arith.constant 1 : index
    %c0_76 = arith.constant 0 : index
    %c0_77 = arith.constant 0 : index
    %98 = vector.load %arg3[%c1_74, %c1_75, %c0_76, %c0_77] : memref<2x3x128x16xbf16, #tpu.memory_space<vmem>>, vector<1x1x128x16xbf16>
    %99 = vector.shape_cast %98 : vector<1x1x128x16xbf16> to vector<128x16xbf16>
    %cst_78 = arith.constant dense<0.000000e+00> : vector<64x16xf32>
    %100 = tpu.matmul %93, %99, %cst_78 {dimension_numbers = #tpu.dot_dimension_numbers<[1], [0], [0], [1], [0, 0, 1, 1], [], []>} : vector<64x128xbf16>, vector<128x16xbf16>, vector<64x16xf32> -> vector<64x16xf32>
    %101 = arith.addf %91, %100 : vector<64x16xf32>
    %c16_79 = arith.constant 16 : index
    %c0_80 = arith.constant 0 : index
    %102 = vector.load %arg8[%c16_79, %c0_80] : memref<80x128xf32, #tpu.memory_space<vmem>>, vector<64x128xf32>
    %103 = arith.truncf %102 : vector<64x128xf32> to vector<64x128xbf16>
    %c0_81 = arith.constant 0 : index
    %c2_82 = arith.constant 2 : index
    %c0_83 = arith.constant 0 : index
    %c0_84 = arith.constant 0 : index
    %104 = vector.load %arg3[%c0_81, %c2_82, %c0_83, %c0_84] : memref<2x3x128x16xbf16, #tpu.memory_space<vmem>>, vector<1x1x128x16xbf16>
    %105 = vector.shape_cast %104 : vector<1x1x128x16xbf16> to vector<128x16xbf16>
    %cst_85 = arith.constant dense<0.000000e+00> : vector<64x16xf32>
    %106 = tpu.matmul %103, %105, %cst_85 {dimension_numbers = #tpu.dot_dimension_numbers<[1], [0], [0], [1], [0, 0, 1, 1], [], []>} : vector<64x128xbf16>, vector<128x16xbf16>, vector<64x16xf32> -> vector<64x16xf32>
    %107 = arith.addf %97, %106 : vector<64x16xf32>
    %c1_86 = arith.constant 1 : index
    %c2_87 = arith.constant 2 : index
    %c0_88 = arith.constant 0 : index
    %c0_89 = arith.constant 0 : index
    %108 = vector.load %arg3[%c1_86, %c2_87, %c0_88, %c0_89] : memref<2x3x128x16xbf16, #tpu.memory_space<vmem>>, vector<1x1x128x16xbf16>
    %109 = vector.shape_cast %108 : vector<1x1x128x16xbf16> to vector<128x16xbf16>
    %cst_90 = arith.constant dense<0.000000e+00> : vector<64x16xf32>
    %110 = tpu.matmul %103, %109, %cst_90 {dimension_numbers = #tpu.dot_dimension_numbers<[1], [0], [0], [1], [0, 0, 1, 1], [], []>} : vector<64x128xbf16>, vector<128x16xbf16>, vector<64x16xf32> -> vector<64x16xf32>
    %111 = arith.addf %101, %110 : vector<64x16xf32>
    %112 = arith.maximumf %107, %111 : vector<64x16xf32>
    %113 = vector.shape_cast %112 : vector<64x16xf32> to vector<8x8x16xf32>
    %114 = vector.shape_cast %1 : vector<1x16xf32> to vector<1x1x16xf32>
    %115 = vector.broadcast %114 : vector<1x1x16xf32> to vector<8x8x16xf32>
    %116 = arith.addf %113, %115 : vector<8x8x16xf32>
    %cst_91 = arith.constant 0.000000e+00 : f32
    %117 = vector.broadcast %cst_91 : f32 to vector<8x8x16xf32>
    %118 = arith.maximumf %116, %117 : vector<8x8x16xf32>
    %119 = vector.shape_cast %118 : vector<8x8x16xf32> to vector<4x2x8x16xf32>
    %120 = vector.extract_strided_slice %119 {offsets = [0, 0, 0, 0], sizes = [4, 1, 8, 16], strides = [1, 1, 1, 1]} : vector<4x2x8x16xf32> to vector<4x1x8x16xf32>
    %121 = vector.shape_cast %120 : vector<4x1x8x16xf32> to vector<4x8x16xf32>
    %122 = vector.extract_strided_slice %119 {offsets = [0, 1, 0, 0], sizes = [4, 1, 8, 16], strides = [1, 1, 1, 1]} : vector<4x2x8x16xf32> to vector<4x1x8x16xf32>
    %123 = vector.shape_cast %122 : vector<4x1x8x16xf32> to vector<4x8x16xf32>
    %124 = arith.maximumf %121, %123 : vector<4x8x16xf32>
    %125 = vector.shape_cast %124 : vector<4x8x16xf32> to vector<32x16xf32>
    %126 = arith.truncf %125 : vector<32x16xf32> to vector<32x16xbf16>
    %c0_92 = arith.constant 0 : index
    %c0_93 = arith.constant 0 : index
    %127 = vector.load %arg4[%c0_92, %c0_93] : memref<16x256xbf16, #tpu.memory_space<vmem>>, vector<16x256xbf16>
    %cst_94 = arith.constant dense<0.000000e+00> : vector<32x256xf32>
    %128 = tpu.matmul %126, %127, %cst_94 {dimension_numbers = #tpu.dot_dimension_numbers<[1], [0], [0], [1], [0, 0, 1, 1], [], []>} : vector<32x16xbf16>, vector<16x256xbf16>, vector<32x256xf32> -> vector<32x256xf32>
    %129 = vector.broadcast %2 : vector<1x256xf32> to vector<32x256xf32>
    %130 = arith.addf %128, %129 : vector<32x256xf32>
    %cst_95 = arith.constant 0.000000e+00 : f32
    %131 = vector.broadcast %cst_95 : f32 to vector<32x256xf32>
    %132 = arith.maximumf %130, %131 : vector<32x256xf32>
    %133 = arith.truncf %132 : vector<32x256xf32> to vector<32x256xbf16>
    %c0_96 = arith.constant 0 : index
    %c0_97 = arith.constant 0 : index
    %134 = vector.load %arg5[%c0_96, %c0_97] : memref<256x192xbf16, #tpu.memory_space<vmem>>, vector<256x192xbf16>
    %cst_98 = arith.constant dense<0.000000e+00> : vector<32x192xf32>
    %135 = tpu.matmul %133, %134, %cst_98 {dimension_numbers = #tpu.dot_dimension_numbers<[1], [0], [0], [1], [0, 0, 1, 1], [], []>} : vector<32x256xbf16>, vector<256x192xbf16>, vector<32x192xf32> -> vector<32x192xf32>
    %136 = vector.broadcast %3 : vector<1x192xf32> to vector<32x192xf32>
    %137 = arith.addf %135, %136 : vector<32x192xf32>
    %cst_99 = arith.constant 0.000000e+00 : f32
    %138 = vector.broadcast %cst_99 : f32 to vector<32x192xf32>
    %139 = arith.subf %138, %137 : vector<32x192xf32>
    %140 = math.exp %139 : vector<32x192xf32>
    %cst_100 = arith.constant 1.000000e+00 : f32
    %141 = vector.broadcast %cst_100 : f32 to vector<32x192xf32>
    %142 = arith.addf %141, %140 : vector<32x192xf32>
    %143 = tpu.reciprocal %142 {approx = true} : vector<32x192xf32> -> vector<32x192xf32>
    %144 = vector.shape_cast %143 : vector<32x192xf32> to vector<4x8x192xf32>
    %c0_101 = arith.constant 0 : index
    %c0_102 = arith.constant 0 : index
    %c0_103 = arith.constant 0 : index
    %c0_104 = arith.constant 0 : index
    %145 = vector.load %arg7[%c0_101, %c0_102, %c0_103, %c0_104] : memref<1x4x8x192xf32, #tpu.memory_space<vmem>>, vector<1x4x8x192xf32>
    %146 = vector.shape_cast %145 : vector<1x4x8x192xf32> to vector<4x8x192xf32>
    %147 = vector.shape_cast %144 : vector<4x8x192xf32> to vector<1x4x8x192xf32>
    tpu.vector_store %arg7[%c0_101, %c0_102, %c0_103, %c0_104], %147 {strides = array<i32>} : memref<1x4x8x192xf32, #tpu.memory_space<vmem>>, vector<1x4x8x192xf32>,
    return
  }
  func.func @transform_0(%arg0: i32) -> (i32, i32, i32) {
    %c0_i32 = arith.constant 0 : i32
    %c0_i32_0 = arith.constant 0 : i32
    %c0_i32_1 = arith.constant 0 : i32
    return %arg0, %c0_i32, %c0_i32_0 : i32, i32, i32
  }
  func.func @transform_1(%arg0: i32) -> (i32, i32, i32) {
    %c0_i32 = arith.constant 0 : i32
    %c0_i32_0 = arith.constant 0 : i32
    %c0_i32_1 = arith.constant 0 : i32
    %c0_i32_2 = arith.constant 0 : i32
    return %c0_i32, %c0_i32_0, %c0_i32_1 : i32, i32, i32
  }
  func.func @transform_2(%arg0: i32) -> (i32, i32, i32, i32) {
    %c0_i32 = arith.constant 0 : i32
    %c0_i32_0 = arith.constant 0 : i32
    %c0_i32_1 = arith.constant 0 : i32
    %c0_i32_2 = arith.constant 0 : i32
    %c0_i32_3 = arith.constant 0 : i32
    return %c0_i32, %c0_i32_0, %c0_i32_1, %c0_i32_2 : i32, i32, i32, i32
  }
  func.func @transform_3(%arg0: i32) -> (i32, i32) {
    %c0_i32 = arith.constant 0 : i32
    %c0_i32_0 = arith.constant 0 : i32
    %c0_i32_1 = arith.constant 0 : i32
    return %c0_i32, %c0_i32_0 : i32, i32
  }
  func.func @transform_4(%arg0: i32) -> (i32, i32) {
    %c0_i32 = arith.constant 0 : i32
    %c0_i32_0 = arith.constant 0 : i32
    %c0_i32_1 = arith.constant 0 : i32
    return %c0_i32, %c0_i32_0 : i32, i32
  }
  func.func @transform_5(%arg0: i32) -> (i32, i32) {
    %c0_i32 = arith.constant 0 : i32
    %c0_i32_0 = arith.constant 0 : i32
    %c0_i32_1 = arith.constant 0 : i32
    return %c0_i32, %c0_i32_0 : i32, i32
  }
  func.func @transform_6(%arg0: i32) -> (i32, i32, i32, i32) {
    %c0_i32 = arith.constant 0 : i32
    %c0_i32_0 = arith.constant 0 : i32
    %c0_i32_1 = arith.constant 0 : i32
    %c0_i32_2 = arith.constant 0 : i32
    return %arg0, %c0_i32, %c0_i32_0, %c0_i32_1 : i32, i32, i32, i32
  }
}

</mosaic_0001>

<llo_original>
// kernel: squeeze.6
$region0: #{squeeze.6}
  %s0 = inlined_call_operand.vmem [shape: bf16[1,8,16,16,3], index: 0, kind: input, shape index: {}]
  %s1 = inlined_call_operand.vmem [shape: bf16[128,48], index: 1, kind: output, shape index: {}]
  $region1: #{squeeze.6} parent=0
    #allocation0 [shape = 'u8[24576]{0}', space=vmem, size = 0x6000, scoped, tag = 'scoped mem for output reshape']
    #allocation1 [shape = 'u8[196608]{0}', space=vmem, size = 0x30000, scoped, tag = 'scoped mem for input reshape']
    %s3 = ssub.s32 256, 1
    %s4 = scalar_lea.vmem %s0, 188
    %s5 = sshrl.u32 %s3, 1
    %s6 = sor.u32 %s3, %s5
    %s7 = sand.u32 %s6, 85
    %s8 = sshrl.u32 %s7, 1
    %s9 = sor.u32 %s7, %s8
    %s10 = sand.u32 51, %s9
    %s11 = sshrl.u32 %s10, 2
    %s12 = sor.u32 %s10, %s11
    %s13 = sand.u32 15, %s12
    %v14 = vld [vmem:[%s4] sm:%s13]
    %v15 = vunpack.c.l.bf16 %v14
    %v16 = vunpack.c.h.bf16 %v14
    %s17 = scalar_lea.vmem [#allocation1], 376
    %18 = vst [vmem:[%s17] sm:%s3] %v15
    %s19 = scalar_lea.vmem %s0, 184
    %s20 = sshrl.u32 %s3, 1
    %s21 = sor.u32 %s3, %s20
    %s22 = sand.u32 %s21, 85
    %s23 = sshrl.u32 %s22, 1
    %s24 = sor.u32 %s22, %s23
    %s25 = sand.u32 51, %s24
    %s26 = sshrl.u32 %s25, 2
    %s27 = sor.u32 %s25, %s26
    %s28 = sand.u32 15, %s27
    %v29 = vld [vmem:[%s19] sm:%s28]
    %v30 = vunpack.c.l.bf16 %v29
    %v31 = vunpack.c.h.bf16 %v29
    %s32 = scalar_lea.vmem [#allocation1], 368
    %33 = vst [vmem:[%s32] sm:%s3] %v30
    %s34 = scalar_lea.vmem %s0, 180
    %s35 = sshrl.u32 %s3, 1
    %s36 = sor.u32 %s3, %s35
    %s37 = sand.u32 %s36, 85
    %s38 = sshrl.u32 %s37, 1
    %s39 = sor.u32 %s37, %s38
    %s40 = sand.u32 51, %s39
    %s41 = sshrl.u32 %s40, 2
    %s42 = sor.u32 %s40, %s41
    %s43 = sand.u32 15, %s42
    %v44 = vld [vmem:[%s34] sm:%s43]
    %v45 = vunpack.c.l.bf16 %v44
    %v46 = vunpack.c.h.bf16 %v44
    %s47 = scalar_lea.vmem [#allocation1], 360
    %48 = vst [vmem:[%s47] sm:%s3] %v45
    %s49 = scalar_lea.vmem %s0, 176
    %s50 = sshrl.u32 %s3, 1
    %s51 = sor.u32 %s3, %s50
    %s52 = sand.u32 %s51, 85
    %s53 = sshrl.u32 %s52, 1
    %s54 = sor.u32 %s52, %s53
    %s55 = sand.u32 51, %s54
    %s56 = sshrl.u32 %s55, 2
    %s57 = sor.u32 %s55, %s56
    %s58 = sand.u32 15, %s57
    %v59 = vld [vmem:[%s49] sm:%s58]
    %v60 = vunpack.c.l.bf16 %v59
    %v61 = vunpack.c.h.bf16 %v59
    %s62 = scalar_lea.vmem [#allocation1], 352
    %63 = vst [vmem:[%s62] sm:%s3] %v60
    %s64 = scalar_lea.vmem %s0, 172
    %s65 = sshrl.u32 %s3, 1
    %s66 = sor.u32 %s3, %s65
    %s67 = sand.u32 %s66, 85
    %s68 = sshrl.u32 %s67, 1
    %s69 = sor.u32 %s67, %s68
    %s70 = sand.u32 51, %s69
    %s71 = sshrl.u32 %s70, 2
    %s72 = sor.u32 %s70, %s71
    %s73 = sand.u32 15, %s72
    %v74 = vld [vmem:[%s64] sm:%s73]
    %v75 = vunpack.c.l.bf16 %v74
    %v76 = vunpack.c.h.bf16 %v74
    %s77 = scalar_lea.vmem [#allocation1], 344
    %78 = vst [vmem:[%s77] sm:%s3] %v75
    %s79 = scalar_lea.vmem %s0, 168
    %s80 = sshrl.u32 %s3, 1
    %s81 = sor.u32 %s3, %s80
    %s82 = sand.u32 %s81, 85
    %s83 = sshrl.u32 %s82, 1
    %s84 = sor.u32 %s82, %s83
    %s85 = sand.u32 51, %s84
    %s86 = sshrl.u32 %s85, 2
    %s87 = sor.u32 %s85, %s86
    %s88 = sand.u32 15, %s87
    %v89 = vld [vmem:[%s79] sm:%s88]
    %v90 = vunpack.c.l.bf16 %v89
    %v91 = vunpack.c.h.bf16 %v89
    %s92 = scalar_lea.vmem [#allocation1], 336
    %93 = vst [vmem:[%s92] sm:%s3] %v90
    %s94 = scalar_lea.vmem %s0, 164
    %s95 = sshrl.u32 %s3, 1
    %s96 = sor.u32 %s3, %s95
    %s97 = sand.u32 %s96, 85
    %s98 = sshrl.u32 %s97, 1
    %s99 = sor.u32 %s97, %s98
    %s100 = sand.u32 51, %s99
    %s101 = sshrl.u32 %s100, 2
    %s102 = sor.u32 %s100, %s101
    %s103 = sand.u32 15, %s102
    %v104 = vld [vmem:[%s94] sm:%s103]
    %v105 = vunpack.c.l.bf16 %v104
    %v106 = vunpack.c.h.bf16 %v104
    %s107 = scalar_lea.vmem [#allocation1], 328
    %108 = vst [vmem:[%s107] sm:%s3] %v105
    %s109 = scalar_lea.vmem %s0, 160
    %s110 = sshrl.u32 %s3, 1
    %s111 = sor.u32 %s3, %s110
    %s112 = sand.u32 %s111, 85
    %s113 = sshrl.u32 %s112, 1
    %s114 = sor.u32 %s112, %s113
    %s115 = sand.u32 51, %s114
    %s116 = sshrl.u32 %s115, 2
    %s117 = sor.u32 %s115, %s116
    %s118 = sand.u32 15, %s117
    %v119 = vld [vmem:[%s109] sm:%s118]
    %v120 = vunpack.c.l.bf16 %v119
    %v121 = vunpack.c.h.bf16 %v119
    %s122 = scalar_lea.vmem [#allocation1], 320
    %123 = vst [vmem:[%s122] sm:%s3] %v120
    %s124 = scalar_lea.vmem %s0, 156
    %s125 = sshrl.u32 %s3, 1
    %s126 = sor.u32 %s3, %s125
    %s127 = sand.u32 %s126, 85
    %s128 = sshrl.u32 %s127, 1
    %s129 = sor.u32 %s127, %s128
    %s130 = sand.u32 51, %s129
    %s131 = sshrl.u32 %s130, 2
    %s132 = sor.u32 %s130, %s131
    %s133 = sand.u32 15, %s132
    %v134 = vld [vmem:[%s124] sm:%s133]
    %v135 = vunpack.c.l.bf16 %v134
    %v136 = vunpack.c.h.bf16 %v134
    %s137 = scalar_lea.vmem [#allocation1], 312
    %138 = vst [vmem:[%s137] sm:%s3] %v135
    %s139 = scalar_lea.vmem %s0, 152
    %s140 = sshrl.u32 %s3, 1
    %s141 = sor.u32 %s3, %s140
    %s142 = sand.u32 %s141, 85
    %s143 = sshrl.u32 %s142, 1
    %s144 = sor.u32 %s142, %s143
    %s145 = sand.u32 51, %s144
    %s146 = sshrl.u32 %s145, 2
    %s147 = sor.u32 %s145, %s146
    %s148 = sand.u32 15, %s147
    %v149 = vld [vmem:[%s139] sm:%s148]
    %v150 = vunpack.c.l.bf16 %v149
    %v151 = vunpack.c.h.bf16 %v149
    %s152 = scalar_lea.vmem [#allocation1], 304
    %153 = vst [vmem:[%s152] sm:%s3] %v150
    %s154 = scalar_lea.vmem %s0, 148
    %s155 = sshrl.u32 %s3, 1
    %s156 = sor.u32 %s3, %s155
    %s157 = sand.u32 %s156, 85
    %s158 = sshrl.u32 %s157, 1
    %s159 = sor.u32 %s157, %s158
    %s160 = sand.u32 51, %s159
    %s161 = sshrl.u32 %s160, 2
    %s162 = sor.u32 %s160, %s161
    %s163 = sand.u32 15, %s162
    %v164 = vld [vmem:[%s154] sm:%s163]
    %v165 = vunpack.c.l.bf16 %v164
    %v166 = vunpack.c.h.bf16 %v164
    %s167 = scalar_lea.vmem [#allocation1], 296
    %168 = vst [vmem:[%s167] sm:%s3] %v165
    %s169 = scalar_lea.vmem %s0, 144
    %s170 = sshrl.u32 %s3, 1
    %s171 = sor.u32 %s3, %s170
    %s172 = sand.u32 %s171, 85
    %s173 = sshrl.u32 %s172, 1
    %s174 = sor.u32 %s172, %s173
    %s175 = sand.u32 51, %s174
    %s176 = sshrl.u32 %s175, 2
    %s177 = sor.u32 %s175, %s176
    %s178 = sand.u32 15, %s177
    %v179 = vld [vmem:[%s169] sm:%s178]
    %v180 = vunpack.c.l.bf16 %v179
    %v181 = vunpack.c.h.bf16 %v179
    %s182 = scalar_lea.vmem [#allocation1], 288
    %183 = vst [vmem:[%s182] sm:%s3] %v180
    %s184 = scalar_lea.vmem %s0, 140
    %s185 = sshrl.u32 %s3, 1
    %s186 = sor.u32 %s3, %s185
    %s187 = sand.u32 %s186, 85
    %s188 = sshrl.u32 %s187, 1
    %s189 = sor.u32 %s187, %s188
    %s190 = sand.u32 51, %s189
    %s191 = sshrl.u32 %s190, 2
    %s192 = sor.u32 %s190, %s191
    %s193 = sand.u32 15, %s192
    %v194 = vld [vmem:[%s184] sm:%s193]
    %v195 = vunpack.c.l.bf16 %v194
    %v196 = vunpack.c.h.bf16 %v194
    %s197 = scalar_lea.vmem [#allocation1], 280
    %198 = vst [vmem:[%s197] sm:%s3] %v195
    %s199 = scalar_lea.vmem %s0, 136
    %s200 = sshrl.u32 %s3, 1
    %s201 = sor.u32 %s3, %s200
    %s202 = sand.u32 %s201, 85
    %s203 = sshrl.u32 %s202, 1
    %s204 = sor.u32 %s202, %s203
    %s205 = sand.u32 51, %s204
    %s206 = sshrl.u32 %s205, 2
    %s207 = sor.u32 %s205, %s206
    %s208 = sand.u32 15, %s207
    %v209 = vld [vmem:[%s199] sm:%s208]
    %v210 = vunpack.c.l.bf16 %v209
    %v211 = vunpack.c.h.bf16 %v209
    %s212 = scalar_lea.vmem [#allocation1], 272
    %213 = vst [vmem:[%s212] sm:%s3] %v210
    %s214 = scalar_lea.vmem %s0, 132
    %s215 = sshrl.u32 %s3, 1
    %s216 = sor.u32 %s3, %s215
    %s217 = sand.u32 %s216, 85
    %s218 = sshrl.u32 %s217, 1
    %s219 = sor.u32 %s217, %s218
    %s220 = sand.u32 51, %s219
    %s221 = sshrl.u32 %s220, 2
    %s222 = sor.u32 %s220, %s221
    %s223 = sand.u32 15, %s222
    %v224 = vld [vmem:[%s214] sm:%s223]
    %v225 = vunpack.c.l.bf16 %v224
    %v226 = vunpack.c.h.bf16 %v224
    %s227 = scalar_lea.vmem [#allocation1], 264
    %228 = vst [vmem:[%s227] sm:%s3] %v225
    %s229 = scalar_lea.vmem %s0, 128
    %s230 = sshrl.u32 %s3, 1
    %s231 = sor.u32 %s3, %s230
    %s232 = sand.u32 %s231, 85
    %s233 = sshrl.u32 %s232, 1
    %s234 = sor.u32 %s232, %s233
    %s235 = sand.u32 51, %s234
    %s236 = sshrl.u32 %s235, 2
    %s237 = sor.u32 %s235, %s236
    %s238 = sand.u32 15, %s237
    %v239 = vld [vmem:[%s229] sm:%s238]
    %v240 = vunpack.c.l.bf16 %v239
    %v241 = vunpack.c.h.bf16 %v239
    %s242 = scalar_lea.vmem [#allocation1], 256
    %243 = vst [vmem:[%s242] sm:%s3] %v240
    %s244 = scalar_lea.vmem %s0, 124
    %s245 = sshrl.u32 %s3, 1
    %s246 = sor.u32 %s3, %s245
    %s247 = sand.u32 %s246, 85
    %s248 = sshrl.u32 %s247, 1
    %s249 = sor.u32 %s247, %s248
    %s250 = sand.u32 51, %s249
    %s251 = sshrl.u32 %s250, 2
    %s252 = sor.u32 %s250, %s251
    %s253 = sand.u32 15, %s252
    %v254 = vld [vmem:[%s244] sm:%s253]
    %v255 = vunpack.c.l.bf16 %v254
    %v256 = vunpack.c.h.bf16 %v254
    %s257 = scalar_lea.vmem [#allocation1], 248
    %258 = vst [vmem:[%s257] sm:%s3] %v255
    %s259 = scalar_lea.vmem %s0, 120
    %s260 = sshrl.u32 %s3, 1
    %s261 = sor.u32 %s3, %s260
    %s262 = sand.u32 %s261, 85
    %s263 = sshrl.u32 %s262, 1
    %s264 = sor.u32 %s262, %s263
    %s265 = sand.u32 51, %s264
    %s266 = sshrl.u32 %s265, 2
    %s267 = sor.u32 %s265, %s266
    %s268 = sand.u32 15, %s267
    %v269 = vld [vmem:[%s259] sm:%s268]
    %v270 = vunpack.c.l.bf16 %v269
    %v271 = vunpack.c.h.bf16 %v269
    %s272 = scalar_lea.vmem [#allocation1], 240
    %273 = vst [vmem:[%s272] sm:%s3] %v270
    %s274 = scalar_lea.vmem %s0, 116
    %s275 = sshrl.u32 %s3, 1
    %s276 = sor.u32 %s3, %s275
    %s277 = sand.u32 %s276, 85
    %s278 = sshrl.u32 %s277, 1
    %s279 = sor.u32 %s277, %s278
    %s280 = sand.u32 51, %s279
    %s281 = sshrl.u32 %s280, 2
    %s282 = sor.u32 %s280, %s281
    %s283 = sand.u32 15, %s282
    %v284 = vld [vmem:[%s274] sm:%s283]
    %v285 = vunpack.c.l.bf16 %v284
    %v286 = vunpack.c.h.bf16 %v284
    %s287 = scalar_lea.vmem [#allocation1], 232
    %288 = vst [vmem:[%s287] sm:%s3] %v285
    %s289 = scalar_lea.vmem %s0, 112
    %s290 = sshrl.u32 %s3, 1
    %s291 = sor.u32 %s3, %s290
    %s292 = sand.u32 %s291, 85
    %s293 = sshrl.u32 %s292, 1
    %s294 = sor.u32 %s292, %s293
    %s295 = sand.u32 51, %s294
    %s296 = sshrl.u32 %s295, 2
    %s297 = sor.u32 %s295, %s296
    %s298 = sand.u32 15, %s297
    %v299 = vld [vmem:[%s289] sm:%s298]
    %v300 = vunpack.c.l.bf16 %v299
    %v301 = vunpack.c.h.bf16 %v299
    %s302 = scalar_lea.vmem [#allocation1], 224
    %303 = vst [vmem:[%s302] sm:%s3] %v300
    %s304 = scalar_lea.vmem %s0, 108
    %s305 = sshrl.u32 %s3, 1
    %s306 = sor.u32 %s3, %s305
    %s307 = sand.u32 %s306, 85
    %s308 = sshrl.u32 %s307, 1
    %s309 = sor.u32 %s307, %s308
    %s310 = sand.u32 51, %s309
    %s311 = sshrl.u32 %s310, 2
    %s312 = sor.u32 %s310, %s311
    %s313 = sand.u32 15, %s312
    %v314 = vld [vmem:[%s304] sm:%s313]
    %v315 = vunpack.c.l.bf16 %v314
    %v316 = vunpack.c.h.bf16 %v314
    %s317 = scalar_lea.vmem [#allocation1], 216
    %318 = vst [vmem:[%s317] sm:%s3] %v315
    %s319 = scalar_lea.vmem %s0, 104
    %s320 = sshrl.u32 %s3, 1
    %s321 = sor.u32 %s3, %s320
    %s322 = sand.u32 %s321, 85
    %s323 = sshrl.u32 %s322, 1
    %s324 = sor.u32 %s322, %s323
    %s325 = sand.u32 51, %s324
    %s326 = sshrl.u32 %s325, 2
    %s327 = sor.u32 %s325, %s326
    %s328 = sand.u32 15, %s327
    %v329 = vld [vmem:[%s319] sm:%s328]
    %v330 = vunpack.c.l.bf16 %v329
    %v331 = vunpack.c.h.bf16 %v329
    %s332 = scalar_lea.vmem [#allocation1], 208
    %333 = vst [vmem:[%s332] sm:%s3] %v330
    %s334 = scalar_lea.vmem %s0, 100
    %s335 = sshrl.u32 %s3, 1
    %s336 = sor.u32 %s3, %s335
    %s337 = sand.u32 %s336, 85
    %s338 = sshrl.u32 %s337, 1
    %s339 = sor.u32 %s337, %s338
    %s340 = sand.u32 51, %s339
    %s341 = sshrl.u32 %s340, 2
    %s342 = sor.u32 %s340, %s341
    %s343 = sand.u32 15, %s342
    %v344 = vld [vmem:[%s334] sm:%s343]
    %v345 = vunpack.c.l.bf16 %v344
    %v346 = vunpack.c.h.bf16 %v344
    %s347 = scalar_lea.vmem [#allocation1], 200
    %348 = vst [vmem:[%s347] sm:%s3] %v345
    %s349 = scalar_lea.vmem %s0, 96
    %s350 = sshrl.u32 %s3, 1
    %s351 = sor.u32 %s3, %s350
    %s352 = sand.u32 %s351, 85
    %s353 = sshrl.u32 %s352, 1
    %s354 = sor.u32 %s352, %s353
    %s355 = sand.u32 51, %s354
    %s356 = sshrl.u32 %s355, 2
    %s357 = sor.u32 %s355, %s356
    %s358 = sand.u32 15, %s357
    %v359 = vld [vmem:[%s349] sm:%s358]
    %v360 = vunpack.c.l.bf16 %v359
    %v361 = vunpack.c.h.bf16 %v359
    %s362 = scalar_lea.vmem [#allocation1], 192
    %363 = vst [vmem:[%s362] sm:%s3] %v360
    %s364 = scalar_lea.vmem %s0, 92
    %s365 = sshrl.u32 %s3, 1
    %s366 = sor.u32 %s3, %s365
    %s367 = sand.u32 %s366, 85
    %s368 = sshrl.u32 %s367, 1
    %s369 = sor.u32 %s367, %s368
    %s370 = sand.u32 51, %s369
    %s371 = sshrl.u32 %s370, 2
    %s372 = sor.u32 %s370, %s371
    %s373 = sand.u32 15, %s372
    %v374 = vld [vmem:[%s364] sm:%s373]
    %v375 = vunpack.c.l.bf16 %v374
    %v376 = vunpack.c.h.bf16 %v374
    %s377 = scalar_lea.vmem [#allocation1], 184
    %378 = vst [vmem:[%s377] sm:%s3] %v375
    %s379 = scalar_lea.vmem %s0, 88
    %s380 = sshrl.u32 %s3, 1
    %s381 = sor.u32 %s3, %s380
    %s382 = sand.u32 %s381, 85
    %s383 = sshrl.u32 %s382, 1
    %s384 = sor.u32 %s382, %s383
    %s385 = sand.u32 51, %s384
    %s386 = sshrl.u32 %s385, 2
    %s387 = sor.u32 %s385, %s386
    %s388 = sand.u32 15, %s387
    %v389 = vld [vmem:[%s379] sm:%s388]
    %v390 = vunpack.c.l.bf16 %v389
    %v391 = vunpack.c.h.bf16 %v389
    %s392 = scalar_lea.vmem [#allocation1], 176
    %393 = vst [vmem:[%s392] sm:%s3] %v390
    %s394 = scalar_lea.vmem %s0, 84
    %s395 = sshrl.u32 %s3, 1
    %s396 = sor.u32 %s3, %s395
    %s397 = sand.u32 %s396, 85
    %s398 = sshrl.u32 %s397, 1
    %s399 = sor.u32 %s397, %s398
    %s400 = sand.u32 51, %s399
    %s401 = sshrl.u32 %s400, 2
    %s402 = sor.u32 %s400, %s401
    %s403 = sand.u32 15, %s402
    %v404 = vld [vmem:[%s394] sm:%s403]
    %v405 = vunpack.c.l.bf16 %v404
    %v406 = vunpack.c.h.bf16 %v404
    %s407 = scalar_lea.vmem [#allocation1], 168
    %408 = vst [vmem:[%s407] sm:%s3] %v405
    %s409 = scalar_lea.vmem %s0, 80
    %s410 = sshrl.u32 %s3, 1
    %s411 = sor.u32 %s3, %s410
    %s412 = sand.u32 %s411, 85
    %s413 = sshrl.u32 %s412, 1
    %s414 = sor.u32 %s412, %s413
    %s415 = sand.u32 51, %s414
    %s416 = sshrl.u32 %s415, 2
    %s417 = sor.u32 %s415, %s416
    %s418 = sand.u32 15, %s417
    %v419 = vld [vmem:[%s409] sm:%s418]
    %v420 = vunpack.c.l.bf16 %v419
    %v421 = vunpack.c.h.bf16 %v419
    %s422 = scalar_lea.vmem [#allocation1], 160
    %423 = vst [vmem:[%s422] sm:%s3] %v420
    %s424 = scalar_lea.vmem %s0, 76
    %s425 = sshrl.u32 %s3, 1
    %s426 = sor.u32 %s3, %s425
    %s427 = sand.u32 %s426, 85
    %s428 = sshrl.u32 %s427, 1
    %s429 = sor.u32 %s427, %s428
    %s430 = sand.u32 51, %s429
    %s431 = sshrl.u32 %s430, 2
    %s432 = sor.u32 %s430, %s431
    %s433 = sand.u32 15, %s432
    %v434 = vld [vmem:[%s424] sm:%s433]
    %v435 = vunpack.c.l.bf16 %v434
    %v436 = vunpack.c.h.bf16 %v434
    %s437 = scalar_lea.vmem [#allocation1], 152
    %438 = vst [vmem:[%s437] sm:%s3] %v435
    %s439 = scalar_lea.vmem %s0, 72
    %s440 = sshrl.u32 %s3, 1
    %s441 = sor.u32 %s3, %s440
    %s442 = sand.u32 %s441, 85
    %s443 = sshrl.u32 %s442, 1
    %s444 = sor.u32 %s442, %s443
    %s445 = sand.u32 51, %s444
    %s446 = sshrl.u32 %s445, 2
    %s447 = sor.u32 %s445, %s446
    %s448 = sand.u32 15, %s447
    %v449 = vld [vmem:[%s439] sm:%s448]
    %v450 = vunpack.c.l.bf16 %v449
    %v451 = vunpack.c.h.bf16 %v449
    %s452 = scalar_lea.vmem [#allocation1], 144
    %453 = vst [vmem:[%s452] sm:%s3] %v450
    %s454 = scalar_lea.vmem %s0, 68
    %s455 = sshrl.u32 %s3, 1
    %s456 = sor.u32 %s3, %s455
    %s457 = sand.u32 %s456, 85
    %s458 = sshrl.u32 %s457, 1
    %s459 = sor.u32 %s457, %s458
    %s460 = sand.u32 51, %s459
    %s461 = sshrl.u32 %s460, 2
    %s462 = sor.u32 %s460, %s461
    %s463 = sand.u32 15, %s462
    %v464 = vld [vmem:[%s454] sm:%s463]
    %v465 = vunpack.c.l.bf16 %v464
    %v466 = vunpack.c.h.bf16 %v464
    %s467 = scalar_lea.vmem [#allocation1], 136
    %468 = vst [vmem:[%s467] sm:%s3] %v465
    %s469 = scalar_lea.vmem %s0, 64
    %s470 = sshrl.u32 %s3, 1
    %s471 = sor.u32 %s3, %s470
    %s472 = sand.u32 %s471, 85
    %s473 = sshrl.u32 %s472, 1
    %s474 = sor.u32 %s472, %s473
    %s475 = sand.u32 51, %s474
    %s476 = sshrl.u32 %s475, 2
    %s477 = sor.u32 %s475, %s476
    %s478 = sand.u32 15, %s477
    %v479 = vld [vmem:[%s469] sm:%s478]
    %v480 = vunpack.c.l.bf16 %v479
    %v481 = vunpack.c.h.bf16 %v479
    %s482 = scalar_lea.vmem [#allocation1], 128
    %483 = vst [vmem:[%s482] sm:%s3] %v480
    %s484 = scalar_lea.vmem %s0, 60
    %s485 = sshrl.u32 %s3, 1
    %s486 = sor.u32 %s3, %s485
    %s487 = sand.u32 %s486, 85
    %s488 = sshrl.u32 %s487, 1
    %s489 = sor.u32 %s487, %s488
    %s490 = sand.u32 51, %s489
    %s491 = sshrl.u32 %s490, 2
    %s492 = sor.u32 %s490, %s491
    %s493 = sand.u32 15, %s492
    %v494 = vld [vmem:[%s484] sm:%s493]
    %v495 = vunpack.c.l.bf16 %v494
    %v496 = vunpack.c.h.bf16 %v494
    %s497 = scalar_lea.vmem [#allocation1], 120
    %498 = vst [vmem:[%s497] sm:%s3] %v495
    %s499 = scalar_lea.vmem %s0, 56
    %s500 = sshrl.u32 %s3, 1
    %s501 = sor.u32 %s3, %s500
    %s502 = sand.u32 %s501, 85
    %s503 = sshrl.u32 %s502, 1
    %s504 = sor.u32 %s502, %s503
    %s505 = sand.u32 51, %s504
    %s506 = sshrl.u32 %s505, 2
    %s507 = sor.u32 %s505, %s506
    %s508 = sand.u32 15, %s507
    %v509 = vld [vmem:[%s499] sm:%s508]
    %v510 = vunpack.c.l.bf16 %v509
    %v511 = vunpack.c.h.bf16 %v509
    %s512 = scalar_lea.vmem [#allocation1], 112
    %513 = vst [vmem:[%s512] sm:%s3] %v510
    %s514 = scalar_lea.vmem %s0, 52
    %s515 = sshrl.u32 %s3, 1
    %s516 = sor.u32 %s3, %s515
    %s517 = sand.u32 %s516, 85
    %s518 = sshrl.u32 %s517, 1
    %s519 = sor.u32 %s517, %s518
    %s520 = sand.u32 51, %s519
    %s521 = sshrl.u32 %s520, 2
    %s522 = sor.u32 %s520, %s521
    %s523 = sand.u32 15, %s522
    %v524 = vld [vmem:[%s514] sm:%s523]
    %v525 = vunpack.c.l.bf16 %v524
    %v526 = vunpack.c.h.bf16 %v524
    %s527 = scalar_lea.vmem [#allocation1], 104
    %528 = vst [vmem:[%s527] sm:%s3] %v525
    %s529 = scalar_lea.vmem %s0, 48
    %s530 = sshrl.u32 %s3, 1
    %s531 = sor.u32 %s3, %s530
    %s532 = sand.u32 %s531, 85
    %s533 = sshrl.u32 %s532, 1
    %s534 = sor.u32 %s532, %s533
    %s535 = sand.u32 51, %s534
    %s536 = sshrl.u32 %s535, 2
    %s537 = sor.u32 %s535, %s536
    %s538 = sand.u32 15, %s537
    %v539 = vld [vmem:[%s529] sm:%s538]
    %v540 = vunpack.c.l.bf16 %v539
    %v541 = vunpack.c.h.bf16 %v539
    %s542 = scalar_lea.vmem [#allocation1], 96
    %543 = vst [vmem:[%s542] sm:%s3] %v540
    %s544 = scalar_lea.vmem %s0, 44
    %s545 = sshrl.u32 %s3, 1
    %s546 = sor.u32 %s3, %s545
    %s547 = sand.u32 %s546, 85
    %s548 = sshrl.u32 %s547, 1
    %s549 = sor.u32 %s547, %s548
    %s550 = sand.u32 51, %s549
    %s551 = sshrl.u32 %s550, 2
    %s552 = sor.u32 %s550, %s551
    %s553 = sand.u32 15, %s552
    %v554 = vld [vmem:[%s544] sm:%s553]
    %v555 = vunpack.c.l.bf16 %v554
    %v556 = vunpack.c.h.bf16 %v554
    %s557 = scalar_lea.vmem [#allocation1], 88
    %558 = vst [vmem:[%s557] sm:%s3] %v555
    %s559 = scalar_lea.vmem %s0, 40
    %s560 = sshrl.u32 %s3, 1
    %s561 = sor.u32 %s3, %s560
    %s562 = sand.u32 %s561, 85
    %s563 = sshrl.u32 %s562, 1
    %s564 = sor.u32 %s562, %s563
    %s565 = sand.u32 51, %s564
    %s566 = sshrl.u32 %s565, 2
    %s567 = sor.u32 %s565, %s566
    %s568 = sand.u32 15, %s567
    %v569 = vld [vmem:[%s559] sm:%s568]
    %v570 = vunpack.c.l.bf16 %v569
    %v571 = vunpack.c.h.bf16 %v569
    %s572 = scalar_lea.vmem [#allocation1], 80
    %573 = vst [vmem:[%s572] sm:%s3] %v570
    %s574 = scalar_lea.vmem %s0, 36
    %s575 = sshrl.u32 %s3, 1
    %s576 = sor.u32 %s3, %s575
    %s577 = sand.u32 %s576, 85
    %s578 = sshrl.u32 %s577, 1
    %s579 = sor.u32 %s577, %s578
    %s580 = sand.u32 51, %s579
    %s581 = sshrl.u32 %s580, 2
    %s582 = sor.u32 %s580, %s581
    %s583 = sand.u32 15, %s582
    %v584 = vld [vmem:[%s574] sm:%s583]
    %v585 = vunpack.c.l.bf16 %v584
    %v586 = vunpack.c.h.bf16 %v584
    %s587 = scalar_lea.vmem [#allocation1], 72
    %588 = vst [vmem:[%s587] sm:%s3] %v585
    %s589 = scalar_lea.vmem %s0, 32
    %s590 = sshrl.u32 %s3, 1
    %s591 = sor.u32 %s3, %s590
    %s592 = sand.u32 %s591, 85
    %s593 = sshrl.u32 %s592, 1
    %s594 = sor.u32 %s592, %s593
    %s595 = sand.u32 51, %s594
    %s596 = sshrl.u32 %s595, 2
    %s597 = sor.u32 %s595, %s596
    %s598 = sand.u32 15, %s597
    %v599 = vld [vmem:[%s589] sm:%s598]
    %v600 = vunpack.c.l.bf16 %v599
    %v601 = vunpack.c.h.bf16 %v599
    %s602 = scalar_lea.vmem [#allocation1], 64
    %603 = vst [vmem:[%s602] sm:%s3] %v600
    %s604 = scalar_lea.vmem %s0, 28
    %s605 = sshrl.u32 %s3, 1
    %s606 = sor.u32 %s3, %s605
    %s607 = sand.u32 %s606, 85
    %s608 = sshrl.u32 %s607, 1
    %s609 = sor.u32 %s607, %s608
    %s610 = sand.u32 51, %s609
    %s611 = sshrl.u32 %s610, 2
    %s612 = sor.u32 %s610, %s611
    %s613 = sand.u32 15, %s612
    %v614 = vld [vmem:[%s604] sm:%s613]
    %v615 = vunpack.c.l.bf16 %v614
    %v616 = vunpack.c.h.bf16 %v614
    %s617 = scalar_lea.vmem [#allocation1], 56
    %618 = vst [vmem:[%s617] sm:%s3] %v615
    %s619 = scalar_lea.vmem %s0, 24
    %s620 = sshrl.u32 %s3, 1
    %s621 = sor.u32 %s3, %s620
    %s622 = sand.u32 %s621, 85
    %s623 = sshrl.u32 %s622, 1
    %s624 = sor.u32 %s622, %s623
    %s625 = sand.u32 51, %s624
    %s626 = sshrl.u32 %s625, 2
    %s627 = sor.u32 %s625, %s626
    %s628 = sand.u32 15, %s627
    %v629 = vld [vmem:[%s619] sm:%s628]
    %v630 = vunpack.c.l.bf16 %v629
    %v631 = vunpack.c.h.bf16 %v629
    %s632 = scalar_lea.vmem [#allocation1], 48
    %633 = vst [vmem:[%s632] sm:%s3] %v630
    %s634 = scalar_lea.vmem %s0, 20
    %s635 = sshrl.u32 %s3, 1
    %s636 = sor.u32 %s3, %s635
    %s637 = sand.u32 %s636, 85
    %s638 = sshrl.u32 %s637, 1
    %s639 = sor.u32 %s637, %s638
    %s640 = sand.u32 51, %s639
    %s641 = sshrl.u32 %s640, 2
    %s642 = sor.u32 %s640, %s641
    %s643 = sand.u32 15, %s642
    %v644 = vld [vmem:[%s634] sm:%s643]
    %v645 = vunpack.c.l.bf16 %v644
    %v646 = vunpack.c.h.bf16 %v644
    %s647 = scalar_lea.vmem [#allocation1], 40
    %648 = vst [vmem:[%s647] sm:%s3] %v645
    %s649 = scalar_lea.vmem %s0, 16
    %s650 = sshrl.u32 %s3, 1
    %s651 = sor.u32 %s3, %s650
    %s652 = sand.u32 %s651, 85
    %s653 = sshrl.u32 %s652, 1
    %s654 = sor.u32 %s652, %s653
    %s655 = sand.u32 51, %s654
    %s656 = sshrl.u32 %s655, 2
    %s657 = sor.u32 %s655, %s656
    %s658 = sand.u32 15, %s657
    %v659 = vld [vmem:[%s649] sm:%s658]
    %v660 = vunpack.c.l.bf16 %v659
    %v661 = vunpack.c.h.bf16 %v659
    %s662 = scalar_lea.vmem [#allocation1], 32
    %663 = vst [vmem:[%s662] sm:%s3] %v660
    %s664 = scalar_lea.vmem %s0, 12
    %s665 = sshrl.u32 %s3, 1
    %s666 = sor.u32 %s3, %s665
    %s667 = sand.u32 %s666, 85
    %s668 = sshrl.u32 %s667, 1
    %s669 = sor.u32 %s667, %s668
    %s670 = sand.u32 51, %s669
    %s671 = sshrl.u32 %s670, 2
    %s672 = sor.u32 %s670, %s671
    %s673 = sand.u32 15, %s672
    %v674 = vld [vmem:[%s664] sm:%s673]
    %v675 = vunpack.c.l.bf16 %v674
    %v676 = vunpack.c.h.bf16 %v674
    %s677 = scalar_lea.vmem [#allocation1], 24
    %678 = vst [vmem:[%s677] sm:%s3] %v675
    %s679 = scalar_lea.vmem %s0, 8
    %s680 = sshrl.u32 %s3, 1
    %s681 = sor.u32 %s3, %s680
    %s682 = sand.u32 %s681, 85
    %s683 = sshrl.u32 %s682, 1
    %s684 = sor.u32 %s682, %s683
    %s685 = sand.u32 51, %s684
    %s686 = sshrl.u32 %s685, 2
    %s687 = sor.u32 %s685, %s686
    %s688 = sand.u32 15, %s687
    %v689 = vld [vmem:[%s679] sm:%s688]
    %v690 = vunpack.c.l.bf16 %v689
    %v691 = vunpack.c.h.bf16 %v689
    %s692 = scalar_lea.vmem [#allocation1], 16
    %693 = vst [vmem:[%s692] sm:%s3] %v690
    %s694 = scalar_lea.vmem %s0, 4
    %s695 = sshrl.u32 %s3, 1
    %s696 = sor.u32 %s3, %s695
    %s697 = sand.u32 %s696, 85
    %s698 = sshrl.u32 %s697, 1
    %s699 = sor.u32 %s697, %s698
    %s700 = sand.u32 51, %s699
    %s701 = sshrl.u32 %s700, 2
    %s702 = sor.u32 %s700, %s701
    %s703 = sand.u32 15, %s702
    %v704 = vld [vmem:[%s694] sm:%s703]
    %v705 = vunpack.c.l.bf16 %v704
    %v706 = vunpack.c.h.bf16 %v704
    %s707 = scalar_lea.vmem [#allocation1], 8
    %708 = vst [vmem:[%s707] sm:%s3] %v705
    %s709 = sshrl.u32 %s3, 1
    %s710 = sor.u32 %s3, %s709
    %s711 = sand.u32 %s710, 85
    %s712 = sshrl.u32 %s711, 1
    %s713 = sor.u32 %s711, %s712
    %s714 = sand.u32 51, %s713
    %s715 = sshrl.u32 %s714, 2
    %s716 = sor.u32 %s714, %s715
    %s717 = sand.u32 15, %s716
    %v718 = vld [vmem:[%s0] sm:%s717]
    %v719 = vunpack.c.l.bf16 %v718
    %v720 = vunpack.c.h.bf16 %v718
    %721 = vst [vmem:[#allocation1] sm:%s3] %v719
    %v722 = vld [vmem:[#allocation1] ss:$8 sm:$0xf]
    %v723 = vld [vmem:[#allocation1] ss:$8 sm:$0xf0]
    %vm724 = vcmask 1047556
    %v725 = vsel %vm724, %v723, %v722
    %vm726 = vcmask 130048
    %727 = vst.msk [vmem:[#allocation0] sm:$0xff] %vm726, %v725
    %s728 = scalar_lea.vmem [#allocation1], 64
    %v729 = vld [vmem:[%s728] ss:$8 sm:$0xf]
    %s730 = scalar_lea.vmem [#allocation1], 64
    %v731 = vld [vmem:[%s730] ss:$8 sm:$0xf0]
    %vm732 = vcmask 1047556
    %v733 = vsel %vm732, %v731, %v729
    %vm734 = vcmask 130048
    %s735 = scalar_lea.vmem [#allocation0], 8
    %736 = vst.msk [vmem:[%s735] sm:$0xff] %vm734, %v733
    %s737 = scalar_lea.vmem [#allocation1], 128
    %v738 = vld [vmem:[%s737] ss:$8 sm:$0xf]
    %s739 = scalar_lea.vmem [#allocation1], 128
    %v740 = vld [vmem:[%s739] ss:$8 sm:$0xf0]
    %vm741 = vcmask 1047556
    %v742 = vsel %vm741, %v740, %v738
    %vm743 = vcmask 130048
    %s744 = scalar_lea.vmem [#allocation0], 16
    %745 = vst.msk [vmem:[%s744] sm:$0xff] %vm743, %v742
    %s746 = scalar_lea.vmem [#allocation1], 192
    %v747 = vld [vmem:[%s746] ss:$8 sm:$0xf]
    %s748 = scalar_lea.vmem [#allocation1], 192
    %v749 = vld [vmem:[%s748] ss:$8 sm:$0xf0]
    %vm750 = vcmask 1047556
    %v751 = vsel %vm750, %v749, %v747
    %vm752 = vcmask 130048
    %s753 = scalar_lea.vmem [#allocation0], 24
    %754 = vst.msk [vmem:[%s753] sm:$0xff] %vm752, %v751
    %s755 = scalar_lea.vmem [#allocation1], 256
    %v756 = vld [vmem:[%s755] ss:$8 sm:$0xf]
    %s757 = scalar_lea.vmem [#allocation1], 256
    %v758 = vld [vmem:[%s757] ss:$8 sm:$0xf0]
    %vm759 = vcmask 1047556
    %v760 = vsel %vm759, %v758, %v756
    %vm761 = vcmask 130048
    %s762 = scalar_lea.vmem [#allocation0], 32
    %763 = vst.msk [vmem:[%s762] sm:$0xff] %vm761, %v760
    %s764 = scalar_lea.vmem [#allocation1], 320
    %v765 = vld [vmem:[%s764] ss:$8 sm:$0xf]
    %s766 = scalar_lea.vmem [#allocation1], 320
    %v767 = vld [vmem:[%s766] ss:$8 sm:$0xf0]
    %vm768 = vcmask 1047556
    %v769 = vsel %vm768, %v767, %v765
    %vm770 = vcmask 130048
    %s771 = scalar_lea.vmem [#allocation0], 40
    %772 = vst.msk [vmem:[%s771] sm:$0xff] %vm770, %v769
    %s773 = scalar_lea.vmem [#allocation1], 7
    %v774 = vld [vmem:[%s773] ss:$8 sm:$0xf]
    %s775 = scalar_lea.vmem [#allocation1], 7
    %v776 = vld [vmem:[%s775] ss:$8 sm:$0xf0]
    %vm777 = vcmask 1047556
    %v778 = vsel %vm777, %v776, %v774
    %779 = vrot.lane.b32.xlu0 %v778, 112
    %v780 = vpop.permute.xlu0 %779
    %vm781 = vcmask 1048448
    %782 = vst.msk [vmem:[#allocation0] sm:$0xff] %vm781, %v780
    %s783 = scalar_lea.vmem [#allocation1], 263
    %v784 = vld [vmem:[%s783] ss:$8 sm:$0xf]
    %s785 = scalar_lea.vmem [#allocation1], 263
    %v786 = vld [vmem:[%s785] ss:$8 sm:$0xf0]
    %vm787 = vcmask 1047556
    %v788 = vsel %vm787, %v786, %v784
    %789 = vrot.lane.b32.xlu0 %v788, 112
    %v790 = vpop.permute.xlu0 %789
    %vm791 = vcmask 1048448
    %s792 = scalar_lea.vmem [#allocation0], 32
    %793 = vst.msk [vmem:[%s792] sm:$0xff] %vm791, %v790
    %s794 = scalar_lea.vmem [#allocation1], 71
    %v795 = vld [vmem:[%s794] ss:$8 sm:$0xf]
    %s796 = scalar_lea.vmem [#allocation1], 71
    %v797 = vld [vmem:[%s796] ss:$8 sm:$0xf0]
    %vm798 = vcmask 1047556
    %v799 = vsel %vm798, %v797, %v795
    %800 = vrot.lane.b32.xlu0 %v799, 112
    %v801 = vpop.permute.xlu0 %800
    %vm802 = vcmask 1048448
    %s803 = scalar_lea.vmem [#allocation0], 8
    %804 = vst.msk [vmem:[%s803] sm:$0xff] %vm802, %v801
    %s805 = scalar_lea.vmem [#allocation1], 327
    %v806 = vld [vmem:[%s805] ss:$8 sm:$0xf]
    %s807 = scalar_lea.vmem [#allocation1], 327
    %v808 = vld [vmem:[%s807] ss:$8 sm:$0xf0]
    %vm809 = vcmask 1047556
    %v810 = vsel %vm809, %v808, %v806
    %811 = vrot.lane.b32.xlu0 %v810, 112
    %v812 = vpop.permute.xlu0 %811
    %vm813 = vcmask 1048448
    %s814 = scalar_lea.vmem [#allocation0], 40
    %815 = vst.msk [vmem:[%s814] sm:$0xff] %vm813, %v812
    %s816 = scalar_lea.vmem [#allocation1], 135
    %v817 = vld [vmem:[%s816] ss:$8 sm:$0xf]
    %s818 = scalar_lea.vmem [#allocation1], 135
    %v819 = vld [vmem:[%s818] ss:$8 sm:$0xf0]
    %vm820 = vcmask 1047556
    %v821 = vsel %vm820, %v819, %v817
    %822 = vrot.lane.b32.xlu0 %v821, 112
    %v823 = vpop.permute.xlu0 %822
    %vm824 = vcmask 1048448
    %s825 = scalar_lea.vmem [#allocation0], 16
    %826 = vst.msk [vmem:[%s825] sm:$0xff] %vm824, %v823
    %s827 = scalar_lea.vmem [#allocation1], 199
    %v828 = vld [vmem:[%s827] ss:$8 sm:$0xf]
    %s829 = scalar_lea.vmem [#allocation1], 199
    %v830 = vld [vmem:[%s829] ss:$8 sm:$0xf0]
    %vm831 = vcmask 1047556
    %v832 = vsel %vm831, %v830, %v828
    %833 = vrot.lane.b32.xlu0 %v832, 112
    %v834 = vpop.permute.xlu0 %833
    %vm835 = vcmask 1048448
    %s836 = scalar_lea.vmem [#allocation0], 24
    %837 = vst.msk [vmem:[%s836] sm:$0xff] %vm835, %v834
    %s838 = scalar_lea.vmem [#allocation1], 6
    %v839 = vld [vmem:[%s838] ss:$8 sm:$0xf]
    %s840 = scalar_lea.vmem [#allocation1], 6
    %v841 = vld [vmem:[%s840] ss:$8 sm:$0xf0]
    %vm842 = vcmask 1047556
    %v843 = vsel %vm842, %v841, %v839
    %844 = vrot.lane.b32.xlu0 %v843, 96
    %v845 = vpop.permute.xlu0 %844
    %vm846 = vcmask 917248
    %847 = vst.msk [vmem:[#allocation0] sm:$0xff] %vm846, %v845
    %s848 = scalar_lea.vmem [#allocation1], 262
    %v849 = vld [vmem:[%s848] ss:$8 sm:$0xf]
    %s850 = scalar_lea.vmem [#allocation1], 262
    %v851 = vld [vmem:[%s850] ss:$8 sm:$0xf0]
    %vm852 = vcmask 1047556
    %v853 = vsel %vm852, %v851, %v849
    %854 = vrot.lane.b32.xlu0 %v853, 96
    %v855 = vpop.permute.xlu0 %854
    %vm856 = vcmask 917248
    %s857 = scalar_lea.vmem [#allocation0], 32
    %858 = vst.msk [vmem:[%s857] sm:$0xff] %vm856, %v855
    %s859 = scalar_lea.vmem [#allocation1], 70
    %v860 = vld [vmem:[%s859] ss:$8 sm:$0xf]
    %s861 = scalar_lea.vmem [#allocation1], 70
    %v862 = vld [vmem:[%s861] ss:$8 sm:$0xf0]
    %vm863 = vcmask 1047556
    %v864 = vsel %vm863, %v862, %v860
    %865 = vrot.lane.b32.xlu0 %v864, 96
    %v866 = vpop.permute.xlu0 %865
    %vm867 = vcmask 917248
    %s868 = scalar_lea.vmem [#allocation0], 8
    %869 = vst.msk [vmem:[%s868] sm:$0xff] %vm867, %v866
    %s870 = scalar_lea.vmem [#allocation1], 326
    %v871 = vld [vmem:[%s870] ss:$8 sm:$0xf]
    %s872 = scalar_lea.vmem [#allocation1], 326
    %v873 = vld [vmem:[%s872] ss:$8 sm:$0xf0]
    %vm874 = vcmask 1047556
    %v875 = vsel %vm874, %v873, %v871
    %876 = vrot.lane.b32.xlu0 %v875, 96
    %v877 = vpop.permute.xlu0 %876
    %vm878 = vcmask 917248
    %s879 = scalar_lea.vmem [#allocation0], 40
    %880 = vst.msk [vmem:[%s879] sm:$0xff] %vm878, %v877
    %s881 = scalar_lea.vmem [#allocation1], 134
    %v882 = vld [vmem:[%s881] ss:$8 sm:$0xf]
    %s883 = scalar_lea.vmem [#allocation1], 134
    %v884 = vld [vmem:[%s883] ss:$8 sm:$0xf0]
    %vm885 = vcmask 1047556
    %v886 = vsel %vm885, %v884, %v882
    %887 = vrot.lane.b32.xlu0 %v886, 96
    %v888 = vpop.permute.xlu0 %887
    %vm889 = vcmask 917248
    %s890 = scalar_lea.vmem [#allocation0], 16
    %891 = vst.msk [vmem:[%s890] sm:$0xff] %vm889, %v888
    %s892 = scalar_lea.vmem [#allocation1], 198
    %v893 = vld [vmem:[%s892] ss:$8 sm:$0xf]
    %s894 = scalar_lea.vmem [#allocation1], 198
    %v895 = vld [vmem:[%s894] ss:$8 sm:$0xf0]
    %vm896 = vcmask 1047556
    %v897 = vsel %vm896, %v895, %v893
    %898 = vrot.lane.b32.xlu0 %v897, 96
    %v899 = vpop.permute.xlu0 %898
    %vm900 = vcmask 917248
    %s901 = scalar_lea.vmem [#allocation0], 24
    %902 = vst.msk [vmem:[%s901] sm:$0xff] %vm900, %v899
    %s903 = scalar_lea.vmem [#allocation1], 5
    %v904 = vld [vmem:[%s903] ss:$8 sm:$0xf]
    %s905 = scalar_lea.vmem [#allocation1], 5
    %v906 = vld [vmem:[%s905] ss:$8 sm:$0xf0]
    %vm907 = vcmask 1047556
    %v908 = vsel %vm907, %v906, %v904
    %909 = vrot.lane.b32.xlu0 %v908, 80
    %v910 = vpop.permute.xlu0 %909
    %vm911 = vcmask 786048
    %912 = vst.msk [vmem:[#allocation0] sm:$0xff] %vm911, %v910
    %s913 = scalar_lea.vmem [#allocation1], 261
    %v914 = vld [vmem:[%s913] ss:$8 sm:$0xf]
    %s915 = scalar_lea.vmem [#allocation1], 261
    %v916 = vld [vmem:[%s915] ss:$8 sm:$0xf0]
    %vm917 = vcmask 1047556
    %v918 = vsel %vm917, %v916, %v914
    %919 = vrot.lane.b32.xlu0 %v918, 80
    %v920 = vpop.permute.xlu0 %919
    %vm921 = vcmask 786048
    %s922 = scalar_lea.vmem [#allocation0], 32
    %923 = vst.msk [vmem:[%s922] sm:$0xff] %vm921, %v920
    %s924 = scalar_lea.vmem [#allocation1], 69
    %v925 = vld [vmem:[%s924] ss:$8 sm:$0xf]
    %s926 = scalar_lea.vmem [#allocation1], 69
    %v927 = vld [vmem:[%s926] ss:$8 sm:$0xf0]
    %vm928 = vcmask 1047556
    %v929 = vsel %vm928, %v927, %v925
    %930 = vrot.lane.b32.xlu0 %v929, 80
    %v931 = vpop.permute.xlu0 %930
    %vm932 = vcmask 786048
    %s933 = scalar_lea.vmem [#allocation0], 8
    %934 = vst.msk [vmem:[%s933] sm:$0xff] %vm932, %v931
    %s935 = scalar_lea.vmem [#allocation1], 325
    %v936 = vld [vmem:[%s935] ss:$8 sm:$0xf]
    %s937 = scalar_lea.vmem [#allocation1], 325
    %v938 = vld [vmem:[%s937] ss:$8 sm:$0xf0]
    %vm939 = vcmask 1047556
    %v940 = vsel %vm939, %v938, %v936
    %941 = vrot.lane.b32.xlu0 %v940, 80
    %v942 = vpop.permute.xlu0 %941
    %vm943 = vcmask 786048
    %s944 = scalar_lea.vmem [#allocation0], 40
    %945 = vst.msk [vmem:[%s944] sm:$0xff] %vm943, %v942
    %s946 = scalar_lea.vmem [#allocation1], 133
    %v947 = vld [vmem:[%s946] ss:$8 sm:$0xf]
    %s948 = scalar_lea.vmem [#allocation1], 133
    %v949 = vld [vmem:[%s948] ss:$8 sm:$0xf0]
    %vm950 = vcmask 1047556
    %v951 = vsel %vm950, %v949, %v947
    %952 = vrot.lane.b32.xlu0 %v951, 80
    %v953 = vpop.permute.xlu0 %952
    %vm954 = vcmask 786048
    %s955 = scalar_lea.vmem [#allocation0], 16
    %956 = vst.msk [vmem:[%s955] sm:$0xff] %vm954, %v953
    %s957 = scalar_lea.vmem [#allocation1], 197
    %v958 = vld [vmem:[%s957] ss:$8 sm:$0xf]
    %s959 = scalar_lea.vmem [#allocation1], 197
    %v960 = vld [vmem:[%s959] ss:$8 sm:$0xf0]
    %vm961 = vcmask 1047556
    %v962 = vsel %vm961, %v960, %v958
    %963 = vrot.lane.b32.xlu0 %v962, 80
    %v964 = vpop.permute.xlu0 %963
    %vm965 = vcmask 786048
    %s966 = scalar_lea.vmem [#allocation0], 24
    %967 = vst.msk [vmem:[%s966] sm:$0xff] %vm965, %v964
    %s968 = scalar_lea.vmem [#allocation1], 4
    %v969 = vld [vmem:[%s968] ss:$8 sm:$0xf]
    %s970 = scalar_lea.vmem [#allocation1], 4
    %v971 = vld [vmem:[%s970] ss:$8 sm:$0xf0]
    %vm972 = vcmask 1047556
    %v973 = vsel %vm972, %v971, %v969
    %974 = vrot.lane.b32.xlu0 %v973, 64
    %v975 = vpop.permute.xlu0 %974
    %vm976 = vcmask 654848
    %977 = vst.msk [vmem:[#allocation0] sm:$0xff] %vm976, %v975
    %s978 = scalar_lea.vmem [#allocation1], 260
    %v979 = vld [vmem:[%s978] ss:$8 sm:$0xf]
    %s980 = scalar_lea.vmem [#allocation1], 260
    %v981 = vld [vmem:[%s980] ss:$8 sm:$0xf0]
    %vm982 = vcmask 1047556
    %v983 = vsel %vm982, %v981, %v979
    %984 = vrot.lane.b32.xlu0 %v983, 64
    %v985 = vpop.permute.xlu0 %984
    %vm986 = vcmask 654848
    %s987 = scalar_lea.vmem [#allocation0], 32
    %988 = vst.msk [vmem:[%s987] sm:$0xff] %vm986, %v985
    %s989 = scalar_lea.vmem [#allocation1], 68
    %v990 = vld [vmem:[%s989] ss:$8 sm:$0xf]
    %s991 = scalar_lea.vmem [#allocation1], 68
    %v992 = vld [vmem:[%s991] ss:$8 sm:$0xf0]
    %vm993 = vcmask 1047556
    %v994 = vsel %vm993, %v992, %v990
    %995 = vrot.lane.b32.xlu0 %v994, 64
    %v996 = vpop.permute.xlu0 %995
    %vm997 = vcmask 654848
    %s998 = scalar_lea.vmem [#allocation0], 8
    %999 = vst.msk [vmem:[%s998] sm:$0xff] %vm997, %v996
    %s1000 = scalar_lea.vmem [#allocation1], 324
    %v1001 = vld [vmem:[%s1000] ss:$8 sm:$0xf]
    %s1002 = scalar_lea.vmem [#allocation1], 324
    %v1003 = vld [vmem:[%s1002] ss:$8 sm:$0xf0]
    %vm1004 = vcmask 1047556
    %v1005 = vsel %vm1004, %v1003, %v1001
    %1006 = vrot.lane.b32.xlu0 %v1005, 64
    %v1007 = vpop.permute.xlu0 %1006
    %vm1008 = vcmask 654848
    %s1009 = scalar_lea.vmem [#allocation0], 40
    %1010 = vst.msk [vmem:[%s1009] sm:$0xff] %vm1008, %v1007
    %s1011 = scalar_lea.vmem [#allocation1], 132
    %v1012 = vld [vmem:[%s1011] ss:$8 sm:$0xf]
    %s1013 = scalar_lea.vmem [#allocation1], 132
    %v1014 = vld [vmem:[%s1013] ss:$8 sm:$0xf0]
    %vm1015 = vcmask 1047556
    %v1016 = vsel %vm1015, %v1014, %v1012
    %1017 = vrot.lane.b32.xlu0 %v1016, 64
    %v1018 = vpop.permute.xlu0 %1017
    %vm1019 = vcmask 654848
    %s1020 = scalar_lea.vmem [#allocation0], 16
    %1021 = vst.msk [vmem:[%s1020] sm:$0xff] %vm1019, %v1018
    %s1022 = scalar_lea.vmem [#allocation1], 196
    %v1023 = vld [vmem:[%s1022] ss:$8 sm:$0xf]
    %s1024 = scalar_lea.vmem [#allocation1], 196
    %v1025 = vld [vmem:[%s1024] ss:$8 sm:$0xf0]
    %vm1026 = vcmask 1047556
    %v1027 = vsel %vm1026, %v1025, %v1023
    %1028 = vrot.lane.b32.xlu0 %v1027, 64
    %v1029 = vpop.permute.xlu0 %1028
    %vm1030 = vcmask 654848
    %s1031 = scalar_lea.vmem [#allocation0], 24
    %1032 = vst.msk [vmem:[%s1031] sm:$0xff] %vm1030, %v1029
    %s1033 = scalar_lea.vmem [#allocation1], 3
    %v1034 = vld [vmem:[%s1033] ss:$8 sm:$0xf]
    %s1035 = scalar_lea.vmem [#allocation1], 3
    %v1036 = vld [vmem:[%s1035] ss:$8 sm:$0xf0]
    %vm1037 = vcmask 1047556
    %v1038 = vsel %vm1037, %v1036, %v1034
    %1039 = vrot.lane.b32.xlu0 %v1038, 48
    %v1040 = vpop.permute.xlu0 %1039
    %vm1041 = vcmask 523648
    %1042 = vst.msk [vmem:[#allocation0] sm:$0xff] %vm1041, %v1040
    %s1043 = scalar_lea.vmem [#allocation1], 259
    %v1044 = vld [vmem:[%s1043] ss:$8 sm:$0xf]
    %s1045 = scalar_lea.vmem [#allocation1], 259
    %v1046 = vld [vmem:[%s1045] ss:$8 sm:$0xf0]
    %vm1047 = vcmask 1047556
    %v1048 = vsel %vm1047, %v1046, %v1044
    %1049 = vrot.lane.b32.xlu0 %v1048, 48
    %v1050 = vpop.permute.xlu0 %1049
    %vm1051 = vcmask 523648
    %s1052 = scalar_lea.vmem [#allocation0], 32
    %1053 = vst.msk [vmem:[%s1052] sm:$0xff] %vm1051, %v1050
    %s1054 = scalar_lea.vmem [#allocation1], 67
    %v1055 = vld [vmem:[%s1054] ss:$8 sm:$0xf]
    %s1056 = scalar_lea.vmem [#allocation1], 67
    %v1057 = vld [vmem:[%s1056] ss:$8 sm:$0xf0]
    %vm1058 = vcmask 1047556
    %v1059 = vsel %vm1058, %v1057, %v1055
    %1060 = vrot.lane.b32.xlu0 %v1059, 48
    %v1061 = vpop.permute.xlu0 %1060
    %vm1062 = vcmask 523648
    %s1063 = scalar_lea.vmem [#allocation0], 8
    %1064 = vst.msk [vmem:[%s1063] sm:$0xff] %vm1062, %v1061
    %s1065 = scalar_lea.vmem [#allocation1], 323
    %v1066 = vld [vmem:[%s1065] ss:$8 sm:$0xf]
    %s1067 = scalar_lea.vmem [#allocation1], 323
    %v1068 = vld [vmem:[%s1067] ss:$8 sm:$0xf0]
    %vm1069 = vcmask 1047556
    %v1070 = vsel %vm1069, %v1068, %v1066
    %1071 = vrot.lane.b32.xlu0 %v1070, 48
    %v1072 = vpop.permute.xlu0 %1071
    %vm1073 = vcmask 523648
    %s1074 = scalar_lea.vmem [#allocation0], 40
    %1075 = vst.msk [vmem:[%s1074] sm:$0xff] %vm1073, %v1072
    %s1076 = scalar_lea.vmem [#allocation1], 131
    %v1077 = vld [vmem:[%s1076] ss:$8 sm:$0xf]
    %s1078 = scalar_lea.vmem [#allocation1], 131
    %v1079 = vld [vmem:[%s1078] ss:$8 sm:$0xf0]
    %vm1080 = vcmask 1047556
    %v1081 = vsel %vm1080, %v1079, %v1077
    %1082 = vrot.lane.b32.xlu0 %v1081, 48
    %v1083 = vpop.permute.xlu0 %1082
    %vm1084 = vcmask 523648
    %s1085 = scalar_lea.vmem [#allocation0], 16
    %1086 = vst.msk [vmem:[%s1085] sm:$0xff] %vm1084, %v1083
    %s1087 = scalar_lea.vmem [#allocation1], 195
    %v1088 = vld [vmem:[%s1087] ss:$8 sm:$0xf]
    %s1089 = scalar_lea.vmem [#allocation1], 195
    %v1090 = vld [vmem:[%s1089] ss:$8 sm:$0xf0]
    %vm1091 = vcmask 1047556
    %v1092 = vsel %vm1091, %v1090, %v1088
    %1093 = vrot.lane.b32.xlu0 %v1092, 48
    %v1094 = vpop.permute.xlu0 %1093
    %vm1095 = vcmask 523648
    %s1096 = scalar_lea.vmem [#allocation0], 24
    %1097 = vst.msk [vmem:[%s1096] sm:$0xff] %vm1095, %v1094
    %s1098 = scalar_lea.vmem [#allocation1], 2
    %v1099 = vld [vmem:[%s1098] ss:$8 sm:$0xf]
    %s1100 = scalar_lea.vmem [#allocation1], 2
    %v1101 = vld [vmem:[%s1100] ss:$8 sm:$0xf0]
    %vm1102 = vcmask 1047556
    %v1103 = vsel %vm1102, %v1101, %v1099
    %1104 = vrot.lane.b32.xlu0 %v1103, 32
    %v1105 = vpop.permute.xlu0 %1104
    %vm1106 = vcmask 392448
    %1107 = vst.msk [vmem:[#allocation0] sm:$0xff] %vm1106, %v1105
    %s1108 = scalar_lea.vmem [#allocation1], 258
    %v1109 = vld [vmem:[%s1108] ss:$8 sm:$0xf]
    %s1110 = scalar_lea.vmem [#allocation1], 258
    %v1111 = vld [vmem:[%s1110] ss:$8 sm:$0xf0]
    %vm1112 = vcmask 1047556
    %v1113 = vsel %vm1112, %v1111, %v1109
    %1114 = vrot.lane.b32.xlu0 %v1113, 32
    %v1115 = vpop.permute.xlu0 %1114
    %vm1116 = vcmask 392448
    %s1117 = scalar_lea.vmem [#allocation0], 32
    %1118 = vst.msk [vmem:[%s1117] sm:$0xff] %vm1116, %v1115
    %s1119 = scalar_lea.vmem [#allocation1], 66
    %v1120 = vld [vmem:[%s1119] ss:$8 sm:$0xf]
    %s1121 = scalar_lea.vmem [#allocation1], 66
    %v1122 = vld [vmem:[%s1121] ss:$8 sm:$0xf0]
    %vm1123 = vcmask 1047556
    %v1124 = vsel %vm1123, %v1122, %v1120
    %1125 = vrot.lane.b32.xlu0 %v1124, 32
    %v1126 = vpop.permute.xlu0 %1125
    %vm1127 = vcmask 392448
    %s1128 = scalar_lea.vmem [#allocation0], 8
    %1129 = vst.msk [vmem:[%s1128] sm:$0xff] %vm1127, %v1126
    %s1130 = scalar_lea.vmem [#allocation1], 322
    %v1131 = vld [vmem:[%s1130] ss:$8 sm:$0xf]
    %s1132 = scalar_lea.vmem [#allocation1], 322
    %v1133 = vld [vmem:[%s1132] ss:$8 sm:$0xf0]
    %vm1134 = vcmask 1047556
    %v1135 = vsel %vm1134, %v1133, %v1131
    %1136 = vrot.lane.b32.xlu0 %v1135, 32
    %v1137 = vpop.permute.xlu0 %1136
    %vm1138 = vcmask 392448
    %s1139 = scalar_lea.vmem [#allocation0], 40
    %1140 = vst.msk [vmem:[%s1139] sm:$0xff] %vm1138, %v1137
    %s1141 = scalar_lea.vmem [#allocation1], 130
    %v1142 = vld [vmem:[%s1141] ss:$8 sm:$0xf]
    %s1143 = scalar_lea.vmem [#allocation1], 130
    %v1144 = vld [vmem:[%s1143] ss:$8 sm:$0xf0]
    %vm1145 = vcmask 1047556
    %v1146 = vsel %vm1145, %v1144, %v1142
    %1147 = vrot.lane.b32.xlu0 %v1146, 32
    %v1148 = vpop.permute.xlu0 %1147
    %vm1149 = vcmask 392448
    %s1150 = scalar_lea.vmem [#allocation0], 16
    %1151 = vst.msk [vmem:[%s1150] sm:$0xff] %vm1149, %v1148
    %s1152 = scalar_lea.vmem [#allocation1], 194
    %v1153 = vld [vmem:[%s1152] ss:$8 sm:$0xf]
    %s1154 = scalar_lea.vmem [#allocation1], 194
    %v1155 = vld [vmem:[%s1154] ss:$8 sm:$0xf0]
    %vm1156 = vcmask 1047556
    %v1157 = vsel %vm1156, %v1155, %v1153
    %1158 = vrot.lane.b32.xlu0 %v1157, 32
    %v1159 = vpop.permute.xlu0 %1158
    %vm1160 = vcmask 392448
    %s1161 = scalar_lea.vmem [#allocation0], 24
    %1162 = vst.msk [vmem:[%s1161] sm:$0xff] %vm1160, %v1159
    %s1163 = scalar_lea.vmem [#allocation1], 1
    %v1164 = vld [vmem:[%s1163] ss:$8 sm:$0xf]
    %s1165 = scalar_lea.vmem [#allocation1], 1
    %v1166 = vld [vmem:[%s1165] ss:$8 sm:$0xf0]
    %vm1167 = vcmask 1047556
    %v1168 = vsel %vm1167, %v1166, %v1164
    %1169 = vrot.lane.b32.xlu0 %v1168, 16
    %v1170 = vpop.permute.xlu0 %1169
    %vm1171 = vcmask 261248
    %1172 = vst.msk [vmem:[#allocation0] sm:$0xff] %vm1171, %v1170
    %s1173 = scalar_lea.vmem [#allocation1], 257
    %v1174 = vld [vmem:[%s1173] ss:$8 sm:$0xf]
    %s1175 = scalar_lea.vmem [#allocation1], 257
    %v1176 = vld [vmem:[%s1175] ss:$8 sm:$0xf0]
    %vm1177 = vcmask 1047556
    %v1178 = vsel %vm1177, %v1176, %v1174
    %1179 = vrot.lane.b32.xlu0 %v1178, 16
    %v1180 = vpop.permute.xlu0 %1179
    %vm1181 = vcmask 261248
    %s1182 = scalar_lea.vmem [#allocation0], 32
    %1183 = vst.msk [vmem:[%s1182] sm:$0xff] %vm1181, %v1180
    %s1184 = scalar_lea.vmem [#allocation1], 65
    %v1185 = vld [vmem:[%s1184] ss:$8 sm:$0xf]
    %s1186 = scalar_lea.vmem [#allocation1], 65
    %v1187 = vld [vmem:[%s1186] ss:$8 sm:$0xf0]
    %vm1188 = vcmask 1047556
    %v1189 = vsel %vm1188, %v1187, %v1185
    %1190 = vrot.lane.b32.xlu0 %v1189, 16
    %v1191 = vpop.permute.xlu0 %1190
    %vm1192 = vcmask 261248
    %s1193 = scalar_lea.vmem [#allocation0], 8
    %1194 = vst.msk [vmem:[%s1193] sm:$0xff] %vm1192, %v1191
    %s1195 = scalar_lea.vmem [#allocation1], 321
    %v1196 = vld [vmem:[%s1195] ss:$8 sm:$0xf]
    %s1197 = scalar_lea.vmem [#allocation1], 321
    %v1198 = vld [vmem:[%s1197] ss:$8 sm:$0xf0]
    %vm1199 = vcmask 1047556
    %v1200 = vsel %vm1199, %v1198, %v1196
    %1201 = vrot.lane.b32.xlu0 %v1200, 16
    %v1202 = vpop.permute.xlu0 %1201
    %vm1203 = vcmask 261248
    %s1204 = scalar_lea.vmem [#allocation0], 40
    %1205 = vst.msk [vmem:[%s1204] sm:$0xff] %vm1203, %v1202
    %s1206 = scalar_lea.vmem [#allocation1], 129
    %v1207 = vld [vmem:[%s1206] ss:$8 sm:$0xf]
    %s1208 = scalar_lea.vmem [#allocation1], 129
    %v1209 = vld [vmem:[%s1208] ss:$8 sm:$0xf0]
    %vm1210 = vcmask 1047556
    %v1211 = vsel %vm1210, %v1209, %v1207
    %1212 = vrot.lane.b32.xlu0 %v1211, 16
    %v1213 = vpop.permute.xlu0 %1212
    %vm1214 = vcmask 261248
    %s1215 = scalar_lea.vmem [#allocation0], 16
    %1216 = vst.msk [vmem:[%s1215] sm:$0xff] %vm1214, %v1213
    %s1217 = scalar_lea.vmem [#allocation1], 193
    %v1218 = vld [vmem:[%s1217] ss:$8 sm:$0xf]
    %s1219 = scalar_lea.vmem [#allocation1], 193
    %v1220 = vld [vmem:[%s1219] ss:$8 sm:$0xf0]
    %vm1221 = vcmask 1047556
    %v1222 = vsel %vm1221, %v1220, %v1218
    %1223 = vrot.lane.b32.xlu0 %v1222, 16
    %v1224 = vpop.permute.xlu0 %1223
    %vm1225 = vcmask 261248
    %s1226 = scalar_lea.vmem [#allocation0], 24
    %1227 = vst.msk [vmem:[%s1226] sm:$0xff] %vm1225, %v1224
    %s1229 = ssub.s32 256, 1
    %v1230 = vld [vmem:[#allocation0] sm:%s1229]
    %v1231 = vpack.c.bf16 0.0, %v1230
    %s1233 = ssub.s32 16, 1
    %1234 = vst [vmem:[%s1] sm:%s1233] %v1231
    %s1235 = scalar_lea.vmem [#allocation0], 8
    %v1236 = vld [vmem:[%s1235] sm:%s1229]
    %v1237 = vpack.c.bf16 0.0, %v1236
    %s1239 = ssub.s32 16, 1
    %s1240 = scalar_lea.vmem %s1, 4
    %1241 = vst [vmem:[%s1240] sm:%s1239] %v1237
    %s1242 = scalar_lea.vmem [#allocation0], 16
    %v1243 = vld [vmem:[%s1242] sm:%s1229]
    %v1244 = vpack.c.bf16 0.0, %v1243
    %s1246 = ssub.s32 16, 1
    %s1247 = scalar_lea.vmem %s1, 8
    %1248 = vst [vmem:[%s1247] sm:%s1246] %v1244
    %s1249 = scalar_lea.vmem [#allocation0], 24
    %v1250 = vld [vmem:[%s1249] sm:%s1229]
    %v1251 = vpack.c.bf16 0.0, %v1250
    %s1253 = ssub.s32 16, 1
    %s1254 = scalar_lea.vmem %s1, 12
    %1255 = vst [vmem:[%s1254] sm:%s1253] %v1251
    %s1256 = scalar_lea.vmem [#allocation0], 32
    %v1257 = vld [vmem:[%s1256] sm:%s1229]
    %v1258 = vpack.c.bf16 0.0, %v1257
    %s1260 = ssub.s32 16, 1
    %s1261 = scalar_lea.vmem %s1, 16
    %1262 = vst [vmem:[%s1261] sm:%s1260] %v1258
    %s1263 = scalar_lea.vmem [#allocation0], 40
    %v1264 = vld [vmem:[%s1263] sm:%s1229]
    %v1265 = vpack.c.bf16 0.0, %v1264
    %s1267 = ssub.s32 16, 1
    %s1268 = scalar_lea.vmem %s1, 20
    %1269 = vst [vmem:[%s1268] sm:%s1267] %v1265

// kernel: squeeze.1
$region0: #{squeeze.1}
  %s0 = inlined_call_operand.vmem [shape: bf16[1,4,4,8,16], index: 0, kind: input, shape index: {}]
  %s1 = inlined_call_operand.vmem [shape: bf16[16,128], index: 1, kind: output, shape index: {}]
  $region1: #{squeeze.1} parent=0
    #allocation0 [shape = 'u8[8192]{0}', space=vmem, size = 0x2000, scoped, tag = 'scoped mem for output reshape']
    #allocation1 [shape = 'u8[65536]{0}', space=vmem, size = 0x10000, scoped, tag = 'scoped mem for input reshape']
    %s3 = ssub.s32 256, 1
    %s4 = scalar_lea.vmem %s0, 60
    %s5 = sshrl.u32 %s3, 1
    %s6 = sor.u32 %s3, %s5
    %s7 = sand.u32 %s6, 85
    %s8 = sshrl.u32 %s7, 1
    %s9 = sor.u32 %s7, %s8
    %s10 = sand.u32 51, %s9
    %s11 = sshrl.u32 %s10, 2
    %s12 = sor.u32 %s10, %s11
    %s13 = sand.u32 15, %s12
    %v14 = vld [vmem:[%s4] sm:%s13]
    %v15 = vunpack.c.l.bf16 %v14
    %v16 = vunpack.c.h.bf16 %v14
    %s17 = scalar_lea.vmem [#allocation1], 120
    %18 = vst [vmem:[%s17] sm:%s3] %v15
    %s19 = scalar_lea.vmem %s0, 56
    %s20 = sshrl.u32 %s3, 1
    %s21 = sor.u32 %s3, %s20
    %s22 = sand.u32 %s21, 85
    %s23 = sshrl.u32 %s22, 1
    %s24 = sor.u32 %s22, %s23
    %s25 = sand.u32 51, %s24
    %s26 = sshrl.u32 %s25, 2
    %s27 = sor.u32 %s25, %s26
    %s28 = sand.u32 15, %s27
    %v29 = vld [vmem:[%s19] sm:%s28]
    %v30 = vunpack.c.l.bf16 %v29
    %v31 = vunpack.c.h.bf16 %v29
    %s32 = scalar_lea.vmem [#allocation1], 112
    %33 = vst [vmem:[%s32] sm:%s3] %v30
    %s34 = scalar_lea.vmem %s0, 52
    %s35 = sshrl.u32 %s3, 1
    %s36 = sor.u32 %s3, %s35
    %s37 = sand.u32 %s36, 85
    %s38 = sshrl.u32 %s37, 1
    %s39 = sor.u32 %s37, %s38
    %s40 = sand.u32 51, %s39
    %s41 = sshrl.u32 %s40, 2
    %s42 = sor.u32 %s40, %s41
    %s43 = sand.u32 15, %s42
    %v44 = vld [vmem:[%s34] sm:%s43]
    %v45 = vunpack.c.l.bf16 %v44
    %v46 = vunpack.c.h.bf16 %v44
    %s47 = scalar_lea.vmem [#allocation1], 104
    %48 = vst [vmem:[%s47] sm:%s3] %v45
    %s49 = scalar_lea.vmem %s0, 48
    %s50 = sshrl.u32 %s3, 1
    %s51 = sor.u32 %s3, %s50
    %s52 = sand.u32 %s51, 85
    %s53 = sshrl.u32 %s52, 1
    %s54 = sor.u32 %s52, %s53
    %s55 = sand.u32 51, %s54
    %s56 = sshrl.u32 %s55, 2
    %s57 = sor.u32 %s55, %s56
    %s58 = sand.u32 15, %s57
    %v59 = vld [vmem:[%s49] sm:%s58]
    %v60 = vunpack.c.l.bf16 %v59
    %v61 = vunpack.c.h.bf16 %v59
    %s62 = scalar_lea.vmem [#allocation1], 96
    %63 = vst [vmem:[%s62] sm:%s3] %v60
    %s64 = scalar_lea.vmem %s0, 44
    %s65 = sshrl.u32 %s3, 1
    %s66 = sor.u32 %s3, %s65
    %s67 = sand.u32 %s66, 85
    %s68 = sshrl.u32 %s67, 1
    %s69 = sor.u32 %s67, %s68
    %s70 = sand.u32 51, %s69
    %s71 = sshrl.u32 %s70, 2
    %s72 = sor.u32 %s70, %s71
    %s73 = sand.u32 15, %s72
    %v74 = vld [vmem:[%s64] sm:%s73]
    %v75 = vunpack.c.l.bf16 %v74
    %v76 = vunpack.c.h.bf16 %v74
    %s77 = scalar_lea.vmem [#allocation1], 88
    %78 = vst [vmem:[%s77] sm:%s3] %v75
    %s79 = scalar_lea.vmem %s0, 40
    %s80 = sshrl.u32 %s3, 1
    %s81 = sor.u32 %s3, %s80
    %s82 = sand.u32 %s81, 85
    %s83 = sshrl.u32 %s82, 1
    %s84 = sor.u32 %s82, %s83
    %s85 = sand.u32 51, %s84
    %s86 = sshrl.u32 %s85, 2
    %s87 = sor.u32 %s85, %s86
    %s88 = sand.u32 15, %s87
    %v89 = vld [vmem:[%s79] sm:%s88]
    %v90 = vunpack.c.l.bf16 %v89
    %v91 = vunpack.c.h.bf16 %v89
    %s92 = scalar_lea.vmem [#allocation1], 80
    %93 = vst [vmem:[%s92] sm:%s3] %v90
    %s94 = scalar_lea.vmem %s0, 36
    %s95 = sshrl.u32 %s3, 1
    %s96 = sor.u32 %s3, %s95
    %s97 = sand.u32 %s96, 85
    %s98 = sshrl.u32 %s97, 1
    %s99 = sor.u32 %s97, %s98
    %s100 = sand.u32 51, %s99
    %s101 = sshrl.u32 %s100, 2
    %s102 = sor.u32 %s100, %s101
    %s103 = sand.u32 15, %s102
    %v104 = vld [vmem:[%s94] sm:%s103]
    %v105 = vunpack.c.l.bf16 %v104
    %v106 = vunpack.c.h.bf16 %v104
    %s107 = scalar_lea.vmem [#allocation1], 72
    %108 = vst [vmem:[%s107] sm:%s3] %v105
    %s109 = scalar_lea.vmem %s0, 32
    %s110 = sshrl.u32 %s3, 1
    %s111 = sor.u32 %s3, %s110
    %s112 = sand.u32 %s111, 85
    %s113 = sshrl.u32 %s112, 1
    %s114 = sor.u32 %s112, %s113
    %s115 = sand.u32 51, %s114
    %s116 = sshrl.u32 %s115, 2
    %s117 = sor.u32 %s115, %s116
    %s118 = sand.u32 15, %s117
    %v119 = vld [vmem:[%s109] sm:%s118]
    %v120 = vunpack.c.l.bf16 %v119
    %v121 = vunpack.c.h.bf16 %v119
    %s122 = scalar_lea.vmem [#allocation1], 64
    %123 = vst [vmem:[%s122] sm:%s3] %v120
    %s124 = scalar_lea.vmem %s0, 28
    %s125 = sshrl.u32 %s3, 1
    %s126 = sor.u32 %s3, %s125
    %s127 = sand.u32 %s126, 85
    %s128 = sshrl.u32 %s127, 1
    %s129 = sor.u32 %s127, %s128
    %s130 = sand.u32 51, %s129
    %s131 = sshrl.u32 %s130, 2
    %s132 = sor.u32 %s130, %s131
    %s133 = sand.u32 15, %s132
    %v134 = vld [vmem:[%s124] sm:%s133]
    %v135 = vunpack.c.l.bf16 %v134
    %v136 = vunpack.c.h.bf16 %v134
    %s137 = scalar_lea.vmem [#allocation1], 56
    %138 = vst [vmem:[%s137] sm:%s3] %v135
    %s139 = scalar_lea.vmem %s0, 24
    %s140 = sshrl.u32 %s3, 1
    %s141 = sor.u32 %s3, %s140
    %s142 = sand.u32 %s141, 85
    %s143 = sshrl.u32 %s142, 1
    %s144 = sor.u32 %s142, %s143
    %s145 = sand.u32 51, %s144
    %s146 = sshrl.u32 %s145, 2
    %s147 = sor.u32 %s145, %s146
    %s148 = sand.u32 15, %s147
    %v149 = vld [vmem:[%s139] sm:%s148]
    %v150 = vunpack.c.l.bf16 %v149
    %v151 = vunpack.c.h.bf16 %v149
    %s152 = scalar_lea.vmem [#allocation1], 48
    %153 = vst [vmem:[%s152] sm:%s3] %v150
    %s154 = scalar_lea.vmem %s0, 20
    %s155 = sshrl.u32 %s3, 1
    %s156 = sor.u32 %s3, %s155
    %s157 = sand.u32 %s156, 85
    %s158 = sshrl.u32 %s157, 1
    %s159 = sor.u32 %s157, %s158
    %s160 = sand.u32 51, %s159
    %s161 = sshrl.u32 %s160, 2
    %s162 = sor.u32 %s160, %s161
    %s163 = sand.u32 15, %s162
    %v164 = vld [vmem:[%s154] sm:%s163]
    %v165 = vunpack.c.l.bf16 %v164
    %v166 = vunpack.c.h.bf16 %v164
    %s167 = scalar_lea.vmem [#allocation1], 40
    %168 = vst [vmem:[%s167] sm:%s3] %v165
    %s169 = scalar_lea.vmem %s0, 16
    %s170 = sshrl.u32 %s3, 1
    %s171 = sor.u32 %s3, %s170
    %s172 = sand.u32 %s171, 85
    %s173 = sshrl.u32 %s172, 1
    %s174 = sor.u32 %s172, %s173
    %s175 = sand.u32 51, %s174
    %s176 = sshrl.u32 %s175, 2
    %s177 = sor.u32 %s175, %s176
    %s178 = sand.u32 15, %s177
    %v179 = vld [vmem:[%s169] sm:%s178]
    %v180 = vunpack.c.l.bf16 %v179
    %v181 = vunpack.c.h.bf16 %v179
    %s182 = scalar_lea.vmem [#allocation1], 32
    %183 = vst [vmem:[%s182] sm:%s3] %v180
    %s184 = scalar_lea.vmem %s0, 12
    %s185 = sshrl.u32 %s3, 1
    %s186 = sor.u32 %s3, %s185
    %s187 = sand.u32 %s186, 85
    %s188 = sshrl.u32 %s187, 1
    %s189 = sor.u32 %s187, %s188
    %s190 = sand.u32 51, %s189
    %s191 = sshrl.u32 %s190, 2
    %s192 = sor.u32 %s190, %s191
    %s193 = sand.u32 15, %s192
    %v194 = vld [vmem:[%s184] sm:%s193]
    %v195 = vunpack.c.l.bf16 %v194
    %v196 = vunpack.c.h.bf16 %v194
    %s197 = scalar_lea.vmem [#allocation1], 24
    %198 = vst [vmem:[%s197] sm:%s3] %v195
    %s199 = scalar_lea.vmem %s0, 8
    %s200 = sshrl.u32 %s3, 1
    %s201 = sor.u32 %s3, %s200
    %s202 = sand.u32 %s201, 85
    %s203 = sshrl.u32 %s202, 1
    %s204 = sor.u32 %s202, %s203
    %s205 = sand.u32 51, %s204
    %s206 = sshrl.u32 %s205, 2
    %s207 = sor.u32 %s205, %s206
    %s208 = sand.u32 15, %s207
    %v209 = vld [vmem:[%s199] sm:%s208]
    %v210 = vunpack.c.l.bf16 %v209
    %v211 = vunpack.c.h.bf16 %v209
    %s212 = scalar_lea.vmem [#allocation1], 16
    %213 = vst [vmem:[%s212] sm:%s3] %v210
    %s214 = scalar_lea.vmem %s0, 4
    %s215 = sshrl.u32 %s3, 1
    %s216 = sor.u32 %s3, %s215
    %s217 = sand.u32 %s216, 85
    %s218 = sshrl.u32 %s217, 1
    %s219 = sor.u32 %s217, %s218
    %s220 = sand.u32 51, %s219
    %s221 = sshrl.u32 %s220, 2
    %s222 = sor.u32 %s220, %s221
    %s223 = sand.u32 15, %s222
    %v224 = vld [vmem:[%s214] sm:%s223]
    %v225 = vunpack.c.l.bf16 %v224
    %v226 = vunpack.c.h.bf16 %v224
    %s227 = scalar_lea.vmem [#allocation1], 8
    %228 = vst [vmem:[%s227] sm:%s3] %v225
    %s229 = sshrl.u32 %s3, 1
    %s230 = sor.u32 %s3, %s229
    %s231 = sand.u32 %s230, 85
    %s232 = sshrl.u32 %s231, 1
    %s233 = sor.u32 %s231, %s232
    %s234 = sand.u32 51, %s233
    %s235 = sshrl.u32 %s234, 2
    %s236 = sor.u32 %s234, %s235
    %s237 = sand.u32 15, %s236
    %v238 = vld [vmem:[%s0] sm:%s237]
    %v239 = vunpack.c.l.bf16 %v238
    %v240 = vunpack.c.h.bf16 %v238
    %241 = vst [vmem:[#allocation1] sm:%s3] %v239
    %v242 = vld [vmem:[#allocation1] ss:$8 sm:$0xf]
    %v243 = vld [vmem:[#allocation1] ss:$8 sm:$0xf0]
    %vm244 = vcmask 1047556
    %v245 = vsel %vm244, %v243, %v242
    %vm246 = vcmask 130048
    %247 = vst.msk [vmem:[#allocation0] sm:$0xff] %vm246, %v245
    %s248 = scalar_lea.vmem [#allocation1], 64
    %v249 = vld [vmem:[%s248] ss:$8 sm:$0xf]
    %s250 = scalar_lea.vmem [#allocation1], 64
    %v251 = vld [vmem:[%s250] ss:$8 sm:$0xf0]
    %vm252 = vcmask 1047556
    %v253 = vsel %vm252, %v251, %v249
    %vm254 = vcmask 130048
    %s255 = scalar_lea.vmem [#allocation0], 8
    %256 = vst.msk [vmem:[%s255] sm:$0xff] %vm254, %v253
    %s257 = scalar_lea.vmem [#allocation1], 7
    %v258 = vld [vmem:[%s257] ss:$8 sm:$0xf]
    %s259 = scalar_lea.vmem [#allocation1], 7
    %v260 = vld [vmem:[%s259] ss:$8 sm:$0xf0]
    %vm261 = vcmask 1047556
    %v262 = vsel %vm261, %v260, %v258
    %263 = vrot.lane.b32.xlu0 %v262, 112
    %v264 = vpop.permute.xlu0 %263
    %vm265 = vcmask 1048448
    %266 = vst.msk [vmem:[#allocation0] sm:$0xff] %vm265, %v264
    %s267 = scalar_lea.vmem [#allocation1], 71
    %v268 = vld [vmem:[%s267] ss:$8 sm:$0xf]
    %s269 = scalar_lea.vmem [#allocation1], 71
    %v270 = vld [vmem:[%s269] ss:$8 sm:$0xf0]
    %vm271 = vcmask 1047556
    %v272 = vsel %vm271, %v270, %v268
    %273 = vrot.lane.b32.xlu0 %v272, 112
    %v274 = vpop.permute.xlu0 %273
    %vm275 = vcmask 1048448
    %s276 = scalar_lea.vmem [#allocation0], 8
    %277 = vst.msk [vmem:[%s276] sm:$0xff] %vm275, %v274
    %s278 = scalar_lea.vmem [#allocation1], 6
    %v279 = vld [vmem:[%s278] ss:$8 sm:$0xf]
    %s280 = scalar_lea.vmem [#allocation1], 6
    %v281 = vld [vmem:[%s280] ss:$8 sm:$0xf0]
    %vm282 = vcmask 1047556
    %v283 = vsel %vm282, %v281, %v279
    %284 = vrot.lane.b32.xlu0 %v283, 96
    %v285 = vpop.permute.xlu0 %284
    %vm286 = vcmask 917248
    %287 = vst.msk [vmem:[#allocation0] sm:$0xff] %vm286, %v285
    %s288 = scalar_lea.vmem [#allocation1], 70
    %v289 = vld [vmem:[%s288] ss:$8 sm:$0xf]
    %s290 = scalar_lea.vmem [#allocation1], 70
    %v291 = vld [vmem:[%s290] ss:$8 sm:$0xf0]
    %vm292 = vcmask 1047556
    %v293 = vsel %vm292, %v291, %v289
    %294 = vrot.lane.b32.xlu0 %v293, 96
    %v295 = vpop.permute.xlu0 %294
    %vm296 = vcmask 917248
    %s297 = scalar_lea.vmem [#allocation0], 8
    %298 = vst.msk [vmem:[%s297] sm:$0xff] %vm296, %v295
    %s299 = scalar_lea.vmem [#allocation1], 5
    %v300 = vld [vmem:[%s299] ss:$8 sm:$0xf]
    %s301 = scalar_lea.vmem [#allocation1], 5
    %v302 = vld [vmem:[%s301] ss:$8 sm:$0xf0]
    %vm303 = vcmask 1047556
    %v304 = vsel %vm303, %v302, %v300
    %305 = vrot.lane.b32.xlu0 %v304, 80
    %v306 = vpop.permute.xlu0 %305
    %vm307 = vcmask 786048
    %308 = vst.msk [vmem:[#allocation0] sm:$0xff] %vm307, %v306
    %s309 = scalar_lea.vmem [#allocation1], 69
    %v310 = vld [vmem:[%s309] ss:$8 sm:$0xf]
    %s311 = scalar_lea.vmem [#allocation1], 69
    %v312 = vld [vmem:[%s311] ss:$8 sm:$0xf0]
    %vm313 = vcmask 1047556
    %v314 = vsel %vm313, %v312, %v310
    %315 = vrot.lane.b32.xlu0 %v314, 80
    %v316 = vpop.permute.xlu0 %315
    %vm317 = vcmask 786048
    %s318 = scalar_lea.vmem [#allocation0], 8
    %319 = vst.msk [vmem:[%s318] sm:$0xff] %vm317, %v316
    %s320 = scalar_lea.vmem [#allocation1], 4
    %v321 = vld [vmem:[%s320] ss:$8 sm:$0xf]
    %s322 = scalar_lea.vmem [#allocation1], 4
    %v323 = vld [vmem:[%s322] ss:$8 sm:$0xf0]
    %vm324 = vcmask 1047556
    %v325 = vsel %vm324, %v323, %v321
    %326 = vrot.lane.b32.xlu0 %v325, 64
    %v327 = vpop.permute.xlu0 %326
    %vm328 = vcmask 654848
    %329 = vst.msk [vmem:[#allocation0] sm:$0xff] %vm328, %v327
    %s330 = scalar_lea.vmem [#allocation1], 68
    %v331 = vld [vmem:[%s330] ss:$8 sm:$0xf]
    %s332 = scalar_lea.vmem [#allocation1], 68
    %v333 = vld [vmem:[%s332] ss:$8 sm:$0xf0]
    %vm334 = vcmask 1047556
    %v335 = vsel %vm334, %v333, %v331
    %336 = vrot.lane.b32.xlu0 %v335, 64
    %v337 = vpop.permute.xlu0 %336
    %vm338 = vcmask 654848
    %s339 = scalar_lea.vmem [#allocation0], 8
    %340 = vst.msk [vmem:[%s339] sm:$0xff] %vm338, %v337
    %s341 = scalar_lea.vmem [#allocation1], 3
    %v342 = vld [vmem:[%s341] ss:$8 sm:$0xf]
    %s343 = scalar_lea.vmem [#allocation1], 3
    %v344 = vld [vmem:[%s343] ss:$8 sm:$0xf0]
    %vm345 = vcmask 1047556
    %v346 = vsel %vm345, %v344, %v342
    %347 = vrot.lane.b32.xlu0 %v346, 48
    %v348 = vpop.permute.xlu0 %347
    %vm349 = vcmask 523648
    %350 = vst.msk [vmem:[#allocation0] sm:$0xff] %vm349, %v348
    %s351 = scalar_lea.vmem [#allocation1], 67
    %v352 = vld [vmem:[%s351] ss:$8 sm:$0xf]
    %s353 = scalar_lea.vmem [#allocation1], 67
    %v354 = vld [vmem:[%s353] ss:$8 sm:$0xf0]
    %vm355 = vcmask 1047556
    %v356 = vsel %vm355, %v354, %v352
    %357 = vrot.lane.b32.xlu0 %v356, 48
    %v358 = vpop.permute.xlu0 %357
    %vm359 = vcmask 523648
    %s360 = scalar_lea.vmem [#allocation0], 8
    %361 = vst.msk [vmem:[%s360] sm:$0xff] %vm359, %v358
    %s362 = scalar_lea.vmem [#allocation1], 2
    %v363 = vld [vmem:[%s362] ss:$8 sm:$0xf]
    %s364 = scalar_lea.vmem [#allocation1], 2
    %v365 = vld [vmem:[%s364] ss:$8 sm:$0xf0]
    %vm366 = vcmask 1047556
    %v367 = vsel %vm366, %v365, %v363
    %368 = vrot.lane.b32.xlu0 %v367, 32
    %v369 = vpop.permute.xlu0 %368
    %vm370 = vcmask 392448
    %371 = vst.msk [vmem:[#allocation0] sm:$0xff] %vm370, %v369
    %s372 = scalar_lea.vmem [#allocation1], 66
    %v373 = vld [vmem:[%s372] ss:$8 sm:$0xf]
    %s374 = scalar_lea.vmem [#allocation1], 66
    %v375 = vld [vmem:[%s374] ss:$8 sm:$0xf0]
    %vm376 = vcmask 1047556
    %v377 = vsel %vm376, %v375, %v373
    %378 = vrot.lane.b32.xlu0 %v377, 32
    %v379 = vpop.permute.xlu0 %378
    %vm380 = vcmask 392448
    %s381 = scalar_lea.vmem [#allocation0], 8
    %382 = vst.msk [vmem:[%s381] sm:$0xff] %vm380, %v379
    %s383 = scalar_lea.vmem [#allocation1], 1
    %v384 = vld [vmem:[%s383] ss:$8 sm:$0xf]
    %s385 = scalar_lea.vmem [#allocation1], 1
    %v386 = vld [vmem:[%s385] ss:$8 sm:$0xf0]
    %vm387 = vcmask 1047556
    %v388 = vsel %vm387, %v386, %v384
    %389 = vrot.lane.b32.xlu0 %v388, 16
    %v390 = vpop.permute.xlu0 %389
    %vm391 = vcmask 261248
    %392 = vst.msk [vmem:[#allocation0] sm:$0xff] %vm391, %v390
    %s393 = scalar_lea.vmem [#allocation1], 65
    %v394 = vld [vmem:[%s393] ss:$8 sm:$0xf]
    %s395 = scalar_lea.vmem [#allocation1], 65
    %v396 = vld [vmem:[%s395] ss:$8 sm:$0xf0]
    %vm397 = vcmask 1047556
    %v398 = vsel %vm397, %v396, %v394
    %399 = vrot.lane.b32.xlu0 %v398, 16
    %v400 = vpop.permute.xlu0 %399
    %vm401 = vcmask 261248
    %s402 = scalar_lea.vmem [#allocation0], 8
    %403 = vst.msk [vmem:[%s402] sm:$0xff] %vm401, %v400
    %s405 = ssub.s32 256, 1
    %v406 = vld [vmem:[#allocation0] sm:%s405]
    %v407 = vpack.c.bf16 0.0, %v406
    %s409 = ssub.s32 16, 1
    %410 = vst [vmem:[%s1] sm:%s409] %v407
    %s411 = scalar_lea.vmem [#allocation0], 8
    %v412 = vld [vmem:[%s411] sm:%s405]
    %v413 = vpack.c.bf16 0.0, %v412
    %s415 = ssub.s32 16, 1
    %s416 = scalar_lea.vmem %s1, 4
    %417 = vst [vmem:[%s416] sm:%s415] %v413

// kernel: tile.38
$region0: #{tile.38}
  #allocation0 [shape = 's32[1]{0}', space=sflag, size = 0x4, scoped, tag = 'scoped memory for tile.38']
  %s0 = inlined_call_operand.vmem [shape: f32[3], index: 0, kind: input, shape index: {}]
  %s1 = inlined_call_operand.vmem [shape: f32[64,3], index: 1, kind: output, shape index: {}]
  // Predicated region
  $region2: #{tile.38} parent=0 // pred_check
    _
  $region3: #{tile.38} parent=0 // pred_check_branch
    %3 = sbr.rel (0) target = $region5
  $region4: #{tile.38} parent=0 // pred_region
    _
  $region5: #{tile.38} parent=0 // pred_fallthru
    _
  %v4 = vld [vmem:[%s0] ss:$0 sm:$0xff]
  %5 = vst [vmem:[%s1] sm:$0xff] %v4
  %s6 = scalar_lea.vmem %s1, 8
  %7 = vst [vmem:[%s6] sm:$0xff] %v4
  %s8 = scalar_lea.vmem %s1, 16
  %9 = vst [vmem:[%s8] sm:$0xff] %v4
  %s10 = scalar_lea.vmem %s1, 24
  %11 = vst [vmem:[%s10] sm:$0xff] %v4
  %s12 = scalar_lea.vmem %s1, 32
  %13 = vst [vmem:[%s12] sm:$0xff] %v4
  %s14 = scalar_lea.vmem %s1, 40
  %15 = vst [vmem:[%s14] sm:$0xff] %v4
  %s16 = scalar_lea.vmem %s1, 48
  %17 = vst [vmem:[%s16] sm:$0xff] %v4
  %s18 = scalar_lea.vmem %s1, 56
  %19 = vst [vmem:[%s18] sm:$0xff] %v4

// kernel: tile.23
$region0: #{tile.23}
  #allocation0 [shape = 's32[1]{0}', space=sflag, size = 0x4, scoped, tag = 'scoped memory for tile.23']
  %s0 = inlined_call_operand.vmem [shape: f32[16], index: 0, kind: input, shape index: {}]
  %s1 = inlined_call_operand.vmem [shape: f32[8,16], index: 1, kind: output, shape index: {}]
  // Predicated region
  $region2: #{tile.23} parent=0 // pred_check
    _
  $region3: #{tile.23} parent=0 // pred_check_branch
    %3 = sbr.rel (0) target = $region5
  $region4: #{tile.23} parent=0 // pred_region
    _
  $region5: #{tile.23} parent=0 // pred_fallthru
    _
  %v4 = vld [vmem:[%s0] ss:$0 sm:$0xff]
  %5 = vst [vmem:[%s1] sm:$0xff] %v4

// kernel: tile.28
$region0: #{tile.28}
  #allocation0 [shape = 's32[1]{0}', space=sflag, size = 0x4, scoped, tag = 'scoped memory for tile.28']
  %s0 = inlined_call_operand.vmem [shape: f32[4], index: 0, kind: input, shape index: {}]
  %s1 = inlined_call_operand.vmem [shape: f32[4,4], index: 1, kind: output, shape index: {}]
  // Predicated region
  $region2: #{tile.28} parent=0 // pred_check
    _
  $region3: #{tile.28} parent=0 // pred_check_branch
    %3 = sbr.rel (0) target = $region5
  $region4: #{tile.28} parent=0 // pred_region
    _
  $region5: #{tile.28} parent=0 // pred_fallthru
    _
  %v4 = vld [vmem:[%s0] ss:$0 sm:$0xff]
  %5 = vst [vmem:[%s1] sm:$0xf] %v4

// kernel: tile.33
$region0: #{tile.33}
  #allocation0 [shape = 's32[1]{0}', space=sflag, size = 0x4, scoped, tag = 'scoped memory for tile.33']
  %s0 = inlined_call_operand.vmem [shape: f32[16], index: 0, kind: input, shape index: {}]
  %s1 = inlined_call_operand.vmem [shape: f32[16,16], index: 1, kind: output, shape index: {}]
  // Predicated region
  $region2: #{tile.33} parent=0 // pred_check
    _
  $region3: #{tile.33} parent=0 // pred_check_branch
    %3 = sbr.rel (0) target = $region5
  $region4: #{tile.33} parent=0 // pred_region
    _
  $region5: #{tile.33} parent=0 // pred_fallthru
    _
  %v4 = vld [vmem:[%s0] ss:$0 sm:$0xff]
  %5 = vst [vmem:[%s1] sm:$0xff] %v4
  %s6 = scalar_lea.vmem %s1, 8
  %7 = vst [vmem:[%s6] sm:$0xff] %v4

// kernel: conv_autoencoder_forward.1
$region0: #{conv_autoencoder_forward.1}
  #allocation0 [shape = 'u32[]', space=smem, size = 0x4, offset = 0x4, fixed_abs, tag = 'smem constant byte address 0x4 - core index']
  #allocation1 [shape = 'u32[72,128]{1,0:T(1,128)}', space=vmem, size = 0x9000, scoped, tag = 'internal scratch']
  #allocation2 [shape = 'f32[80,128]{1,0:T(8,128)}', space=vmem, size = 0xa000, scoped, tag = 'scratch operand']
  %s0 = inlined_call_operand.vmem [shape: bf16[2,144,48], index: 0, kind: input, shape index: {}]
  %s1 = inlined_call_operand.vmem [shape: bf16[3,48,256], index: 1, kind: input, shape index: {}]
  %s2 = inlined_call_operand.vmem [shape: bf16[2,3,128,16], index: 2, kind: input, shape index: {}]
  %s3 = inlined_call_operand.vmem [shape: bf16[16,256], index: 3, kind: input, shape index: {}]
  %s4 = inlined_call_operand.vmem [shape: bf16[256,192], index: 4, kind: input, shape index: {}]
  %s5 = inlined_call_operand.vmem [shape: f32[4,256], index: 5, kind: input, shape index: {}]
  %s6 = inlined_call_operand.vmem [shape: f32[2,4,8,192], index: 6, kind: output, shape index: {}]
  %s7 = sld [smem:[#allocation0]]
  $region57: #{conv_autoencoder_forward.1} parent=0
    _
  %s9 = ssub.s32 1, %s7
  %s10 = scalar_select 0, %s9, %s7
  loop: start=0, step=1, limit=4
  $region2: #{conv_autoencoder_forward.1} parent=0 // loop_pre_header
    _
  $region3: #{conv_autoencoder_forward.1} parent=0 // loop_header
    %s12 = sphi 0, %s16
    %p13 = scmp.ge.s32.totalorder %s12, 4
    %s22 = sphi 0, %s24
    %s25 = sphi 0, %s22
    %s26 = sphi 0, %s25
    %s42 = sphi 0, %s26
    %s46 = sphi 0, %s46
    %s48 = sphi 0, %s46
    %s49 = sphi 0, %s48
    %s63 = sphi 0, %s49
    %s67 = sphi 0, %s67
    %s69 = sphi 0, %s67
    %s70 = sphi 0, %s69
    %s84 = sphi 0, %s70
    %s88 = sphi 0, %s88
    %s90 = sphi 0, %s88
    %s91 = sphi 0, %s90
    %s105 = sphi 0, %s91
    %s109 = sphi 0, %s109
    %s111 = sphi 0, %s109
    %s112 = sphi 0, %s111
    %s126 = sphi 0, %s112
    %s130 = sphi 0, %s130
    %s132 = sphi 0, %s130
    %s133 = sphi 0, %s132
    %s147 = sphi 0, %s133
    %s153 = sphi 0, %s155
    %s156 = sphi 0, %s153
    %s157 = sphi 0, %s156
    %s173 = sphi 0, %s157
  $region4: #{conv_autoencoder_forward.1} parent=0 // loop_header_branch
    %15 = sbr.rel (%p13) target = $region8
  $region5: #{conv_autoencoder_forward.1} parent=0 // loop_body
    %s17 = ssub.s32 %s12, 1
    %s18 = ssub.s32 %s12, 2
    %s19 = sadd.s32 %s12, 1
    %s20 = ssub.s32 %s12, %s19
    %p21 = scmp.eq.s32.totalorder %s20, 0
    %s23 = sadd.s32 %s22, 1
    %s24 = scalar_select %p21, %s22, %s23
    %p27 = pneg %p21
    %p28 = scmp.eq.s32.totalorder %s12, 1
    %p29 = por %p27, %p28
    %p30 = scmp.ne.s32.totalorder %s22, %s25
    %p31 = scmp.eq.s32.totalorder %s12, 0
    %p32 = por %p30, %p31
    %p33 = scmp.ne.s32.totalorder %s22, %s25
    %p34 = scmp.eq.s32.totalorder %s17, 1
    %p35 = por %p33, %p34
    %p36 = scmp.ne.s32.totalorder %s25, %s26
    %p37 = scmp.eq.s32.totalorder %s17, 0
    %p38 = por %p36, %p37
    %p39 = scmp.ne.s32.totalorder %s25, %s26
    %p40 = scmp.eq.s32.totalorder %s18, 1
    %p41 = por %p39, %p40
    %p43 = scmp.ne.s32.totalorder %s26, %s42
    %p44 = scmp.eq.s32.totalorder %s18, 0
    %p45 = por %p43, %p44
    %s47 = sadd.s32 %s46, 1
    %p50 = scmp.eq.s32.totalorder %s12, 1
    %p51 = scmp.ne.s32.totalorder %s46, %s48
    %p52 = scmp.eq.s32.totalorder %s12, 0
    %p53 = por %p51, %p52
    %p54 = scmp.ne.s32.totalorder %s46, %s48
    %p55 = scmp.eq.s32.totalorder %s17, 1
    %p56 = por %p54, %p55
    %p57 = scmp.ne.s32.totalorder %s48, %s49
    %p58 = scmp.eq.s32.totalorder %s17, 0
    %p59 = por %p57, %p58
    %p60 = scmp.ne.s32.totalorder %s48, %s49
    %p61 = scmp.eq.s32.totalorder %s18, 1
    %p62 = por %p60, %p61
    %p64 = scmp.ne.s32.totalorder %s49, %s63
    %p65 = scmp.eq.s32.totalorder %s18, 0
    %p66 = por %p64, %p65
    %s68 = sadd.s32 %s67, 1
    %p71 = scmp.eq.s32.totalorder %s12, 1
    %p72 = scmp.ne.s32.totalorder %s67, %s69
    %p73 = scmp.eq.s32.totalorder %s12, 0
    %p74 = por %p72, %p73
    %p75 = scmp.ne.s32.totalorder %s67, %s69
    %p76 = scmp.eq.s32.totalorder %s17, 1
    %p77 = por %p75, %p76
    %p78 = scmp.ne.s32.totalorder %s69, %s70
    %p79 = scmp.eq.s32.totalorder %s17, 0
    %p80 = por %p78, %p79
    %p81 = scmp.ne.s32.totalorder %s69, %s70
    %p82 = scmp.eq.s32.totalorder %s18, 1
    %p83 = por %p81, %p82
    %p85 = scmp.ne.s32.totalorder %s70, %s84
    %p86 = scmp.eq.s32.totalorder %s18, 0
    %p87 = por %p85, %p86
    %s89 = sadd.s32 %s88, 1
    %p92 = scmp.eq.s32.totalorder %s12, 1
    %p93 = scmp.ne.s32.totalorder %s88, %s90
    %p94 = scmp.eq.s32.totalorder %s12, 0
    %p95 = por %p93, %p94
    %p96 = scmp.ne.s32.totalorder %s88, %s90
    %p97 = scmp.eq.s32.totalorder %s17, 1
    %p98 = por %p96, %p97
    %p99 = scmp.ne.s32.totalorder %s90, %s91
    %p100 = scmp.eq.s32.totalorder %s17, 0
    %p101 = por %p99, %p100
    %p102 = scmp.ne.s32.totalorder %s90, %s91
    %p103 = scmp.eq.s32.totalorder %s18, 1
    %p104 = por %p102, %p103
    %p106 = scmp.ne.s32.totalorder %s91, %s105
    %p107 = scmp.eq.s32.totalorder %s18, 0
    %p108 = por %p106, %p107
    %s110 = sadd.s32 %s109, 1
    %p113 = scmp.eq.s32.totalorder %s12, 1
    %p114 = scmp.ne.s32.totalorder %s109, %s111
    %p115 = scmp.eq.s32.totalorder %s12, 0
    %p116 = por %p114, %p115
    %p117 = scmp.ne.s32.totalorder %s109, %s111
    %p118 = scmp.eq.s32.totalorder %s17, 1
    %p119 = por %p117, %p118
    %p120 = scmp.ne.s32.totalorder %s111, %s112
    %p121 = scmp.eq.s32.totalorder %s17, 0
    %p122 = por %p120, %p121
    %p123 = scmp.ne.s32.totalorder %s111, %s112
    %p124 = scmp.eq.s32.totalorder %s18, 1
    %p125 = por %p123, %p124
    %p127 = scmp.ne.s32.totalorder %s112, %s126
    %p128 = scmp.eq.s32.totalorder %s18, 0
    %p129 = por %p127, %p128
    %s131 = sadd.s32 %s130, 1
    %p134 = scmp.eq.s32.totalorder %s12, 1
    %p135 = scmp.ne.s32.totalorder %s130, %s132
    %p136 = scmp.eq.s32.totalorder %s12, 0
    %p137 = por %p135, %p136
    %p138 = scmp.ne.s32.totalorder %s130, %s132
    %p139 = scmp.eq.s32.totalorder %s17, 1
    %p140 = por %p138, %p139
    %p141 = scmp.ne.s32.totalorder %s132, %s133
    %p142 = scmp.eq.s32.totalorder %s17, 0
    %p143 = por %p141, %p142
    %p144 = scmp.ne.s32.totalorder %s132, %s133
    %p145 = scmp.eq.s32.totalorder %s18, 1
    %p146 = por %p144, %p145
    %p148 = scmp.ne.s32.totalorder %s133, %s147
    %p149 = scmp.eq.s32.totalorder %s18, 0
    %p150 = por %p148, %p149
    %s151 = ssub.s32 %s12, %s19
    %p152 = scmp.eq.s32.totalorder %s151, 0
    %s154 = sadd.s32 %s153, 1
    %s155 = scalar_select %p152, %s153, %s154
    %p158 = pneg %p152
    %p159 = scmp.eq.s32.totalorder %s12, 1
    %p160 = por %p158, %p159
    %p161 = scmp.ne.s32.totalorder %s153, %s156
    %p162 = scmp.eq.s32.totalorder %s12, 0
    %p163 = por %p161, %p162
    %p164 = scmp.ne.s32.totalorder %s153, %s156
    %p165 = scmp.eq.s32.totalorder %s17, 1
    %p166 = por %p164, %p165
    %p167 = scmp.ne.s32.totalorder %s156, %s157
    %p168 = scmp.eq.s32.totalorder %s17, 0
    %p169 = por %p167, %p168
    %p170 = scmp.ne.s32.totalorder %s156, %s157
    %p171 = scmp.eq.s32.totalorder %s18, 1
    %p172 = por %p170, %p171
    %p174 = scmp.ne.s32.totalorder %s157, %s173
    %p175 = scmp.eq.s32.totalorder %s18, 0
    %p176 = por %p174, %p175
    %p177 = scmp.le.s32.totalorder 1, %s12
    %p178 = scmp.lt.s32.totalorder %s12, 3
    %p179 = pnand %p177, %p178
    %p180 = pneg %p179
    // Predicated region
    $region9: #{conv_autoencoder_forward.1} parent=5 // pred_check
      _
    $region10: #{conv_autoencoder_forward.1} parent=5 // pred_check_branch
      %182 = sbr.rel (%p179) target = $region12
    $region11: #{conv_autoencoder_forward.1} parent=5 // pred_region
      %s183 = ssub.s32 %s12, 1
      // Predicated region
      $region13: #{conv_autoencoder_forward.1} parent=11 // pred_check
        %p184 = pneg %p59
      $region14: #{conv_autoencoder_forward.1} parent=11 // pred_check_branch
        %186 = sbr.rel (%p184) target = $region16
      $region15: #{conv_autoencoder_forward.1} parent=11 // pred_region
        _
      $region16: #{conv_autoencoder_forward.1} parent=11 // pred_fallthru
        _
      // Predicated region
      $region17: #{conv_autoencoder_forward.1} parent=11 // pred_check
        %p187 = pneg %p80
      $region18: #{conv_autoencoder_forward.1} parent=11 // pred_check_branch
        %189 = sbr.rel (%p187) target = $region20
      $region19: #{conv_autoencoder_forward.1} parent=11 // pred_region
        _
      $region20: #{conv_autoencoder_forward.1} parent=11 // pred_fallthru
        _
      // Predicated region
      $region21: #{conv_autoencoder_forward.1} parent=11 // pred_check
        %p190 = pneg %p101
      $region22: #{conv_autoencoder_forward.1} parent=11 // pred_check_branch
        %192 = sbr.rel (%p190) target = $region24
      $region23: #{conv_autoencoder_forward.1} parent=11 // pred_region
        _
      $region24: #{conv_autoencoder_forward.1} parent=11 // pred_fallthru
        _
      // Predicated region
      $region25: #{conv_autoencoder_forward.1} parent=11 // pred_check
        %p193 = pneg %p122
      $region26: #{conv_autoencoder_forward.1} parent=11 // pred_check_branch
        %195 = sbr.rel (%p193) target = $region28
      $region27: #{conv_autoencoder_forward.1} parent=11 // pred_region
        _
      $region28: #{conv_autoencoder_forward.1} parent=11 // pred_fallthru
        _
      // Predicated region
      $region29: #{conv_autoencoder_forward.1} parent=11 // pred_check
        %p196 = pneg %p143
      $region30: #{conv_autoencoder_forward.1} parent=11 // pred_check_branch
        %198 = sbr.rel (%p196) target = $region32
      $region31: #{conv_autoencoder_forward.1} parent=11 // pred_region
        _
      $region32: #{conv_autoencoder_forward.1} parent=11 // pred_fallthru
        _
    $region12: #{conv_autoencoder_forward.1} parent=5 // pred_fallthru
      _
    %p199 = scmp.lt.s32.totalorder %s12, 2
    // Predicated region
    $region33: #{conv_autoencoder_forward.1} parent=5 // pred_check
      %p200 = pneg %p199
    $region34: #{conv_autoencoder_forward.1} parent=5 // pred_check_branch
      %202 = sbr.rel (%p200) target = $region36
    $region35: #{conv_autoencoder_forward.1} parent=5 // pred_region
      // Predicated region
      $region37: #{conv_autoencoder_forward.1} parent=35 // pred_check
        %p203 = pneg %p32
      $region38: #{conv_autoencoder_forward.1} parent=35 // pred_check_branch
        %205 = sbr.rel (%p203) target = $region40
      $region39: #{conv_autoencoder_forward.1} parent=35 // pred_region
        %p206 = scmp.lt.s32.totalorder %s12, 1
        %s207 = scalar_select %p206, %s12, 1
        %s208 = smul.addr %s207, 18
        %s209 = smul.addr %s208, 4
        %s210 = scalar_lea.vmem %s0, %s209
      $region40: #{conv_autoencoder_forward.1} parent=35 // pred_fallthru
        _
    $region36: #{conv_autoencoder_forward.1} parent=5 // pred_fallthru
      _
    %p211 = scmp.le.s32.totalorder 1, %s12
    %p212 = scmp.lt.s32.totalorder %s12, 3
    %p213 = pnand %p211, %p212
    %p214 = pneg %p213
    // Predicated region
    $region41: #{conv_autoencoder_forward.1} parent=5 // pred_check
      _
    $region42: #{conv_autoencoder_forward.1} parent=5 // pred_check_branch
      %216 = sbr.rel (%p213) target = $region44
    $region43: #{conv_autoencoder_forward.1} parent=5 // pred_region
      %s217 = ssub.s32 %s12, 1
      %p218 = scmp.lt.s32.totalorder %s17, 1
      %s219 = scalar_select %p218, %s17, 1
      %s220 = smul.addr %s219, 18
      %s221 = smul.addr %s220, 4
      %s222 = scalar_lea.vmem %s0, %s221
      %p223 = pneg %p38
      %p224 = pneg %p35
      %p225 = pneg %p59
      %p226 = pneg %p56
      %p227 = pneg %p80
      %p228 = pneg %p77
      %p229 = pneg %p101
      %p230 = pneg %p98
      %p231 = pneg %p122
      %p232 = pneg %p119
      %p233 = pneg %p143
      %p234 = pneg %p140
      %p235 = pneg %p169
      %p236 = pneg %p166
      %p237 = scmp.lt.s32.totalorder %s17, 1
      %s238 = scalar_select %p237, %s17, 1
      %s239 = smul.addr %s238, 8
      %s240 = smul.addr %s239, 8
      %s241 = scalar_lea.vmem %s6, %s240
      %p242 = scmp.lt.s32.totalorder %s17, 1
      %s243 = scalar_select %p242, %s17, 1
      %s244 = smul.addr %s243, 18
      %s245 = smul.addr %s244, 4
      %s246 = scalar_lea.vmem %s0, %s245
      %p247 = scmp.lt.s32.totalorder %s17, 1
      %s248 = scalar_select %p247, %s17, 1
      %s249 = smul.addr %s248, 8
      %s250 = smul.addr %s249, 8
      %s251 = scalar_lea.vmem %s6, %s250
      %v253 = vld [vmem:[%s5] sm:$0x1]
      %v254 = vld [vmem:[%s5 + $0x1] sm:$0x1]
      %s255 = scalar_lea.vmem %s5, 2
      %v256 = vld [vmem:[%s255] ss:$4 sm:$0x3]
      %s257 = scalar_lea.vmem %s5, 3
      %v258 = vld [vmem:[%s257] ss:$4 sm:$0x3]
      %259 = vst [vmem:[#allocation2] sm:$0xff] 0.0
      %260 = vst [vmem:[#allocation2 + $0x48] sm:$0xff] 0.0
      %v261 = vld [vmem:[%s246] sm:$0xf]
      %v262 = vld [vmem:[%s246 + $0x4] sm:$0xf]
      %v263 = vld [vmem:[%s246 + $0x8] sm:$0xf]
      %v264 = vld [vmem:[%s246 + $0xc] sm:$0xf]
      %v265 = vld [vmem:[%s246 + $0x10] sm:$0xf]
      %v266 = vld [vmem:[%s246 + $0x14] sm:$0xf]
      %v267 = vld [vmem:[%s246 + $0x18] sm:$0xf]
      %v268 = vld [vmem:[%s246 + $0x1c] sm:$0xf]
      %v269 = vld [vmem:[%s1] sm:$0xff]
      %v270 = vld [vmem:[%s1 + $0x8] sm:$0xff]
      %v271 = vld [vmem:[%s1 + $0x10] sm:$0xff]
      %v272 = vld [vmem:[%s1 + $0x18] sm:$0xff]
      %v273 = vld [vmem:[%s1 + $0x20] sm:$0xff]
      %v274 = vld [vmem:[%s1 + $0x28] sm:$0xff]
      %v275 = vld [vmem:[%s246 + $0x20] sm:$0xf]
      %s276 = scalar_lea.vmem %s1, 48
      %v277 = vld [vmem:[%s276] sm:$0xff]
      %v278 = vld [vmem:[%s276 + $0x8] sm:$0xff]
      %v279 = vld [vmem:[%s276 + $0x10] sm:$0xff]
      %v280 = vld [vmem:[%s276 + $0x18] sm:$0xff]
      %v281 = vld [vmem:[%s276 + $0x20] sm:$0xff]
      %v282 = vld [vmem:[%s276 + $0x28] sm:$0xff]
      %v291 = vunpack.c.l.b16 %v262
      %v292 = vunpack.c.l.b16 %v263
      %v293 = vunpack.c.l.b16 %v264
      %v294 = vunpack.c.l.b16 %v265
      %v295 = vunpack.c.l.b16 %v266
      %v296 = vunpack.c.l.b16 %v267
      %v297 = vunpack.c.l.b16 %v268
      %v298 = vunpack.c.l.b16 %v275
      %v299 = vpack.c.b16 %v292, %v291
      %v300 = vpack.c.b16 %v294, %v293
      %v301 = vpack.c.b16 %v296, %v295
      %v302 = vpack.c.b16 %v298, %v297
      %v309 = vunpack.c.l.b16 %v277
      %v310 = vunpack.c.h.b16 %v277
      %v311 = vunpack.c.l.b16 %v278
      %v312 = vunpack.c.h.b16 %v278
      %v313 = vunpack.c.l.b16 %v279
      %v314 = vunpack.c.h.b16 %v279
      %v315 = vunpack.c.l.b16 %v280
      %v316 = vunpack.c.h.b16 %v280
      %v317 = vunpack.c.l.b16 %v281
      %v318 = vunpack.c.h.b16 %v281
      %v319 = vunpack.c.l.b16 %v282
      %v320 = vunpack.c.h.b16 %v282
      %v321 = vpack.c.b16 %v311, %v309
      %v322 = vpack.c.b16 %v312, %v310
      %v323 = vpack.c.b16 %v315, %v313
      %v324 = vpack.c.b16 %v316, %v314
      %v325 = vpack.c.b16 %v319, %v317
      %v326 = vpack.c.b16 %v320, %v318
      %vm333 = vcmask 392192
      %v335 = vsel %vm333, %v299, 0
      %v338 = vsel %vm333, %v300, 0
      %v341 = vsel %vm333, %v301, 0
      %v344 = vsel %vm333, %v302, 0
      %346 = vmatpush.bf16.msra.mxu0 0
      %347 = vmatpush.bf16.msra.mxu0 0
      %348 = vmatpush.bf16.msra.mxu0 0
      %349 = vmatpush.bf16.msra.mxu0 0
      %350 = vmatpush.bf16.msra.mxu0 0
      %351 = vmatpush.bf16.msra.mxu0 %v325
      %352 = vmatpush.bf16.msra.mxu0 %v323
      %353 = vmatpush.bf16.msra.mxu0 %v321
      %354 = vmatmul.bf16.gmra.mxu0 %v335
      %v355 = vpop.f32.mrf.mxu0
      %v356 = vadd.f32 0.0, %v355
      %v357 = vpop.f32.mrf.mxu0
      %v358 = vadd.f32 0.0, %v357
      %359 = vmatmul.bf16.gmra.mxu0 %v338
      %v360 = vpop.f32.mrf.mxu0
      %v361 = vadd.f32 0.0, %v360
      %v362 = vpop.f32.mrf.mxu0
      %v363 = vadd.f32 0.0, %v362
      %364 = vmatmul.bf16.gmra.mxu0 %v341
      %v365 = vpop.f32.mrf.mxu0
      %v366 = vadd.f32 0.0, %v365
      %v367 = vpop.f32.mrf.mxu0
      %v368 = vadd.f32 0.0, %v367
      %369 = vmatmul.bf16.gmra.mxu0 %v344
      %v370 = vpop.f32.mrf.mxu0
      %v371 = vadd.f32 0.0, %v370
      %v372 = vpop.f32.mrf.mxu0
      %v373 = vadd.f32 0.0, %v372
      %374 = vdwg.mxu0
      %375 = vmatpush.bf16.msra.mxu0 0
      %376 = vmatpush.bf16.msra.mxu0 0
      %377 = vmatpush.bf16.msra.mxu0 0
      %378 = vmatpush.bf16.msra.mxu0 0
      %379 = vmatpush.bf16.msra.mxu0 0
      %380 = vmatpush.bf16.msra.mxu0 %v326
      %381 = vmatpush.bf16.msra.mxu0 %v324
      %382 = vmatpush.bf16.msra.mxu0 %v322
      %383 = vmatmul.bf16.gmra.mxu0 %v335
      %v384 = vpop.f32.mrf.mxu0
      %v385 = vadd.f32 0.0, %v384
      %v386 = vpop.f32.mrf.mxu0
      %v387 = vadd.f32 0.0, %v386
      %388 = vmatmul.bf16.gmra.mxu0 %v338
      %v389 = vpop.f32.mrf.mxu0
      %v390 = vadd.f32 0.0, %v389
      %v391 = vpop.f32.mrf.mxu0
      %v392 = vadd.f32 0.0, %v391
      %393 = vmatmul.bf16.gmra.mxu0 %v341
      %v394 = vpop.f32.mrf.mxu0
      %v395 = vadd.f32 0.0, %v394
      %v396 = vpop.f32.mrf.mxu0
      %v397 = vadd.f32 0.0, %v396
      %398 = vmatmul.bf16.gmra.mxu0 %v344
      %v399 = vpop.f32.mrf.mxu0
      %v400 = vadd.f32 0.0, %v399
      %v401 = vpop.f32.mrf.mxu0
      %v402 = vadd.f32 0.0, %v401
      %403 = vdwg.mxu0
      %v405 = vunpack.c.l.b16 %v261
      %v406 = vpack.c.b16 %v291, %v405
      %v407 = vpack.c.b16 %v293, %v292
      %v408 = vpack.c.b16 %v295, %v294
      %v409 = vpack.c.b16 %v297, %v296
      %v416 = vunpack.c.l.b16 %v269
      %v417 = vunpack.c.h.b16 %v269
      %v418 = vunpack.c.l.b16 %v270
      %v419 = vunpack.c.h.b16 %v270
      %v420 = vunpack.c.l.b16 %v271
      %v421 = vunpack.c.h.b16 %v271
      %v422 = vunpack.c.l.b16 %v272
      %v423 = vunpack.c.h.b16 %v272
      %v424 = vunpack.c.l.b16 %v273
      %v425 = vunpack.c.h.b16 %v273
      %v426 = vunpack.c.l.b16 %v274
      %v427 = vunpack.c.h.b16 %v274
      %v428 = vpack.c.b16 %v418, %v416
      %v429 = vpack.c.b16 %v419, %v417
      %v430 = vpack.c.b16 %v422, %v420
      %v431 = vpack.c.b16 %v423, %v421
      %v432 = vpack.c.b16 %v426, %v424
      %v433 = vpack.c.b16 %v427, %v425
      %v441 = vsel %vm333, %v406, 0
      %v444 = vsel %vm333, %v407, 0
      %v447 = vsel %vm333, %v408, 0
      %v450 = vsel %vm333, %v409, 0
      %452 = vmatpush.bf16.msra.mxu0 0
      %453 = vmatpush.bf16.msra.mxu0 0
      %454 = vmatpush.bf16.msra.mxu0 0
      %455 = vmatpush.bf16.msra.mxu0 0
      %456 = vmatpush.bf16.msra.mxu0 0
      %457 = vmatpush.bf16.msra.mxu0 %v432
      %458 = vmatpush.bf16.msra.mxu0 %v430
      %459 = vmatpush.bf16.msra.mxu0 %v428
      %460 = vmatmul.bf16.gmra.mxu0 %v441
      %v461 = vpop.f32.mrf.mxu0
      %v462 = vadd.f32 %v356, %v461
      %v463 = vpop.f32.mrf.mxu0
      %v464 = vadd.f32 %v358, %v463
      %465 = vmatmul.bf16.gmra.mxu0 %v444
      %v466 = vpop.f32.mrf.mxu0
      %v467 = vadd.f32 %v361, %v466
      %v468 = vpop.f32.mrf.mxu0
      %v469 = vadd.f32 %v363, %v468
      %470 = vmatmul.bf16.gmra.mxu0 %v447
      %v471 = vpop.f32.mrf.mxu0
      %v472 = vadd.f32 %v366, %v471
      %v473 = vpop.f32.mrf.mxu0
      %v474 = vadd.f32 %v368, %v473
      %475 = vmatmul.bf16.gmra.mxu0 %v450
      %v476 = vpop.f32.mrf.mxu0
      %v477 = vadd.f32 %v371, %v476
      %v478 = vpop.f32.mrf.mxu0
      %v479 = vadd.f32 %v373, %v478
      %480 = vdwg.mxu0
      %481 = vmatpush.bf16.msra.mxu0 0
      %482 = vmatpush.bf16.msra.mxu0 0
      %483 = vmatpush.bf16.msra.mxu0 0
      %484 = vmatpush.bf16.msra.mxu0 0
      %485 = vmatpush.bf16.msra.mxu0 0
      %486 = vmatpush.bf16.msra.mxu0 %v433
      %487 = vmatpush.bf16.msra.mxu0 %v431
      %488 = vmatpush.bf16.msra.mxu0 %v429
      %489 = vmatmul.bf16.gmra.mxu0 %v441
      %v490 = vpop.f32.mrf.mxu0
      %v491 = vadd.f32 %v385, %v490
      %v492 = vpop.f32.mrf.mxu0
      %v493 = vadd.f32 %v387, %v492
      %494 = vmatmul.bf16.gmra.mxu0 %v444
      %v495 = vpop.f32.mrf.mxu0
      %v496 = vadd.f32 %v390, %v495
      %v497 = vpop.f32.mrf.mxu0
      %v498 = vadd.f32 %v392, %v497
      %499 = vmatmul.bf16.gmra.mxu0 %v447
      %v500 = vpop.f32.mrf.mxu0
      %v501 = vadd.f32 %v395, %v500
      %v502 = vpop.f32.mrf.mxu0
      %v503 = vadd.f32 %v397, %v502
      %504 = vmatmul.bf16.gmra.mxu0 %v450
      %v505 = vpop.f32.mrf.mxu0
      %v506 = vadd.f32 %v400, %v505
      %v507 = vpop.f32.mrf.mxu0
      %v508 = vadd.f32 %v402, %v507
      %509 = vdwg.mxu0
      %v510 = vld [vmem:[%s246 + $0x8] sm:$0xf]
      %v511 = vld [vmem:[%s246 + $0xc] sm:$0xf]
      %v512 = vld [vmem:[%s246 + $0x10] sm:$0xf]
      %v513 = vld [vmem:[%s246 + $0x14] sm:$0xf]
      %v514 = vld [vmem:[%s246 + $0x18] sm:$0xf]
      %v515 = vld [vmem:[%s246 + $0x1c] sm:$0xf]
      %v516 = vld [vmem:[%s246 + $0x20] sm:$0xf]
      %v517 = vld [vmem:[%s246 + $0x24] sm:$0xf]
      %s518 = scalar_lea.vmem %s1, 96
      %v519 = vld [vmem:[%s518] sm:$0xff]
      %v520 = vld [vmem:[%s518 + $0x8] sm:$0xff]
      %v521 = vld [vmem:[%s518 + $0x10] sm:$0xff]
      %v522 = vld [vmem:[%s518 + $0x18] sm:$0xff]
      %v523 = vld [vmem:[%s518 + $0x20] sm:$0xff]
      %v524 = vld [vmem:[%s518 + $0x28] sm:$0xff]
      %v533 = vunpack.c.l.b16 %v510
      %v534 = vunpack.c.l.b16 %v511
      %v535 = vunpack.c.l.b16 %v512
      %v536 = vunpack.c.l.b16 %v513
      %v537 = vunpack.c.l.b16 %v514
      %v538 = vunpack.c.l.b16 %v515
      %v539 = vunpack.c.l.b16 %v516
      %v540 = vunpack.c.l.b16 %v517
      %v541 = vpack.c.b16 %v534, %v533
      %v542 = vpack.c.b16 %v536, %v535
      %v543 = vpack.c.b16 %v538, %v537
      %v544 = vpack.c.b16 %v540, %v539
      %v551 = vunpack.c.l.b16 %v519
      %v552 = vunpack.c.h.b16 %v519
      %v553 = vunpack.c.l.b16 %v520
      %v554 = vunpack.c.h.b16 %v520
      %v555 = vunpack.c.l.b16 %v521
      %v556 = vunpack.c.h.b16 %v521
      %v557 = vunpack.c.l.b16 %v522
      %v558 = vunpack.c.h.b16 %v522
      %v559 = vunpack.c.l.b16 %v523
      %v560 = vunpack.c.h.b16 %v523
      %v561 = vunpack.c.l.b16 %v524
      %v562 = vunpack.c.h.b16 %v524
      %v563 = vpack.c.b16 %v553, %v551
      %v564 = vpack.c.b16 %v554, %v552
      %v565 = vpack.c.b16 %v557, %v555
      %v566 = vpack.c.b16 %v558, %v556
      %v567 = vpack.c.b16 %v561, %v559
      %v568 = vpack.c.b16 %v562, %v560
      %v576 = vsel %vm333, %v541, 0
      %v579 = vsel %vm333, %v542, 0
      %v582 = vsel %vm333, %v543, 0
      %v585 = vsel %vm333, %v544, 0
      %587 = vmatpush.bf16.msra.mxu0 0
      %588 = vmatpush.bf16.msra.mxu0 0
      %589 = vmatpush.bf16.msra.mxu0 0
      %590 = vmatpush.bf16.msra.mxu0 0
      %591 = vmatpush.bf16.msra.mxu0 0
      %592 = vmatpush.bf16.msra.mxu0 %v567
      %593 = vmatpush.bf16.msra.mxu0 %v565
      %594 = vmatpush.bf16.msra.mxu0 %v563
      %595 = vmatmul.bf16.gmra.mxu0 %v576
      %v596 = vpop.f32.mrf.mxu0
      %v597 = vadd.f32 0.0, %v596
      %v598 = vpop.f32.mrf.mxu0
      %v599 = vadd.f32 0.0, %v598
      %600 = vmatmul.bf16.gmra.mxu0 %v579
      %v601 = vpop.f32.mrf.mxu0
      %v602 = vadd.f32 0.0, %v601
      %v603 = vpop.f32.mrf.mxu0
      %v604 = vadd.f32 0.0, %v603
      %605 = vmatmul.bf16.gmra.mxu0 %v582
      %v606 = vpop.f32.mrf.mxu0
      %v607 = vadd.f32 0.0, %v606
      %v608 = vpop.f32.mrf.mxu0
      %v609 = vadd.f32 0.0, %v608
      %610 = vmatmul.bf16.gmra.mxu0 %v585
      %v611 = vpop.f32.mrf.mxu0
      %v612 = vadd.f32 0.0, %v611
      %v613 = vpop.f32.mrf.mxu0
      %v614 = vadd.f32 0.0, %v613
      %615 = vdwg.mxu0
      %616 = vmatpush.bf16.msra.mxu0 0
      %617 = vmatpush.bf16.msra.mxu0 0
      %618 = vmatpush.bf16.msra.mxu0 0
      %619 = vmatpush.bf16.msra.mxu0 0
      %620 = vmatpush.bf16.msra.mxu0 0
      %621 = vmatpush.bf16.msra.mxu0 %v568
      %622 = vmatpush.bf16.msra.mxu0 %v566
      %623 = vmatpush.bf16.msra.mxu0 %v564
      %624 = vmatmul.bf16.gmra.mxu0 %v576
      %v625 = vpop.f32.mrf.mxu0
      %v626 = vadd.f32 0.0, %v625
      %v627 = vpop.f32.mrf.mxu0
      %v628 = vadd.f32 0.0, %v627
      %629 = vmatmul.bf16.gmra.mxu0 %v579
      %v630 = vpop.f32.mrf.mxu0
      %v631 = vadd.f32 0.0, %v630
      %v632 = vpop.f32.mrf.mxu0
      %v633 = vadd.f32 0.0, %v632
      %634 = vmatmul.bf16.gmra.mxu0 %v582
      %v635 = vpop.f32.mrf.mxu0
      %v636 = vadd.f32 0.0, %v635
      %v637 = vpop.f32.mrf.mxu0
      %v638 = vadd.f32 0.0, %v637
      %639 = vmatmul.bf16.gmra.mxu0 %v585
      %v640 = vpop.f32.mrf.mxu0
      %v641 = vadd.f32 0.0, %v640
      %v642 = vpop.f32.mrf.mxu0
      %v643 = vadd.f32 0.0, %v642
      %644 = vdwg.mxu0
      %v645 = vadd.f32 %v462, %v597
      %v646 = vadd.f32 %v491, %v626
      %v647 = vadd.f32 %v464, %v599
      %v648 = vadd.f32 %v493, %v628
      %v649 = vadd.f32 %v467, %v602
      %v650 = vadd.f32 %v496, %v631
      %v651 = vadd.f32 %v469, %v604
      %v652 = vadd.f32 %v498, %v633
      %v653 = vadd.f32 %v472, %v607
      %v654 = vadd.f32 %v501, %v636
      %v655 = vadd.f32 %v474, %v609
      %v656 = vadd.f32 %v503, %v638
      %v657 = vadd.f32 %v477, %v612
      %v658 = vadd.f32 %v506, %v641
      %v659 = vadd.f32 %v479, %v614
      %v660 = vadd.f32 %v508, %v643
      %v661 = vmax.f32 %v645, %v646
      %v662 = vmax.f32 %v647, %v648
      %v663 = vmax.f32 %v649, %v650
      %v664 = vmax.f32 %v651, %v652
      %v665 = vmax.f32 %v653, %v654
      %v666 = vmax.f32 %v655, %v656
      %v667 = vmax.f32 %v657, %v658
      %v668 = vmax.f32 %v659, %v660
      %v669 = vperm.slane %v253, 0
      %v670 = vadd.f32 %v661, %v669
      %v671 = vadd.f32 %v662, %v669
      %v672 = vadd.f32 %v663, %v669
      %v673 = vadd.f32 %v664, %v669
      %v674 = vadd.f32 %v665, %v669
      %v675 = vadd.f32 %v666, %v669
      %v676 = vadd.f32 %v667, %v669
      %v677 = vadd.f32 %v668, %v669
      %v678 = vmax.f32 %v670, 0.0
      %v679 = vmax.f32 %v671, 0.0
      %v680 = vmax.f32 %v672, 0.0
      %v681 = vmax.f32 %v673, 0.0
      %v682 = vmax.f32 %v674, 0.0
      %v683 = vmax.f32 %v675, 0.0
      %v684 = vmax.f32 %v676, 0.0
      %v685 = vmax.f32 %v677, 0.0
      %v686 = vmax.f32 %v678, %v679
      %v687 = vmax.f32 %v680, %v681
      %v688 = vmax.f32 %v682, %v683
      %v689 = vmax.f32 %v684, %v685
      %690 = vst [vmem:[#allocation2 + $0x8] sm:$0xff] %v686
      %691 = vst [vmem:[#allocation2 + $0x10] sm:$0xff] %v687
      %692 = vst [vmem:[#allocation2 + $0x18] sm:$0xff] %v688
      %693 = vst [vmem:[#allocation2 + $0x20] sm:$0xff] %v689
      %v694 = vld [vmem:[%s246 + $0x20] sm:$0xf]
      %v695 = vld [vmem:[%s246 + $0x24] sm:$0xf]
      %v696 = vld [vmem:[%s246 + $0x28] sm:$0xf]
      %v697 = vld [vmem:[%s246 + $0x2c] sm:$0xf]
      %v698 = vld [vmem:[%s246 + $0x30] sm:$0xf]
      %v699 = vld [vmem:[%s246 + $0x34] sm:$0xf]
      %v700 = vld [vmem:[%s246 + $0x38] sm:$0xf]
      %v701 = vld [vmem:[%s246 + $0x3c] sm:$0xf]
      %v702 = vld [vmem:[%s1] sm:$0xff]
      %v703 = vld [vmem:[%s1 + $0x8] sm:$0xff]
      %v704 = vld [vmem:[%s1 + $0x10] sm:$0xff]
      %v705 = vld [vmem:[%s1 + $0x18] sm:$0xff]
      %v706 = vld [vmem:[%s1 + $0x20] sm:$0xff]
      %v707 = vld [vmem:[%s1 + $0x28] sm:$0xff]
      %v708 = vld [vmem:[%s246 + $0x40] sm:$0xf]
      %v709 = vld [vmem:[%s276] sm:$0xff]
      %v710 = vld [vmem:[%s276 + $0x8] sm:$0xff]
      %v711 = vld [vmem:[%s276 + $0x10] sm:$0xff]
      %v712 = vld [vmem:[%s276 + $0x18] sm:$0xff]
      %v713 = vld [vmem:[%s276 + $0x20] sm:$0xff]
      %v714 = vld [vmem:[%s276 + $0x28] sm:$0xff]
      %v723 = vunpack.c.l.b16 %v695
      %v724 = vunpack.c.l.b16 %v696
      %v725 = vunpack.c.l.b16 %v697
      %v726 = vunpack.c.l.b16 %v698
      %v727 = vunpack.c.l.b16 %v699
      %v728 = vunpack.c.l.b16 %v700
      %v729 = vunpack.c.l.b16 %v701
      %v730 = vunpack.c.l.b16 %v708
      %v731 = vpack.c.b16 %v724, %v723
      %v732 = vpack.c.b16 %v726, %v725
      %v733 = vpack.c.b16 %v728, %v727
      %v734 = vpack.c.b16 %v730, %v729
      %v741 = vunpack.c.l.b16 %v709
      %v742 = vunpack.c.h.b16 %v709
      %v743 = vunpack.c.l.b16 %v710
      %v744 = vunpack.c.h.b16 %v710
      %v745 = vunpack.c.l.b16 %v711
      %v746 = vunpack.c.h.b16 %v711
      %v747 = vunpack.c.l.b16 %v712
      %v748 = vunpack.c.h.b16 %v712
      %v749 = vunpack.c.l.b16 %v713
      %v750 = vunpack.c.h.b16 %v713
      %v751 = vunpack.c.l.b16 %v714
      %v752 = vunpack.c.h.b16 %v714
      %v753 = vpack.c.b16 %v743, %v741
      %v754 = vpack.c.b16 %v744, %v742
      %v755 = vpack.c.b16 %v747, %v745
      %v756 = vpack.c.b16 %v748, %v746
      %v757 = vpack.c.b16 %v751, %v749
      %v758 = vpack.c.b16 %v752, %v750
      %v766 = vsel %vm333, %v731, 0
      %v769 = vsel %vm333, %v732, 0
      %v772 = vsel %vm333, %v733, 0
      %v775 = vsel %vm333, %v734, 0
      %777 = vmatpush.bf16.msra.mxu0 0
      %778 = vmatpush.bf16.msra.mxu0 0
      %779 = vmatpush.bf16.msra.mxu0 0
      %780 = vmatpush.bf16.msra.mxu0 0
      %781 = vmatpush.bf16.msra.mxu0 0
      %782 = vmatpush.bf16.msra.mxu0 %v757
      %783 = vmatpush.bf16.msra.mxu0 %v755
      %784 = vmatpush.bf16.msra.mxu0 %v753
      %785 = vmatmul.bf16.gmra.mxu0 %v766
      %v786 = vpop.f32.mrf.mxu0
      %v787 = vadd.f32 0.0, %v786
      %v788 = vpop.f32.mrf.mxu0
      %v789 = vadd.f32 0.0, %v788
      %790 = vmatmul.bf16.gmra.mxu0 %v769
      %v791 = vpop.f32.mrf.mxu0
      %v792 = vadd.f32 0.0, %v791
      %v793 = vpop.f32.mrf.mxu0
      %v794 = vadd.f32 0.0, %v793
      %795 = vmatmul.bf16.gmra.mxu0 %v772
      %v796 = vpop.f32.mrf.mxu0
      %v797 = vadd.f32 0.0, %v796
      %v798 = vpop.f32.mrf.mxu0
      %v799 = vadd.f32 0.0, %v798
      %800 = vmatmul.bf16.gmra.mxu0 %v775
      %v801 = vpop.f32.mrf.mxu0
      %v802 = vadd.f32 0.0, %v801
      %v803 = vpop.f32.mrf.mxu0
      %v804 = vadd.f32 0.0, %v803
      %805 = vdwg.mxu0
      %806 = vmatpush.bf16.msra.mxu0 0
      %807 = vmatpush.bf16.msra.mxu0 0
      %808 = vmatpush.bf16.msra.mxu0 0
      %809 = vmatpush.bf16.msra.mxu0 0
      %810 = vmatpush.bf16.msra.mxu0 0
      %811 = vmatpush.bf16.msra.mxu0 %v758
      %812 = vmatpush.bf16.msra.mxu0 %v756
      %813 = vmatpush.bf16.msra.mxu0 %v754
      %814 = vmatmul.bf16.gmra.mxu0 %v766
      %v815 = vpop.f32.mrf.mxu0
      %v816 = vadd.f32 0.0, %v815
      %v817 = vpop.f32.mrf.mxu0
      %v818 = vadd.f32 0.0, %v817
      %819 = vmatmul.bf16.gmra.mxu0 %v769
      %v820 = vpop.f32.mrf.mxu0
      %v821 = vadd.f32 0.0, %v820
      %v822 = vpop.f32.mrf.mxu0
      %v823 = vadd.f32 0.0, %v822
      %824 = vmatmul.bf16.gmra.mxu0 %v772
      %v825 = vpop.f32.mrf.mxu0
      %v826 = vadd.f32 0.0, %v825
      %v827 = vpop.f32.mrf.mxu0
      %v828 = vadd.f32 0.0, %v827
      %829 = vmatmul.bf16.gmra.mxu0 %v775
      %v830 = vpop.f32.mrf.mxu0
      %v831 = vadd.f32 0.0, %v830
      %v832 = vpop.f32.mrf.mxu0
      %v833 = vadd.f32 0.0, %v832
      %834 = vdwg.mxu0
      %v836 = vunpack.c.l.b16 %v694
      %v837 = vpack.c.b16 %v723, %v836
      %v838 = vpack.c.b16 %v725, %v724
      %v839 = vpack.c.b16 %v727, %v726
      %v840 = vpack.c.b16 %v729, %v728
      %v847 = vunpack.c.l.b16 %v702
      %v848 = vunpack.c.h.b16 %v702
      %v849 = vunpack.c.l.b16 %v703
      %v850 = vunpack.c.h.b16 %v703
      %v851 = vunpack.c.l.b16 %v704
      %v852 = vunpack.c.h.b16 %v704
      %v853 = vunpack.c.l.b16 %v705
      %v854 = vunpack.c.h.b16 %v705
      %v855 = vunpack.c.l.b16 %v706
      %v856 = vunpack.c.h.b16 %v706
      %v857 = vunpack.c.l.b16 %v707
      %v858 = vunpack.c.h.b16 %v707
      %v859 = vpack.c.b16 %v849, %v847
      %v860 = vpack.c.b16 %v850, %v848
      %v861 = vpack.c.b16 %v853, %v851
      %v862 = vpack.c.b16 %v854, %v852
      %v863 = vpack.c.b16 %v857, %v855
      %v864 = vpack.c.b16 %v858, %v856
      %v872 = vsel %vm333, %v837, 0
      %v875 = vsel %vm333, %v838, 0
      %v878 = vsel %vm333, %v839, 0
      %v881 = vsel %vm333, %v840, 0
      %883 = vmatpush.bf16.msra.mxu0 0
      %884 = vmatpush.bf16.msra.mxu0 0
      %885 = vmatpush.bf16.msra.mxu0 0
      %886 = vmatpush.bf16.msra.mxu0 0
      %887 = vmatpush.bf16.msra.mxu0 0
      %888 = vmatpush.bf16.msra.mxu0 %v863
      %889 = vmatpush.bf16.msra.mxu0 %v861
      %890 = vmatpush.bf16.msra.mxu0 %v859
      %891 = vmatmul.bf16.gmra.mxu0 %v872
      %v892 = vpop.f32.mrf.mxu0
      %v893 = vadd.f32 %v787, %v892
      %v894 = vpop.f32.mrf.mxu0
      %v895 = vadd.f32 %v789, %v894
      %896 = vmatmul.bf16.gmra.mxu0 %v875
      %v897 = vpop.f32.mrf.mxu0
      %v898 = vadd.f32 %v792, %v897
      %v899 = vpop.f32.mrf.mxu0
      %v900 = vadd.f32 %v794, %v899
      %901 = vmatmul.bf16.gmra.mxu0 %v878
      %v902 = vpop.f32.mrf.mxu0
      %v903 = vadd.f32 %v797, %v902
      %v904 = vpop.f32.mrf.mxu0
      %v905 = vadd.f32 %v799, %v904
      %906 = vmatmul.bf16.gmra.mxu0 %v881
      %v907 = vpop.f32.mrf.mxu0
      %v908 = vadd.f32 %v802, %v907
      %v909 = vpop.f32.mrf.mxu0
      %v910 = vadd.f32 %v804, %v909
      %911 = vdwg.mxu0
      %912 = vmatpush.bf16.msra.mxu0 0
      %913 = vmatpush.bf16.msra.mxu0 0
      %914 = vmatpush.bf16.msra.mxu0 0
      %915 = vmatpush.bf16.msra.mxu0 0
      %916 = vmatpush.bf16.msra.mxu0 0
      %917 = vmatpush.bf16.msra.mxu0 %v864
      %918 = vmatpush.bf16.msra.mxu0 %v862
      %919 = vmatpush.bf16.msra.mxu0 %v860
      %920 = vmatmul.bf16.gmra.mxu0 %v872
      %v921 = vpop.f32.mrf.mxu0
      %v922 = vadd.f32 %v816, %v921
      %v923 = vpop.f32.mrf.mxu0
      %v924 = vadd.f32 %v818, %v923
      %925 = vmatmul.bf16.gmra.mxu0 %v875
      %v926 = vpop.f32.mrf.mxu0
      %v927 = vadd.f32 %v821, %v926
      %v928 = vpop.f32.mrf.mxu0
      %v929 = vadd.f32 %v823, %v928
      %930 = vmatmul.bf16.gmra.mxu0 %v878
      %v931 = vpop.f32.mrf.mxu0
      %v932 = vadd.f32 %v826, %v931
      %v933 = vpop.f32.mrf.mxu0
      %v934 = vadd.f32 %v828, %v933
      %935 = vmatmul.bf16.gmra.mxu0 %v881
      %v936 = vpop.f32.mrf.mxu0
      %v937 = vadd.f32 %v831, %v936
      %v938 = vpop.f32.mrf.mxu0
      %v939 = vadd.f32 %v833, %v938
      %940 = vdwg.mxu0
      %v941 = vld [vmem:[%s246 + $0x28] sm:$0xf]
      %v942 = vld [vmem:[%s246 + $0x2c] sm:$0xf]
      %v943 = vld [vmem:[%s246 + $0x30] sm:$0xf]
      %v944 = vld [vmem:[%s246 + $0x34] sm:$0xf]
      %v945 = vld [vmem:[%s246 + $0x38] sm:$0xf]
      %v946 = vld [vmem:[%s246 + $0x3c] sm:$0xf]
      %v947 = vld [vmem:[%s246 + $0x40] sm:$0xf]
      %v948 = vld [vmem:[%s246 + $0x44] sm:$0xf]
      %v949 = vld [vmem:[%s518] sm:$0xff]
      %v950 = vld [vmem:[%s518 + $0x8] sm:$0xff]
      %v951 = vld [vmem:[%s518 + $0x10] sm:$0xff]
      %v952 = vld [vmem:[%s518 + $0x18] sm:$0xff]
      %v953 = vld [vmem:[%s518 + $0x20] sm:$0xff]
      %v954 = vld [vmem:[%s518 + $0x28] sm:$0xff]
      %v963 = vunpack.c.l.b16 %v941
      %v964 = vunpack.c.l.b16 %v942
      %v965 = vunpack.c.l.b16 %v943
      %v966 = vunpack.c.l.b16 %v944
      %v967 = vunpack.c.l.b16 %v945
      %v968 = vunpack.c.l.b16 %v946
      %v969 = vunpack.c.l.b16 %v947
      %v970 = vunpack.c.l.b16 %v948
      %v971 = vpack.c.b16 %v964, %v963
      %v972 = vpack.c.b16 %v966, %v965
      %v973 = vpack.c.b16 %v968, %v967
      %v974 = vpack.c.b16 %v970, %v969
      %v981 = vunpack.c.l.b16 %v949
      %v982 = vunpack.c.h.b16 %v949
      %v983 = vunpack.c.l.b16 %v950
      %v984 = vunpack.c.h.b16 %v950
      %v985 = vunpack.c.l.b16 %v951
      %v986 = vunpack.c.h.b16 %v951
      %v987 = vunpack.c.l.b16 %v952
      %v988 = vunpack.c.h.b16 %v952
      %v989 = vunpack.c.l.b16 %v953
      %v990 = vunpack.c.h.b16 %v953
      %v991 = vunpack.c.l.b16 %v954
      %v992 = vunpack.c.h.b16 %v954
      %v993 = vpack.c.b16 %v983, %v981
      %v994 = vpack.c.b16 %v984, %v982
      %v995 = vpack.c.b16 %v987, %v985
      %v996 = vpack.c.b16 %v988, %v986
      %v997 = vpack.c.b16 %v991, %v989
      %v998 = vpack.c.b16 %v992, %v990
      %v1006 = vsel %vm333, %v971, 0
      %v1009 = vsel %vm333, %v972, 0
      %v1012 = vsel %vm333, %v973, 0
      %v1015 = vsel %vm333, %v974, 0
      %1017 = vmatpush.bf16.msra.mxu0 0
      %1018 = vmatpush.bf16.msra.mxu0 0
      %1019 = vmatpush.bf16.msra.mxu0 0
      %1020 = vmatpush.bf16.msra.mxu0 0
      %1021 = vmatpush.bf16.msra.mxu0 0
      %1022 = vmatpush.bf16.msra.mxu0 %v997
      %1023 = vmatpush.bf16.msra.mxu0 %v995
      %1024 = vmatpush.bf16.msra.mxu0 %v993
      %1025 = vmatmul.bf16.gmra.mxu0 %v1006
      %v1026 = vpop.f32.mrf.mxu0
      %v1027 = vadd.f32 0.0, %v1026
      %v1028 = vpop.f32.mrf.mxu0
      %v1029 = vadd.f32 0.0, %v1028
      %1030 = vmatmul.bf16.gmra.mxu0 %v1009
      %v1031 = vpop.f32.mrf.mxu0
      %v1032 = vadd.f32 0.0, %v1031
      %v1033 = vpop.f32.mrf.mxu0
      %v1034 = vadd.f32 0.0, %v1033
      %1035 = vmatmul.bf16.gmra.mxu0 %v1012
      %v1036 = vpop.f32.mrf.mxu0
      %v1037 = vadd.f32 0.0, %v1036
      %v1038 = vpop.f32.mrf.mxu0
      %v1039 = vadd.f32 0.0, %v1038
      %1040 = vmatmul.bf16.gmra.mxu0 %v1015
      %v1041 = vpop.f32.mrf.mxu0
      %v1042 = vadd.f32 0.0, %v1041
      %v1043 = vpop.f32.mrf.mxu0
      %v1044 = vadd.f32 0.0, %v1043
      %1045 = vdwg.mxu0
      %1046 = vmatpush.bf16.msra.mxu0 0
      %1047 = vmatpush.bf16.msra.mxu0 0
      %1048 = vmatpush.bf16.msra.mxu0 0
      %1049 = vmatpush.bf16.msra.mxu0 0
      %1050 = vmatpush.bf16.msra.mxu0 0
      %1051 = vmatpush.bf16.msra.mxu0 %v998
      %1052 = vmatpush.bf16.msra.mxu0 %v996
      %1053 = vmatpush.bf16.msra.mxu0 %v994
      %1054 = vmatmul.bf16.gmra.mxu0 %v1006
      %v1055 = vpop.f32.mrf.mxu0
      %v1056 = vadd.f32 0.0, %v1055
      %v1057 = vpop.f32.mrf.mxu0
      %v1058 = vadd.f32 0.0, %v1057
      %1059 = vmatmul.bf16.gmra.mxu0 %v1009
      %v1060 = vpop.f32.mrf.mxu0
      %v1061 = vadd.f32 0.0, %v1060
      %v1062 = vpop.f32.mrf.mxu0
      %v1063 = vadd.f32 0.0, %v1062
      %1064 = vmatmul.bf16.gmra.mxu0 %v1012
      %v1065 = vpop.f32.mrf.mxu0
      %v1066 = vadd.f32 0.0, %v1065
      %v1067 = vpop.f32.mrf.mxu0
      %v1068 = vadd.f32 0.0, %v1067
      %1069 = vmatmul.bf16.gmra.mxu0 %v1015
      %v1070 = vpop.f32.mrf.mxu0
      %v1071 = vadd.f32 0.0, %v1070
      %v1072 = vpop.f32.mrf.mxu0
      %v1073 = vadd.f32 0.0, %v1072
      %1074 = vdwg.mxu0
      %v1075 = vadd.f32 %v893, %v1027
      %v1076 = vadd.f32 %v922, %v1056
      %v1077 = vadd.f32 %v895, %v1029
      %v1078 = vadd.f32 %v924, %v1058
      %v1079 = vadd.f32 %v898, %v1032
      %v1080 = vadd.f32 %v927, %v1061
      %v1081 = vadd.f32 %v900, %v1034
      %v1082 = vadd.f32 %v929, %v1063
      %v1083 = vadd.f32 %v903, %v1037
      %v1084 = vadd.f32 %v932, %v1066
      %v1085 = vadd.f32 %v905, %v1039
      %v1086 = vadd.f32 %v934, %v1068
      %v1087 = vadd.f32 %v908, %v1042
      %v1088 = vadd.f32 %v937, %v1071
      %v1089 = vadd.f32 %v910, %v1044
      %v1090 = vadd.f32 %v939, %v1073
      %v1091 = vmax.f32 %v1075, %v1076
      %v1092 = vmax.f32 %v1077, %v1078
      %v1093 = vmax.f32 %v1079, %v1080
      %v1094 = vmax.f32 %v1081, %v1082
      %v1095 = vmax.f32 %v1083, %v1084
      %v1096 = vmax.f32 %v1085, %v1086
      %v1097 = vmax.f32 %v1087, %v1088
      %v1098 = vmax.f32 %v1089, %v1090
      %v1099 = vadd.f32 %v1091, %v669
      %v1100 = vadd.f32 %v1092, %v669
      %v1101 = vadd.f32 %v1093, %v669
      %v1102 = vadd.f32 %v1094, %v669
      %v1103 = vadd.f32 %v1095, %v669
      %v1104 = vadd.f32 %v1096, %v669
      %v1105 = vadd.f32 %v1097, %v669
      %v1106 = vadd.f32 %v1098, %v669
      %v1107 = vmax.f32 %v1099, 0.0
      %v1108 = vmax.f32 %v1100, 0.0
      %v1109 = vmax.f32 %v1101, 0.0
      %v1110 = vmax.f32 %v1102, 0.0
      %v1111 = vmax.f32 %v1103, 0.0
      %v1112 = vmax.f32 %v1104, 0.0
      %v1113 = vmax.f32 %v1105, 0.0
      %v1114 = vmax.f32 %v1106, 0.0
      %v1115 = vmax.f32 %v1107, %v1108
      %v1116 = vmax.f32 %v1109, %v1110
      %v1117 = vmax.f32 %v1111, %v1112
      %v1118 = vmax.f32 %v1113, %v1114
      %1119 = vst [vmem:[#allocation2 + $0x28] sm:$0xff] %v1115
      %1120 = vst [vmem:[#allocation2 + $0x30] sm:$0xff] %v1116
      %1121 = vst [vmem:[#allocation2 + $0x38] sm:$0xff] %v1117
      %1122 = vst [vmem:[#allocation2 + $0x40] sm:$0xff] %v1118
      %v1123 = vld [vmem:[#allocation2] sm:$0xff]
      %v1124 = vld [vmem:[#allocation2 + $0x8] sm:$0xff]
      %v1125 = vld [vmem:[#allocation2 + $0x10] sm:$0xff]
      %v1126 = vld [vmem:[#allocation2 + $0x18] sm:$0xff]
      %v1127 = vld [vmem:[#allocation2 + $0x20] sm:$0xff]
      %v1128 = vld [vmem:[#allocation2 + $0x28] sm:$0xff]
      %v1129 = vld [vmem:[#allocation2 + $0x30] sm:$0xff]
      %v1130 = vld [vmem:[#allocation2 + $0x38] sm:$0xff]
      %v1131 = vpack.c.bf16 %v1124, %v1123
      %v1132 = vpack.c.bf16 %v1126, %v1125
      %v1133 = vpack.c.bf16 %v1128, %v1127
      %v1134 = vpack.c.bf16 %v1130, %v1129
      %v1135 = vld [vmem:[%s2] sm:$0xf]
      %v1136 = vld [vmem:[%s2 + $0x4] sm:$0xf]
      %v1137 = vld [vmem:[%s2 + $0x8] sm:$0xf]
      %v1138 = vld [vmem:[%s2 + $0xc] sm:$0xf]
      %v1139 = vld [vmem:[%s2 + $0x10] sm:$0xf]
      %v1140 = vld [vmem:[%s2 + $0x14] sm:$0xf]
      %v1141 = vld [vmem:[%s2 + $0x18] sm:$0xf]
      %v1142 = vld [vmem:[%s2 + $0x1c] sm:$0xf]
      %v1143 = vld [vmem:[%s2 + $0x20] sm:$0xf]
      %v1144 = vld [vmem:[%s2 + $0x24] sm:$0xf]
      %v1145 = vld [vmem:[%s2 + $0x28] sm:$0xf]
      %v1146 = vld [vmem:[%s2 + $0x2c] sm:$0xf]
      %v1147 = vld [vmem:[%s2 + $0x30] sm:$0xf]
      %v1148 = vld [vmem:[%s2 + $0x34] sm:$0xf]
      %v1149 = vld [vmem:[%s2 + $0x38] sm:$0xf]
      %v1150 = vld [vmem:[%s2 + $0x3c] sm:$0xf]
      %s1151 = scalar_lea.vmem %s2, 192
      %v1152 = vld [vmem:[%s1151] sm:$0xf]
      %v1153 = vld [vmem:[%s1151 + $0x4] sm:$0xf]
      %v1154 = vld [vmem:[%s1151 + $0x8] sm:$0xf]
      %v1155 = vld [vmem:[%s1151 + $0xc] sm:$0xf]
      %v1156 = vld [vmem:[%s1151 + $0x10] sm:$0xf]
      %v1157 = vld [vmem:[%s1151 + $0x14] sm:$0xf]
      %v1158 = vld [vmem:[%s1151 + $0x18] sm:$0xf]
      %v1159 = vld [vmem:[%s1151 + $0x1c] sm:$0xf]
      %v1160 = vld [vmem:[%s1151 + $0x20] sm:$0xf]
      %v1161 = vld [vmem:[%s1151 + $0x24] sm:$0xf]
      %v1162 = vld [vmem:[%s1151 + $0x28] sm:$0xf]
      %v1163 = vld [vmem:[%s1151 + $0x2c] sm:$0xf]
      %v1164 = vld [vmem:[%s1151 + $0x30] sm:$0xf]
      %v1165 = vld [vmem:[%s1151 + $0x34] sm:$0xf]
      %v1166 = vld [vmem:[%s1151 + $0x38] sm:$0xf]
      %v1167 = vld [vmem:[%s1151 + $0x3c] sm:$0xf]
      %v1168 = vld [vmem:[#allocation2 + $0x40] sm:$0xff]
      %v1169 = vpack.c.bf16 %v1125, %v1124
      %v1170 = vpack.c.bf16 %v1127, %v1126
      %v1171 = vpack.c.bf16 %v1129, %v1128
      %v1172 = vpack.c.bf16 %v1168, %v1130
      %s1173 = scalar_lea.vmem %s2, 64
      %v1174 = vld [vmem:[%s1173] sm:$0xf]
      %v1175 = vld [vmem:[%s1173 + $0x4] sm:$0xf]
      %v1176 = vld [vmem:[%s1173 + $0x8] sm:$0xf]
      %v1177 = vld [vmem:[%s1173 + $0xc] sm:$0xf]
      %v1178 = vld [vmem:[%s1173 + $0x10] sm:$0xf]
      %v1179 = vld [vmem:[%s1173 + $0x14] sm:$0xf]
      %v1180 = vld [vmem:[%s1173 + $0x18] sm:$0xf]
      %v1181 = vld [vmem:[%s1173 + $0x1c] sm:$0xf]
      %v1182 = vld [vmem:[%s1173 + $0x20] sm:$0xf]
      %v1183 = vld [vmem:[%s1173 + $0x24] sm:$0xf]
      %v1184 = vld [vmem:[%s1173 + $0x28] sm:$0xf]
      %v1185 = vld [vmem:[%s1173 + $0x2c] sm:$0xf]
      %v1186 = vld [vmem:[%s1173 + $0x30] sm:$0xf]
      %v1187 = vld [vmem:[%s1173 + $0x34] sm:$0xf]
      %v1188 = vld [vmem:[%s1173 + $0x38] sm:$0xf]
      %v1189 = vld [vmem:[%s1173 + $0x3c] sm:$0xf]
      %v1206 = vunpack.c.l.b16 %v1174
      %v1207 = vunpack.c.l.b16 %v1175
      %v1208 = vunpack.c.l.b16 %v1176
      %v1209 = vunpack.c.l.b16 %v1177
      %v1210 = vunpack.c.l.b16 %v1178
      %v1211 = vunpack.c.l.b16 %v1179
      %v1212 = vunpack.c.l.b16 %v1180
      %v1213 = vunpack.c.l.b16 %v1181
      %v1214 = vunpack.c.l.b16 %v1182
      %v1215 = vunpack.c.l.b16 %v1183
      %v1216 = vunpack.c.l.b16 %v1184
      %v1217 = vunpack.c.l.b16 %v1185
      %v1218 = vunpack.c.l.b16 %v1186
      %v1219 = vunpack.c.l.b16 %v1187
      %v1220 = vunpack.c.l.b16 %v1188
      %v1221 = vunpack.c.l.b16 %v1189
      %v1222 = vpack.c.b16 %v1207, %v1206
      %v1223 = vpack.c.b16 %v1209, %v1208
      %v1224 = vpack.c.b16 %v1211, %v1210
      %v1225 = vpack.c.b16 %v1213, %v1212
      %v1226 = vpack.c.b16 %v1215, %v1214
      %v1227 = vpack.c.b16 %v1217, %v1216
      %v1228 = vpack.c.b16 %v1219, %v1218
      %v1229 = vpack.c.b16 %v1221, %v1220
      %1238 = vmatpush.bf16.msra.mxu0 %v1229
      %1239 = vmatpush.bf16.msra.mxu0 %v1228
      %1240 = vmatpush.bf16.msra.mxu0 %v1227
      %1241 = vmatpush.bf16.msra.mxu0 %v1226
      %1242 = vmatpush.bf16.msra.mxu0 %v1225
      %1243 = vmatpush.bf16.msra.mxu0 %v1224
      %1244 = vmatpush.bf16.msra.mxu0 %v1223
      %1245 = vmatpush.bf16.msra.mxu0 %v1222
      %1246 = vmatmul.bf16.gmra.mxu0 %v1169
      %v1247 = vpop.f32.mrf.mxu0
      %v1248 = vadd.f32 0.0, %v1247
      %v1249 = vpop.f32.mrf.mxu0
      %v1250 = vadd.f32 0.0, %v1249
      %1251 = vmatmul.bf16.gmra.mxu0 %v1170
      %v1252 = vpop.f32.mrf.mxu0
      %v1253 = vadd.f32 0.0, %v1252
      %v1254 = vpop.f32.mrf.mxu0
      %v1255 = vadd.f32 0.0, %v1254
      %1256 = vmatmul.bf16.gmra.mxu0 %v1171
      %v1257 = vpop.f32.mrf.mxu0
      %v1258 = vadd.f32 0.0, %v1257
      %v1259 = vpop.f32.mrf.mxu0
      %v1260 = vadd.f32 0.0, %v1259
      %1261 = vmatmul.bf16.gmra.mxu0 %v1172
      %v1262 = vpop.f32.mrf.mxu0
      %v1263 = vadd.f32 0.0, %v1262
      %v1264 = vpop.f32.mrf.mxu0
      %v1265 = vadd.f32 0.0, %v1264
      %1266 = vdwg.mxu0
      %v1283 = vunpack.c.l.b16 %v1135
      %v1284 = vunpack.c.l.b16 %v1136
      %v1285 = vunpack.c.l.b16 %v1137
      %v1286 = vunpack.c.l.b16 %v1138
      %v1287 = vunpack.c.l.b16 %v1139
      %v1288 = vunpack.c.l.b16 %v1140
      %v1289 = vunpack.c.l.b16 %v1141
      %v1290 = vunpack.c.l.b16 %v1142
      %v1291 = vunpack.c.l.b16 %v1143
      %v1292 = vunpack.c.l.b16 %v1144
      %v1293 = vunpack.c.l.b16 %v1145
      %v1294 = vunpack.c.l.b16 %v1146
      %v1295 = vunpack.c.l.b16 %v1147
      %v1296 = vunpack.c.l.b16 %v1148
      %v1297 = vunpack.c.l.b16 %v1149
      %v1298 = vunpack.c.l.b16 %v1150
      %v1299 = vpack.c.b16 %v1284, %v1283
      %v1300 = vpack.c.b16 %v1286, %v1285
      %v1301 = vpack.c.b16 %v1288, %v1287
      %v1302 = vpack.c.b16 %v1290, %v1289
      %v1303 = vpack.c.b16 %v1292, %v1291
      %v1304 = vpack.c.b16 %v1294, %v1293
      %v1305 = vpack.c.b16 %v1296, %v1295
      %v1306 = vpack.c.b16 %v1298, %v1297
      %1315 = vmatpush.bf16.msra.mxu0 %v1306
      %1316 = vmatpush.bf16.msra.mxu0 %v1305
      %1317 = vmatpush.bf16.msra.mxu0 %v1304
      %1318 = vmatpush.bf16.msra.mxu0 %v1303
      %1319 = vmatpush.bf16.msra.mxu0 %v1302
      %1320 = vmatpush.bf16.msra.mxu0 %v1301
      %1321 = vmatpush.bf16.msra.mxu0 %v1300
      %1322 = vmatpush.bf16.msra.mxu0 %v1299
      %1323 = vmatmul.bf16.gmra.mxu0 %v1131
      %v1324 = vpop.f32.mrf.mxu0
      %v1325 = vadd.f32 %v1248, %v1324
      %v1326 = vpop.f32.mrf.mxu0
      %v1327 = vadd.f32 %v1250, %v1326
      %1328 = vmatmul.bf16.gmra.mxu0 %v1132
      %v1329 = vpop.f32.mrf.mxu0
      %v1330 = vadd.f32 %v1253, %v1329
      %v1331 = vpop.f32.mrf.mxu0
      %v1332 = vadd.f32 %v1255, %v1331
      %1333 = vmatmul.bf16.gmra.mxu0 %v1133
      %v1334 = vpop.f32.mrf.mxu0
      %v1335 = vadd.f32 %v1258, %v1334
      %v1336 = vpop.f32.mrf.mxu0
      %v1337 = vadd.f32 %v1260, %v1336
      %1338 = vmatmul.bf16.gmra.mxu0 %v1134
      %v1339 = vpop.f32.mrf.mxu0
      %v1340 = vadd.f32 %v1263, %v1339
      %v1341 = vpop.f32.mrf.mxu0
      %v1342 = vadd.f32 %v1265, %v1341
      %1343 = vdwg.mxu0
      %s1344 = scalar_lea.vmem %s2, 256
      %v1345 = vld [vmem:[%s1344] sm:$0xf]
      %v1346 = vld [vmem:[%s1344 + $0x4] sm:$0xf]
      %v1347 = vld [vmem:[%s1344 + $0x8] sm:$0xf]
      %v1348 = vld [vmem:[%s1344 + $0xc] sm:$0xf]
      %v1349 = vld [vmem:[%s1344 + $0x10] sm:$0xf]
      %v1350 = vld [vmem:[%s1344 + $0x14] sm:$0xf]
      %v1351 = vld [vmem:[%s1344 + $0x18] sm:$0xf]
      %v1352 = vld [vmem:[%s1344 + $0x1c] sm:$0xf]
      %v1353 = vld [vmem:[%s1344 + $0x20] sm:$0xf]
      %v1354 = vld [vmem:[%s1344 + $0x24] sm:$0xf]
      %v1355 = vld [vmem:[%s1344 + $0x28] sm:$0xf]
      %v1356 = vld [vmem:[%s1344 + $0x2c] sm:$0xf]
      %v1357 = vld [vmem:[%s1344 + $0x30] sm:$0xf]
      %v1358 = vld [vmem:[%s1344 + $0x34] sm:$0xf]
      %v1359 = vld [vmem:[%s1344 + $0x38] sm:$0xf]
      %v1360 = vld [vmem:[%s1344 + $0x3c] sm:$0xf]
      %v1377 = vunpack.c.l.b16 %v1345
      %v1378 = vunpack.c.l.b16 %v1346
      %v1379 = vunpack.c.l.b16 %v1347
      %v1380 = vunpack.c.l.b16 %v1348
      %v1381 = vunpack.c.l.b16 %v1349
      %v1382 = vunpack.c.l.b16 %v1350
      %v1383 = vunpack.c.l.b16 %v1351
      %v1384 = vunpack.c.l.b16 %v1352
      %v1385 = vunpack.c.l.b16 %v1353
      %v1386 = vunpack.c.l.b16 %v1354
      %v1387 = vunpack.c.l.b16 %v1355
      %v1388 = vunpack.c.l.b16 %v1356
      %v1389 = vunpack.c.l.b16 %v1357
      %v1390 = vunpack.c.l.b16 %v1358
      %v1391 = vunpack.c.l.b16 %v1359
      %v1392 = vunpack.c.l.b16 %v1360
      %v1393 = vpack.c.b16 %v1378, %v1377
      %v1394 = vpack.c.b16 %v1380, %v1379
      %v1395 = vpack.c.b16 %v1382, %v1381
      %v1396 = vpack.c.b16 %v1384, %v1383
      %v1397 = vpack.c.b16 %v1386, %v1385
      %v1398 = vpack.c.b16 %v1388, %v1387
      %v1399 = vpack.c.b16 %v1390, %v1389
      %v1400 = vpack.c.b16 %v1392, %v1391
      %1409 = vmatpush.bf16.msra.mxu0 %v1400
      %1410 = vmatpush.bf16.msra.mxu0 %v1399
      %1411 = vmatpush.bf16.msra.mxu0 %v1398
      %1412 = vmatpush.bf16.msra.mxu0 %v1397
      %1413 = vmatpush.bf16.msra.mxu0 %v1396
      %1414 = vmatpush.bf16.msra.mxu0 %v1395
      %1415 = vmatpush.bf16.msra.mxu0 %v1394
      %1416 = vmatpush.bf16.msra.mxu0 %v1393
      %1417 = vmatmul.bf16.gmra.mxu0 %v1169
      %v1418 = vpop.f32.mrf.mxu0
      %v1419 = vadd.f32 0.0, %v1418
      %v1420 = vpop.f32.mrf.mxu0
      %v1421 = vadd.f32 0.0, %v1420
      %1422 = vmatmul.bf16.gmra.mxu0 %v1170
      %v1423 = vpop.f32.mrf.mxu0
      %v1424 = vadd.f32 0.0, %v1423
      %v1425 = vpop.f32.mrf.mxu0
      %v1426 = vadd.f32 0.0, %v1425
      %1427 = vmatmul.bf16.gmra.mxu0 %v1171
      %v1428 = vpop.f32.mrf.mxu0
      %v1429 = vadd.f32 0.0, %v1428
      %v1430 = vpop.f32.mrf.mxu0
      %v1431 = vadd.f32 0.0, %v1430
      %1432 = vmatmul.bf16.gmra.mxu0 %v1172
      %v1433 = vpop.f32.mrf.mxu0
      %v1434 = vadd.f32 0.0, %v1433
      %v1435 = vpop.f32.mrf.mxu0
      %v1436 = vadd.f32 0.0, %v1435
      %1437 = vdwg.mxu0
      %v1454 = vunpack.c.l.b16 %v1152
      %v1455 = vunpack.c.l.b16 %v1153
      %v1456 = vunpack.c.l.b16 %v1154
      %v1457 = vunpack.c.l.b16 %v1155
      %v1458 = vunpack.c.l.b16 %v1156
      %v1459 = vunpack.c.l.b16 %v1157
      %v1460 = vunpack.c.l.b16 %v1158
      %v1461 = vunpack.c.l.b16 %v1159
      %v1462 = vunpack.c.l.b16 %v1160
      %v1463 = vunpack.c.l.b16 %v1161
      %v1464 = vunpack.c.l.b16 %v1162
      %v1465 = vunpack.c.l.b16 %v1163
      %v1466 = vunpack.c.l.b16 %v1164
      %v1467 = vunpack.c.l.b16 %v1165
      %v1468 = vunpack.c.l.b16 %v1166
      %v1469 = vunpack.c.l.b16 %v1167
      %v1470 = vpack.c.b16 %v1455, %v1454
      %v1471 = vpack.c.b16 %v1457, %v1456
      %v1472 = vpack.c.b16 %v1459, %v1458
      %v1473 = vpack.c.b16 %v1461, %v1460
      %v1474 = vpack.c.b16 %v1463, %v1462
      %v1475 = vpack.c.b16 %v1465, %v1464
      %v1476 = vpack.c.b16 %v1467, %v1466
      %v1477 = vpack.c.b16 %v1469, %v1468
      %1486 = vmatpush.bf16.msra.mxu0 %v1477
      %1487 = vmatpush.bf16.msra.mxu0 %v1476
      %1488 = vmatpush.bf16.msra.mxu0 %v1475
      %1489 = vmatpush.bf16.msra.mxu0 %v1474
      %1490 = vmatpush.bf16.msra.mxu0 %v1473
      %1491 = vmatpush.bf16.msra.mxu0 %v1472
      %1492 = vmatpush.bf16.msra.mxu0 %v1471
      %1493 = vmatpush.bf16.msra.mxu0 %v1470
      %1494 = vmatmul.bf16.gmra.mxu0 %v1131
      %v1495 = vpop.f32.mrf.mxu0
      %v1496 = vadd.f32 %v1419, %v1495
      %v1497 = vpop.f32.mrf.mxu0
      %v1498 = vadd.f32 %v1421, %v1497
      %1499 = vmatmul.bf16.gmra.mxu0 %v1132
      %v1500 = vpop.f32.mrf.mxu0
      %v1501 = vadd.f32 %v1424, %v1500
      %v1502 = vpop.f32.mrf.mxu0
      %v1503 = vadd.f32 %v1426, %v1502
      %1504 = vmatmul.bf16.gmra.mxu0 %v1133
      %v1505 = vpop.f32.mrf.mxu0
      %v1506 = vadd.f32 %v1429, %v1505
      %v1507 = vpop.f32.mrf.mxu0
      %v1508 = vadd.f32 %v1431, %v1507
      %1509 = vmatmul.bf16.gmra.mxu0 %v1134
      %v1510 = vpop.f32.mrf.mxu0
      %v1511 = vadd.f32 %v1434, %v1510
      %v1512 = vpop.f32.mrf.mxu0
      %v1513 = vadd.f32 %v1436, %v1512
      %1514 = vdwg.mxu0
      %v1515 = vld [vmem:[#allocation2 + $0x10] sm:$0xff]
      %v1516 = vld [vmem:[#allocation2 + $0x18] sm:$0xff]
      %v1517 = vld [vmem:[#allocation2 + $0x20] sm:$0xff]
      %v1518 = vld [vmem:[#allocation2 + $0x28] sm:$0xff]
      %v1519 = vld [vmem:[#allocation2 + $0x30] sm:$0xff]
      %v1520 = vld [vmem:[#allocation2 + $0x38] sm:$0xff]
      %v1521 = vld [vmem:[#allocation2 + $0x40] sm:$0xff]
      %v1522 = vld [vmem:[#allocation2 + $0x48] sm:$0xff]
      %v1523 = vpack.c.bf16 %v1516, %v1515
      %v1524 = vpack.c.bf16 %v1518, %v1517
      %v1525 = vpack.c.bf16 %v1520, %v1519
      %v1526 = vpack.c.bf16 %v1522, %v1521
      %s1527 = scalar_lea.vmem %s2, 128
      %v1528 = vld [vmem:[%s1527] sm:$0xf]
      %v1529 = vld [vmem:[%s1527 + $0x4] sm:$0xf]
      %v1530 = vld [vmem:[%s1527 + $0x8] sm:$0xf]
      %v1531 = vld [vmem:[%s1527 + $0xc] sm:$0xf]
      %v1532 = vld [vmem:[%s1527 + $0x10] sm:$0xf]
      %v1533 = vld [vmem:[%s1527 + $0x14] sm:$0xf]
      %v1534 = vld [vmem:[%s1527 + $0x18] sm:$0xf]
      %v1535 = vld [vmem:[%s1527 + $0x1c] sm:$0xf]
      %v1536 = vld [vmem:[%s1527 + $0x20] sm:$0xf]
      %v1537 = vld [vmem:[%s1527 + $0x24] sm:$0xf]
      %v1538 = vld [vmem:[%s1527 + $0x28] sm:$0xf]
      %v1539 = vld [vmem:[%s1527 + $0x2c] sm:$0xf]
      %v1540 = vld [vmem:[%s1527 + $0x30] sm:$0xf]
      %v1541 = vld [vmem:[%s1527 + $0x34] sm:$0xf]
      %v1542 = vld [vmem:[%s1527 + $0x38] sm:$0xf]
      %v1543 = vld [vmem:[%s1527 + $0x3c] sm:$0xf]
      %v1560 = vunpack.c.l.b16 %v1528
      %v1561 = vunpack.c.l.b16 %v1529
      %v1562 = vunpack.c.l.b16 %v1530
      %v1563 = vunpack.c.l.b16 %v1531
      %v1564 = vunpack.c.l.b16 %v1532
      %v1565 = vunpack.c.l.b16 %v1533
      %v1566 = vunpack.c.l.b16 %v1534
      %v1567 = vunpack.c.l.b16 %v1535
      %v1568 = vunpack.c.l.b16 %v1536
      %v1569 = vunpack.c.l.b16 %v1537
      %v1570 = vunpack.c.l.b16 %v1538
      %v1571 = vunpack.c.l.b16 %v1539
      %v1572 = vunpack.c.l.b16 %v1540
      %v1573 = vunpack.c.l.b16 %v1541
      %v1574 = vunpack.c.l.b16 %v1542
      %v1575 = vunpack.c.l.b16 %v1543
      %v1576 = vpack.c.b16 %v1561, %v1560
      %v1577 = vpack.c.b16 %v1563, %v1562
      %v1578 = vpack.c.b16 %v1565, %v1564
      %v1579 = vpack.c.b16 %v1567, %v1566
      %v1580 = vpack.c.b16 %v1569, %v1568
      %v1581 = vpack.c.b16 %v1571, %v1570
      %v1582 = vpack.c.b16 %v1573, %v1572
      %v1583 = vpack.c.b16 %v1575, %v1574
      %1592 = vmatpush.bf16.msra.mxu0 %v1583
      %1593 = vmatpush.bf16.msra.mxu0 %v1582
      %1594 = vmatpush.bf16.msra.mxu0 %v1581
      %1595 = vmatpush.bf16.msra.mxu0 %v1580
      %1596 = vmatpush.bf16.msra.mxu0 %v1579
      %1597 = vmatpush.bf16.msra.mxu0 %v1578
      %1598 = vmatpush.bf16.msra.mxu0 %v1577
      %1599 = vmatpush.bf16.msra.mxu0 %v1576
      %1600 = vmatmul.bf16.gmra.mxu0 %v1523
      %v1601 = vpop.f32.mrf.mxu0
      %v1602 = vadd.f32 0.0, %v1601
      %v1603 = vpop.f32.mrf.mxu0
      %v1604 = vadd.f32 0.0, %v1603
      %1605 = vmatmul.bf16.gmra.mxu0 %v1524
      %v1606 = vpop.f32.mrf.mxu0
      %v1607 = vadd.f32 0.0, %v1606
      %v1608 = vpop.f32.mrf.mxu0
      %v1609 = vadd.f32 0.0, %v1608
      %1610 = vmatmul.bf16.gmra.mxu0 %v1525
      %v1611 = vpop.f32.mrf.mxu0
      %v1612 = vadd.f32 0.0, %v1611
      %v1613 = vpop.f32.mrf.mxu0
      %v1614 = vadd.f32 0.0, %v1613
      %1615 = vmatmul.bf16.gmra.mxu0 %v1526
      %v1616 = vpop.f32.mrf.mxu0
      %v1617 = vadd.f32 0.0, %v1616
      %v1618 = vpop.f32.mrf.mxu0
      %v1619 = vadd.f32 0.0, %v1618
      %1620 = vdwg.mxu0
      %v1621 = vadd.f32 %v1325, %v1602
      %v1622 = vadd.f32 %v1327, %v1604
      %v1623 = vadd.f32 %v1330, %v1607
      %v1624 = vadd.f32 %v1332, %v1609
      %v1625 = vadd.f32 %v1335, %v1612
      %v1626 = vadd.f32 %v1337, %v1614
      %v1627 = vadd.f32 %v1340, %v1617
      %v1628 = vadd.f32 %v1342, %v1619
      %s1629 = scalar_lea.vmem %s2, 320
      %v1630 = vld [vmem:[%s1629] sm:$0xf]
      %v1631 = vld [vmem:[%s1629 + $0x4] sm:$0xf]
      %v1632 = vld [vmem:[%s1629 + $0x8] sm:$0xf]
      %v1633 = vld [vmem:[%s1629 + $0xc] sm:$0xf]
      %v1634 = vld [vmem:[%s1629 + $0x10] sm:$0xf]
      %v1635 = vld [vmem:[%s1629 + $0x14] sm:$0xf]
      %v1636 = vld [vmem:[%s1629 + $0x18] sm:$0xf]
      %v1637 = vld [vmem:[%s1629 + $0x1c] sm:$0xf]
      %v1638 = vld [vmem:[%s1629 + $0x20] sm:$0xf]
      %v1639 = vld [vmem:[%s1629 + $0x24] sm:$0xf]
      %v1640 = vld [vmem:[%s1629 + $0x28] sm:$0xf]
      %v1641 = vld [vmem:[%s1629 + $0x2c] sm:$0xf]
      %v1642 = vld [vmem:[%s1629 + $0x30] sm:$0xf]
      %v1643 = vld [vmem:[%s1629 + $0x34] sm:$0xf]
      %v1644 = vld [vmem:[%s1629 + $0x38] sm:$0xf]
      %v1645 = vld [vmem:[%s1629 + $0x3c] sm:$0xf]
      %v1662 = vunpack.c.l.b16 %v1630
      %v1663 = vunpack.c.l.b16 %v1631
      %v1664 = vunpack.c.l.b16 %v1632
      %v1665 = vunpack.c.l.b16 %v1633
      %v1666 = vunpack.c.l.b16 %v1634
      %v1667 = vunpack.c.l.b16 %v1635
      %v1668 = vunpack.c.l.b16 %v1636
      %v1669 = vunpack.c.l.b16 %v1637
      %v1670 = vunpack.c.l.b16 %v1638
      %v1671 = vunpack.c.l.b16 %v1639
      %v1672 = vunpack.c.l.b16 %v1640
      %v1673 = vunpack.c.l.b16 %v1641
      %v1674 = vunpack.c.l.b16 %v1642
      %v1675 = vunpack.c.l.b16 %v1643
      %v1676 = vunpack.c.l.b16 %v1644
      %v1677 = vunpack.c.l.b16 %v1645
      %v1678 = vpack.c.b16 %v1663, %v1662
      %v1679 = vpack.c.b16 %v1665, %v1664
      %v1680 = vpack.c.b16 %v1667, %v1666
      %v1681 = vpack.c.b16 %v1669, %v1668
      %v1682 = vpack.c.b16 %v1671, %v1670
      %v1683 = vpack.c.b16 %v1673, %v1672
      %v1684 = vpack.c.b16 %v1675, %v1674
      %v1685 = vpack.c.b16 %v1677, %v1676
      %1694 = vmatpush.bf16.msra.mxu0 %v1685
      %1695 = vmatpush.bf16.msra.mxu0 %v1684
      %1696 = vmatpush.bf16.msra.mxu0 %v1683
      %1697 = vmatpush.bf16.msra.mxu0 %v1682
      %1698 = vmatpush.bf16.msra.mxu0 %v1681
      %1699 = vmatpush.bf16.msra.mxu0 %v1680
      %1700 = vmatpush.bf16.msra.mxu0 %v1679
      %1701 = vmatpush.bf16.msra.mxu0 %v1678
      %1702 = vmatmul.bf16.gmra.mxu0 %v1523
      %v1703 = vpop.f32.mrf.mxu0
      %v1704 = vadd.f32 0.0, %v1703
      %v1705 = vpop.f32.mrf.mxu0
      %v1706 = vadd.f32 0.0, %v1705
      %1707 = vmatmul.bf16.gmra.mxu0 %v1524
      %v1708 = vpop.f32.mrf.mxu0
      %v1709 = vadd.f32 0.0, %v1708
      %v1710 = vpop.f32.mrf.mxu0
      %v1711 = vadd.f32 0.0, %v1710
      %1712 = vmatmul.bf16.gmra.mxu0 %v1525
      %v1713 = vpop.f32.mrf.mxu0
      %v1714 = vadd.f32 0.0, %v1713
      %v1715 = vpop.f32.mrf.mxu0
      %v1716 = vadd.f32 0.0, %v1715
      %1717 = vmatmul.bf16.gmra.mxu0 %v1526
      %v1718 = vpop.f32.mrf.mxu0
      %v1719 = vadd.f32 0.0, %v1718
      %v1720 = vpop.f32.mrf.mxu0
      %v1721 = vadd.f32 0.0, %v1720
      %1722 = vdwg.mxu0
      %v1723 = vadd.f32 %v1496, %v1704
      %v1724 = vadd.f32 %v1498, %v1706
      %v1725 = vadd.f32 %v1501, %v1709
      %v1726 = vadd.f32 %v1503, %v1711
      %v1727 = vadd.f32 %v1506, %v1714
      %v1728 = vadd.f32 %v1508, %v1716
      %v1729 = vadd.f32 %v1511, %v1719
      %v1730 = vadd.f32 %v1513, %v1721
      %v1731 = vmax.f32 %v1621, %v1723
      %v1732 = vmax.f32 %v1622, %v1724
      %v1733 = vmax.f32 %v1623, %v1725
      %v1734 = vmax.f32 %v1624, %v1726
      %v1735 = vmax.f32 %v1625, %v1727
      %v1736 = vmax.f32 %v1626, %v1728
      %v1737 = vmax.f32 %v1627, %v1729
      %v1738 = vmax.f32 %v1628, %v1730
      %v1739 = vperm.slane %v254, 0
      %v1740 = vadd.f32 %v1731, %v1739
      %v1741 = vadd.f32 %v1732, %v1739
      %v1742 = vadd.f32 %v1733, %v1739
      %v1743 = vadd.f32 %v1734, %v1739
      %v1744 = vadd.f32 %v1735, %v1739
      %v1745 = vadd.f32 %v1736, %v1739
      %v1746 = vadd.f32 %v1737, %v1739
      %v1747 = vadd.f32 %v1738, %v1739
      %v1748 = vmax.f32 %v1740, 0.0
      %v1749 = vmax.f32 %v1741, 0.0
      %v1750 = vmax.f32 %v1742, 0.0
      %v1751 = vmax.f32 %v1743, 0.0
      %v1752 = vmax.f32 %v1744, 0.0
      %v1753 = vmax.f32 %v1745, 0.0
      %v1754 = vmax.f32 %v1746, 0.0
      %v1755 = vmax.f32 %v1747, 0.0
      %v1756 = vmax.f32 %v1748, %v1749
      %v1757 = vmax.f32 %v1750, %v1751
      %v1758 = vmax.f32 %v1752, %v1753
      %v1759 = vmax.f32 %v1754, %v1755
      %v1760 = vpack.c.bf16 %v1757, %v1756
      %v1761 = vpack.c.bf16 %v1759, %v1758
      %v1762 = vld [vmem:[%s3] sm:$0xff]
      %v1763 = vld [vmem:[%s3 + $0x8] sm:$0xff]
      %v1765 = vperm.slane %v256, 0
      %v1766 = vperm.slane %v256, 1
      %v1771 = vunpack.c.l.b16 %v1762
      %v1772 = vunpack.c.h.b16 %v1762
      %v1773 = vunpack.c.l.b16 %v1763
      %v1774 = vunpack.c.h.b16 %v1763
      %v1775 = vpack.c.b16 %v1773, %v1771
      %v1776 = vpack.c.b16 %v1774, %v1772
      %vm1779 = vcmask 130048
      %v1781 = vsel %vm1779, %v1760, 0
      %v1784 = vsel %vm1779, %v1761, 0
      %1786 = vmatpush.bf16.msra.mxu0 0
      %1787 = vmatpush.bf16.msra.mxu0 0
      %1788 = vmatpush.bf16.msra.mxu0 0
      %1789 = vmatpush.bf16.msra.mxu0 0
      %1790 = vmatpush.bf16.msra.mxu0 0
      %1791 = vmatpush.bf16.msra.mxu0 0
      %1792 = vmatpush.bf16.msra.mxu0 0
      %1793 = vmatpush.bf16.msra.mxu0 %v1775
      %1794 = vmatmul.bf16.gmra.mxu0 %v1781
      %v1795 = vpop.f32.mrf.mxu0
      %v1796 = vadd.f32 %v1765, %v1795
      %v1797 = vpop.f32.mrf.mxu0
      %v1798 = vadd.f32 %v1765, %v1797
      %1799 = vmatmul.bf16.gmra.mxu0 %v1784
      %v1800 = vpop.f32.mrf.mxu0
      %v1801 = vadd.f32 %v1765, %v1800
      %v1802 = vpop.f32.mrf.mxu0
      %v1803 = vadd.f32 %v1765, %v1802
      %1804 = vdwg.mxu0
      %1805 = vmatpush.bf16.msra.mxu0 0
      %1806 = vmatpush.bf16.msra.mxu0 0
      %1807 = vmatpush.bf16.msra.mxu0 0
      %1808 = vmatpush.bf16.msra.mxu0 0
      %1809 = vmatpush.bf16.msra.mxu0 0
      %1810 = vmatpush.bf16.msra.mxu0 0
      %1811 = vmatpush.bf16.msra.mxu0 0
      %1812 = vmatpush.bf16.msra.mxu0 %v1776
      %1813 = vmatmul.bf16.gmra.mxu0 %v1781
      %v1814 = vpop.f32.mrf.mxu0
      %v1815 = vadd.f32 %v1766, %v1814
      %v1816 = vpop.f32.mrf.mxu0
      %v1817 = vadd.f32 %v1766, %v1816
      %1818 = vmatmul.bf16.gmra.mxu0 %v1784
      %v1819 = vpop.f32.mrf.mxu0
      %v1820 = vadd.f32 %v1766, %v1819
      %v1821 = vpop.f32.mrf.mxu0
      %v1822 = vadd.f32 %v1766, %v1821
      %1823 = vdwg.mxu0
      %v1824 = vmax.f32 %v1796, 0.0
      %v1825 = vmax.f32 %v1815, 0.0
      %v1826 = vmax.f32 %v1798, 0.0
      %v1827 = vmax.f32 %v1817, 0.0
      %v1828 = vmax.f32 %v1801, 0.0
      %v1829 = vmax.f32 %v1820, 0.0
      %v1830 = vmax.f32 %v1803, 0.0
      %v1831 = vmax.f32 %v1822, 0.0
      %v1832 = vpack.c.bf16 %v1826, %v1824
      %v1833 = vpack.c.bf16 %v1827, %v1825
      %v1834 = vpack.c.bf16 %v1830, %v1828
      %v1835 = vpack.c.bf16 %v1831, %v1829
      %v1836 = vld [vmem:[%s4] sm:$0xff]
      %v1837 = vld [vmem:[%s4 + $0x8] sm:$0xff]
      %v1838 = vld [vmem:[%s4 + $0x10] sm:$0xff]
      %v1839 = vld [vmem:[%s4 + $0x18] sm:$0xff]
      %v1840 = vld [vmem:[%s4 + $0x20] sm:$0xff]
      %v1841 = vld [vmem:[%s4 + $0x28] sm:$0xff]
      %v1842 = vld [vmem:[%s4 + $0x30] sm:$0xff]
      %v1843 = vld [vmem:[%s4 + $0x38] sm:$0xff]
      %v1844 = vld [vmem:[%s4 + $0x40] sm:$0xff]
      %v1845 = vld [vmem:[%s4 + $0x48] sm:$0xff]
      %v1846 = vld [vmem:[%s4 + $0x50] sm:$0xff]
      %v1847 = vld [vmem:[%s4 + $0x58] sm:$0xff]
      %v1848 = vld [vmem:[%s4 + $0x60] sm:$0xff]
      %v1849 = vld [vmem:[%s4 + $0x68] sm:$0xff]
      %v1850 = vld [vmem:[%s4 + $0x70] sm:$0xff]
      %v1851 = vld [vmem:[%s4 + $0x78] sm:$0xff]
      %v1852 = vld [vmem:[%s4 + $0x80] sm:$0xff]
      %v1853 = vld [vmem:[%s4 + $0x88] sm:$0xff]
      %v1854 = vld [vmem:[%s4 + $0x90] sm:$0xff]
      %v1855 = vld [vmem:[%s4 + $0x98] sm:$0xff]
      %v1856 = vld [vmem:[%s4 + $0xa0] sm:$0xff]
      %v1857 = vld [vmem:[%s4 + $0xa8] sm:$0xff]
      %v1858 = vld [vmem:[%s4 + $0xb0] sm:$0xff]
      %v1859 = vld [vmem:[%s4 + $0xb8] sm:$0xff]
      %v1860 = vld [vmem:[%s4 + $0xc0] sm:$0xff]
      %v1861 = vld [vmem:[%s4 + $0xc8] sm:$0xff]
      %v1862 = vld [vmem:[%s4 + $0xd0] sm:$0xff]
      %v1863 = vld [vmem:[%s4 + $0xd8] sm:$0xff]
      %v1864 = vld [vmem:[%s4 + $0xe0] sm:$0xff]
      %v1865 = vld [vmem:[%s4 + $0xe8] sm:$0xff]
      %v1866 = vld [vmem:[%s4 + $0xf0] sm:$0xff]
      %v1867 = vld [vmem:[%s4 + $0xf8] sm:$0xff]
      %v1869 = vperm.slane %v258, 0
      %v1870 = vperm.slane %v258, 1
      %v1905 = vunpack.c.l.b16 %v1836
      %v1906 = vunpack.c.h.b16 %v1836
      %v1907 = vunpack.c.l.b16 %v1837
      %v1908 = vunpack.c.h.b16 %v1837
      %v1909 = vunpack.c.l.b16 %v1838
      %v1910 = vunpack.c.h.b16 %v1838
      %v1911 = vunpack.c.l.b16 %v1839
      %v1912 = vunpack.c.h.b16 %v1839
      %v1913 = vunpack.c.l.b16 %v1840
      %v1914 = vunpack.c.h.b16 %v1840
      %v1915 = vunpack.c.l.b16 %v1841
      %v1916 = vunpack.c.h.b16 %v1841
      %v1917 = vunpack.c.l.b16 %v1842
      %v1918 = vunpack.c.h.b16 %v1842
      %v1919 = vunpack.c.l.b16 %v1843
      %v1920 = vunpack.c.h.b16 %v1843
      %v1921 = vunpack.c.l.b16 %v1844
      %v1922 = vunpack.c.h.b16 %v1844
      %v1923 = vunpack.c.l.b16 %v1845
      %v1924 = vunpack.c.h.b16 %v1845
      %v1925 = vunpack.c.l.b16 %v1846
      %v1926 = vunpack.c.h.b16 %v1846
      %v1927 = vunpack.c.l.b16 %v1847
      %v1928 = vunpack.c.h.b16 %v1847
      %v1929 = vunpack.c.l.b16 %v1848
      %v1930 = vunpack.c.h.b16 %v1848
      %v1931 = vunpack.c.l.b16 %v1849
      %v1932 = vunpack.c.h.b16 %v1849
      %v1933 = vunpack.c.l.b16 %v1850
      %v1934 = vunpack.c.h.b16 %v1850
      %v1935 = vunpack.c.l.b16 %v1851
      %v1936 = vunpack.c.h.b16 %v1851
      %v1937 = vunpack.c.l.b16 %v1852
      %v1938 = vunpack.c.h.b16 %v1852
      %v1939 = vunpack.c.l.b16 %v1853
      %v1940 = vunpack.c.h.b16 %v1853
      %v1941 = vunpack.c.l.b16 %v1854
      %v1942 = vunpack.c.h.b16 %v1854
      %v1943 = vunpack.c.l.b16 %v1855
      %v1944 = vunpack.c.h.b16 %v1855
      %v1945 = vunpack.c.l.b16 %v1856
      %v1946 = vunpack.c.h.b16 %v1856
      %v1947 = vunpack.c.l.b16 %v1857
      %v1948 = vunpack.c.h.b16 %v1857
      %v1949 = vunpack.c.l.b16 %v1858
      %v1950 = vunpack.c.h.b16 %v1858
      %v1951 = vunpack.c.l.b16 %v1859
      %v1952 = vunpack.c.h.b16 %v1859
      %v1953 = vunpack.c.l.b16 %v1860
      %v1954 = vunpack.c.h.b16 %v1860
      %v1955 = vunpack.c.l.b16 %v1861
      %v1956 = vunpack.c.h.b16 %v1861
      %v1957 = vunpack.c.l.b16 %v1862
      %v1958 = vunpack.c.h.b16 %v1862
      %v1959 = vunpack.c.l.b16 %v1863
      %v1960 = vunpack.c.h.b16 %v1863
      %v1961 = vunpack.c.l.b16 %v1864
      %v1962 = vunpack.c.h.b16 %v1864
      %v1963 = vunpack.c.l.b16 %v1865
      %v1964 = vunpack.c.h.b16 %v1865
      %v1965 = vunpack.c.l.b16 %v1866
      %v1966 = vunpack.c.h.b16 %v1866
      %v1967 = vunpack.c.l.b16 %v1867
      %v1968 = vunpack.c.h.b16 %v1867
      %v1969 = vpack.c.b16 %v1907, %v1905
      %v1970 = vpack.c.b16 %v1908, %v1906
      %v1971 = vpack.c.b16 %v1911, %v1909
      %v1972 = vpack.c.b16 %v1912, %v1910
      %v1973 = vpack.c.b16 %v1915, %v1913
      %v1974 = vpack.c.b16 %v1916, %v1914
      %v1975 = vpack.c.b16 %v1919, %v1917
      %v1976 = vpack.c.b16 %v1920, %v1918
      %v1977 = vpack.c.b16 %v1923, %v1921
      %v1978 = vpack.c.b16 %v1924, %v1922
      %v1979 = vpack.c.b16 %v1927, %v1925
      %v1980 = vpack.c.b16 %v1928, %v1926
      %v1981 = vpack.c.b16 %v1931, %v1929
      %v1982 = vpack.c.b16 %v1932, %v1930
      %v1983 = vpack.c.b16 %v1935, %v1933
      %v1984 = vpack.c.b16 %v1936, %v1934
      %v1985 = vpack.c.b16 %v1939, %v1937
      %v1986 = vpack.c.b16 %v1940, %v1938
      %v1987 = vpack.c.b16 %v1943, %v1941
      %v1988 = vpack.c.b16 %v1944, %v1942
      %v1989 = vpack.c.b16 %v1947, %v1945
      %v1990 = vpack.c.b16 %v1948, %v1946
      %v1991 = vpack.c.b16 %v1951, %v1949
      %v1992 = vpack.c.b16 %v1952, %v1950
      %v1993 = vpack.c.b16 %v1955, %v1953
      %v1994 = vpack.c.b16 %v1956, %v1954
      %v1995 = vpack.c.b16 %v1959, %v1957
      %v1996 = vpack.c.b16 %v1960, %v1958
      %v1997 = vpack.c.b16 %v1963, %v1961
      %v1998 = vpack.c.b16 %v1964, %v1962
      %v1999 = vpack.c.b16 %v1967, %v1965
      %v2000 = vpack.c.b16 %v1968, %v1966
      %2033 = vmatpush.bf16.msra.mxu0 %v1983
      %2034 = vmatpush.bf16.msra.mxu0 %v1981
      %2035 = vmatpush.bf16.msra.mxu0 %v1979
      %2036 = vmatpush.bf16.msra.mxu0 %v1977
      %2037 = vmatpush.bf16.msra.mxu0 %v1975
      %2038 = vmatpush.bf16.msra.mxu0 %v1973
      %2039 = vmatpush.bf16.msra.mxu0 %v1971
      %2040 = vmatpush.bf16.msra.mxu0 %v1969
      %2041 = vmatmul.bf16.gmra.mxu0 %v1832
      %v2042 = vpop.f32.mrf.mxu0
      %v2043 = vadd.f32 %v1869, %v2042
      %v2044 = vpop.f32.mrf.mxu0
      %v2045 = vadd.f32 %v1869, %v2044
      %2046 = vmatmul.bf16.gmra.mxu0 %v1834
      %v2047 = vpop.f32.mrf.mxu0
      %v2048 = vadd.f32 %v1869, %v2047
      %v2049 = vpop.f32.mrf.mxu0
      %v2050 = vadd.f32 %v1869, %v2049
      %2051 = vdwg.mxu0
      %2052 = vmatpush.bf16.msra.mxu0 %v1999
      %2053 = vmatpush.bf16.msra.mxu0 %v1997
      %2054 = vmatpush.bf16.msra.mxu0 %v1995
      %2055 = vmatpush.bf16.msra.mxu0 %v1993
      %2056 = vmatpush.bf16.msra.mxu0 %v1991
      %2057 = vmatpush.bf16.msra.mxu0 %v1989
      %2058 = vmatpush.bf16.msra.mxu0 %v1987
      %2059 = vmatpush.bf16.msra.mxu0 %v1985
      %2060 = vmatmul.bf16.gmra.mxu0 %v1833
      %v2061 = vpop.f32.mrf.mxu0
      %v2062 = vadd.f32 %v2043, %v2061
      %v2063 = vpop.f32.mrf.mxu0
      %v2064 = vadd.f32 %v2045, %v2063
      %2065 = vmatmul.bf16.gmra.mxu0 %v1835
      %v2066 = vpop.f32.mrf.mxu0
      %v2067 = vadd.f32 %v2048, %v2066
      %v2068 = vpop.f32.mrf.mxu0
      %v2069 = vadd.f32 %v2050, %v2068
      %2070 = vdwg.mxu0
      %2071 = vmatpush.bf16.msra.mxu0 %v1984
      %2072 = vmatpush.bf16.msra.mxu0 %v1982
      %2073 = vmatpush.bf16.msra.mxu0 %v1980
      %2074 = vmatpush.bf16.msra.mxu0 %v1978
      %2075 = vmatpush.bf16.msra.mxu0 %v1976
      %2076 = vmatpush.bf16.msra.mxu0 %v1974
      %2077 = vmatpush.bf16.msra.mxu0 %v1972
      %2078 = vmatpush.bf16.msra.mxu0 %v1970
      %2079 = vmatmul.bf16.gmra.mxu0 %v1832
      %v2080 = vpop.f32.mrf.mxu0
      %v2081 = vadd.f32 %v1870, %v2080
      %v2082 = vpop.f32.mrf.mxu0
      %v2083 = vadd.f32 %v1870, %v2082
      %2084 = vmatmul.bf16.gmra.mxu0 %v1834
      %v2085 = vpop.f32.mrf.mxu0
      %v2086 = vadd.f32 %v1870, %v2085
      %v2087 = vpop.f32.mrf.mxu0
      %v2088 = vadd.f32 %v1870, %v2087
      %2089 = vdwg.mxu0
      %2090 = vmatpush.bf16.msra.mxu0 %v2000
      %2091 = vmatpush.bf16.msra.mxu0 %v1998
      %2092 = vmatpush.bf16.msra.mxu0 %v1996
      %2093 = vmatpush.bf16.msra.mxu0 %v1994
      %2094 = vmatpush.bf16.msra.mxu0 %v1992
      %2095 = vmatpush.bf16.msra.mxu0 %v1990
      %2096 = vmatpush.bf16.msra.mxu0 %v1988
      %2097 = vmatpush.bf16.msra.mxu0 %v1986
      %2098 = vmatmul.bf16.gmra.mxu0 %v1833
      %v2099 = vpop.f32.mrf.mxu0
      %v2100 = vadd.f32 %v2081, %v2099
      %v2101 = vpop.f32.mrf.mxu0
      %v2102 = vadd.f32 %v2083, %v2101
      %2103 = vmatmul.bf16.gmra.mxu0 %v1835
      %v2104 = vpop.f32.mrf.mxu0
      %v2105 = vadd.f32 %v2086, %v2104
      %v2106 = vpop.f32.mrf.mxu0
      %v2107 = vadd.f32 %v2088, %v2106
      %2108 = vdwg.mxu0
      %v2109 = vsub.f32 0.0, %v2062
      %v2110 = vsub.f32 0.0, %v2100
      %v2111 = vsub.f32 0.0, %v2064
      %v2112 = vsub.f32 0.0, %v2102
      %v2113 = vsub.f32 0.0, %v2067
      %v2114 = vsub.f32 0.0, %v2105
      %v2115 = vsub.f32 0.0, %v2069
      %v2116 = vsub.f32 0.0, %v2107
      %v2117 = vmul.f32 %v2109, 1.442695
      %v2118 = vpow.pop %v2117
      %v2119 = vmul.f32 %v2110, 1.442695
      %v2120 = vpow.pop %v2119
      %v2121 = vmul.f32 %v2111, 1.442695
      %v2122 = vpow.pop %v2121
      %v2123 = vmul.f32 %v2112, 1.442695
      %v2124 = vpow.pop %v2123
      %v2125 = vmul.f32 %v2113, 1.442695
      %v2126 = vpow.pop %v2125
      %v2127 = vmul.f32 %v2114, 1.442695
      %v2128 = vpow.pop %v2127
      %v2129 = vmul.f32 %v2115, 1.442695
      %v2130 = vpow.pop %v2129
      %v2131 = vmul.f32 %v2116, 1.442695
      %v2132 = vpow.pop %v2131
      %v2133 = vadd.f32 %v2118, 1.0
      %v2134 = vadd.f32 %v2120, 1.0
      %v2135 = vadd.f32 %v2122, 1.0
      %v2136 = vadd.f32 %v2124, 1.0
      %v2137 = vadd.f32 %v2126, 1.0
      %v2138 = vadd.f32 %v2128, 1.0
      %v2139 = vadd.f32 %v2130, 1.0
      %v2140 = vadd.f32 %v2132, 1.0
      %v2141 = vrcp.pop %v2133
      %v2142 = vrcp.pop %v2134
      %v2143 = vrcp.pop %v2135
      %v2144 = vrcp.pop %v2136
      %v2145 = vrcp.pop %v2137
      %v2146 = vrcp.pop %v2138
      %v2147 = vrcp.pop %v2139
      %v2148 = vrcp.pop %v2140
      %2149 = vst [vmem:[%s251] sm:$0xff] %v2141
      %vm2150 = vcmask 523264
      %2151 = vst.msk [vmem:[%s251 + $0x8] sm:$0xff] %vm2150, %v2142
      %2152 = vst [vmem:[%s251 + $0x10] sm:$0xff] %v2143
      %2153 = vst.msk [vmem:[%s251 + $0x18] sm:$0xff] %vm2150, %v2144
      %2154 = vst [vmem:[%s251 + $0x20] sm:$0xff] %v2145
      %2155 = vst.msk [vmem:[%s251 + $0x28] sm:$0xff] %vm2150, %v2146
      %2156 = vst [vmem:[%s251 + $0x30] sm:$0xff] %v2147
      %2157 = vst.msk [vmem:[%s251 + $0x38] sm:$0xff] %vm2150, %v2148
      %p2158 = scmp.lt.s32.totalorder %s17, 1
      %s2159 = scalar_select %p2158, %s17, 1
      %s2160 = smul.addr %s2159, 8
      %s2161 = smul.addr %s2160, 8
      %s2162 = scalar_lea.vmem %s6, %s2161
      // Predicated region
      $region45: #{conv_autoencoder_forward.1} parent=43 // pred_check
        %p2163 = pneg %p166
      $region46: #{conv_autoencoder_forward.1} parent=43 // pred_check_branch
        %2165 = sbr.rel (%p2163) target = $region48
      $region47: #{conv_autoencoder_forward.1} parent=43 // pred_region
        _
      $region48: #{conv_autoencoder_forward.1} parent=43 // pred_fallthru
        _
    $region44: #{conv_autoencoder_forward.1} parent=5 // pred_fallthru
      _
    %p2166 = scmp.le.s32.totalorder 2, %s12
    // Predicated region
    $region49: #{conv_autoencoder_forward.1} parent=5 // pred_check
      %p2167 = pneg %p2166
    $region50: #{conv_autoencoder_forward.1} parent=5 // pred_check_branch
      %2169 = sbr.rel (%p2167) target = $region52
    $region51: #{conv_autoencoder_forward.1} parent=5 // pred_region
      %s2170 = ssub.s32 %s12, 2
      // Predicated region
      $region53: #{conv_autoencoder_forward.1} parent=51 // pred_check
        %p2171 = pneg %p172
      $region54: #{conv_autoencoder_forward.1} parent=51 // pred_check_branch
        %2173 = sbr.rel (%p2171) target = $region56
      $region55: #{conv_autoencoder_forward.1} parent=51 // pred_region
        %p2174 = scmp.lt.s32.totalorder %s18, 1
        %s2175 = scalar_select %p2174, %s18, 1
        %s2176 = smul.addr %s2175, 8
        %s2177 = smul.addr %s2176, 8
        %s2178 = scalar_lea.vmem %s6, %s2177
      $region56: #{conv_autoencoder_forward.1} parent=51 // pred_fallthru
        _
    $region52: #{conv_autoencoder_forward.1} parent=5 // pred_fallthru
      _
  $region6: #{conv_autoencoder_forward.1} parent=0 // loop_footer
    %s16 = sadd.s32 1, %s12
  $region7: #{conv_autoencoder_forward.1} parent=0 // loop_footer_branch
    %11 = sbr.rel target = $region3
  $region8: #{conv_autoencoder_forward.1} parent=0 // loop_exit
    _

</llo_original>
